<compile_context>
chip_gen: v5e
topology: v5e:2x2
jax: 0.10.0
libtpu: 0.0.40
codegen_flags: <defaults>
</compile_context>

<pallas_src>
import functools

import jax
import jax.numpy as jnp
from jax.experimental import pallas as pl
from jax.experimental.pallas import tpu as pltpu


def _round_up(x, m):
    return ((x + m - 1) // m) * m


# --------------------------------------------------------------------------
# Fused kernel: all layers, whole sequence, single invocation.
# --------------------------------------------------------------------------
def _encoder_lstm_kernel(x_ref, w_ih0_ref, w_ihr_ref, w_hh_ref, b_ref,
                         hid_ref, cell_ref,
                         gates_scr, xseq_scr,
                         *, seq_len, batch_pad, hid_pad, n_layers):
    """Fused multi-layer LSTM forward.

    x_ref    : (seq_len*B, E_pad)           bf16  embedded input (whole sequence)
    w_ih0_ref: (E_pad, 4*H)                 bf16  layer-0 input weights (transposed)
    w_ihr_ref: (max(L-1,1), H, 4*H)         bf16  layers 1..L-1 input weights
    w_hh_ref : (L, H, 4*H)                  bf16  recurrent weights
    b_ref    : (L, 1, 4*H)                  f32   b_ih + b_hh
    hid_ref  : (L, B, H)                    f32   final hidden states
    cell_ref : (L, B, H)                    f32   final cell states
    gates_scr: VMEM (seq_len*B, 4*H)        f32   precomputed input projection
    xseq_scr : VMEM (seq_len*B, H)          bf16  per-layer output sequence
    """
    B, H = batch_pad, hid_pad

    def run_layer(layer, x_all):
        # ---- (1) Hoisted input projection: one big MXU matmul over all steps.
        w_ih = w_ih0_ref[...] if layer == 0 else w_ihr_ref[layer - 1]
        gates_scr[...] = (
            jnp.dot(x_all, w_ih, preferred_element_type=jnp.float32)
            + b_ref[layer])                       # (S*B, 4H) f32

        w_hh = w_hh_ref[layer]                    # (H, 4H) bf16, hoisted
        write_seq = layer < n_layers - 1          # last layer's sequence is unused

        # ---- (2) Sequential recurrence: small h @ W_hh matmul per timestep.
        def step(t, carry):
            h, c = carry                          # (B, H) f32
            row = pl.multiple_of(t * B, 8)        # sublane-tile aligned (B % 8 == 0)
            g = gates_scr[pl.ds(row, B), :] + jnp.dot(
                h.astype(jnp.bfloat16), w_hh,
                preferred_element_type=jnp.float32)      # (B, 4H) f32
            # PyTorch gate order: i, f, g, o — each slice lane-aligned (H % 128 == 0).
            i_g = jax.nn.sigmoid(g[:, 0 * H:1 * H])
            f_g = jax.nn.sigmoid(g[:, 1 * H:2 * H])
            g_g = jnp.tanh(g[:, 2 * H:3 * H])
            o_g = jax.nn.sigmoid(g[:, 3 * H:4 * H])
            c_new = f_g * c + i_g * g_g
            h_new = o_g * jnp.tanh(c_new)
            if write_seq:
                xseq_scr[pl.ds(row, B), :] = h_new.astype(jnp.bfloat16)
            return h_new, c_new

        h0 = jnp.zeros((B, H), jnp.float32)
        c0 = jnp.zeros((B, H), jnp.float32)
        h_fin, c_fin = jax.lax.fori_loop(
            0, seq_len, step, (h0, c0), unroll=bool(seq_len <= 16))

        # ---- (3) Final states written once per layer (no per-step stores).
        hid_ref[layer] = h_fin
        cell_ref[layer] = c_fin

    run_layer(0, x_ref[...])
    for layer in range(1, n_layers):
        run_layer(layer, xseq_scr[...])


# --------------------------------------------------------------------------
# Parameters: PyTorch-shaped init + packing (transpose / pad / bf16-cast).
# --------------------------------------------------------------------------
def init_encoder_params(key, vocab_size, emb_dim, hid_dim, n_layers):
    """PyTorch-shaped parameters (nn.Embedding + nn.LSTM)."""
    k_emb, key = jax.random.split(key)
    bound = float(hid_dim) ** -0.5
    params = {
        "embedding": jax.random.normal(k_emb, (vocab_size, emb_dim), jnp.float32),
        "layers": [],
    }
    for layer in range(n_layers):
        in_dim = emb_dim if layer == 0 else hid_dim
        key, k1, k2, k3, k4 = jax.random.split(key, 5)
        params["layers"].append({
            "w_ih": jax.random.uniform(k1, (4 * hid_dim, in_dim), jnp.float32,
                                       -bound, bound),
            "w_hh": jax.random.uniform(k2, (4 * hid_dim, hid_dim), jnp.float32,
                                       -bound, bound),
            "b_ih": jax.random.uniform(k3, (4 * hid_dim,), jnp.float32,
                                       -bound, bound),
            "b_hh": jax.random.uniform(k4, (4 * hid_dim,), jnp.float32,
                                       -bound, bound),
        })
    return params


def pack_encoder_params(params, emb_dim, hid_dim, n_layers):
    """Transpose, pad to (8,128)-aligned shapes, and cast matmul operands to bf16.

    Padding is exact: padded gate columns / padded input rows are zero, so the
    padded hidden dims remain identically zero through the recurrence.
    """
    H_pad = max(128, _round_up(hid_dim, 128))
    E_pad = max(128, _round_up(emb_dim, 128))

    def pad_rows(a, rows_pad):
        return jnp.pad(a, ((0, rows_pad - a.shape[0]), (0, 0)))

    def pad_gate_cols(a):  # (rows, 4*hid) -> (rows, 4*H_pad), per-gate zero-pad
        parts = jnp.split(a, 4, axis=1)
        return jnp.concatenate(
            [jnp.pad(p, ((0, 0), (0, H_pad - hid_dim))) for p in parts], axis=1)

    l0 = params["layers"][0]
    w_ih0_t = pad_gate_cols(pad_rows(l0["w_ih"].T, E_pad)).astype(jnp.bfloat16)

    if n_layers > 1:
        w_ihr_t = jnp.stack([
            pad_gate_cols(pad_rows(params["layers"][k]["w_ih"].T, H_pad))
            for k in range(1, n_layers)]).astype(jnp.bfloat16)
    else:
        w_ihr_t = jnp.zeros((1, H_pad, 4 * H_pad), jnp.bfloat16)  # unused dummy

    w_hh_t = jnp.stack([
        pad_gate_cols(pad_rows(params["layers"][k]["w_hh"].T, H_pad))
        for k in range(n_layers)]).astype(jnp.bfloat16)

    b = jnp.stack([
        pad_gate_cols((params["layers"][k]["b_ih"]
                       + params["layers"][k]["b_hh"])[None, :])
        for k in range(n_layers)]).astype(jnp.float32)        # (L, 1, 4*H_pad)

    return {
        "embedding": params["embedding"],
        "w_ih0_t": w_ih0_t, "w_ihr_t": w_ihr_t, "w_hh_t": w_hh_t, "b": b,
        "hid_dim": hid_dim, "n_layers": n_layers,
        "hid_pad": H_pad, "emb_pad": E_pad,
    }


# --------------------------------------------------------------------------
# Forward: mirrors Encoder.forward, returns (hidden, cell), each (L, B, H).
# --------------------------------------------------------------------------
@functools.partial(jax.jit,
                   static_argnames=("hid_dim", "n_layers", "hid_pad", "emb_pad"))
def _encoder_forward_impl(emb_table, w_ih0_t, w_ihr_t, w_hh_t, b, src, *,
                          hid_dim, n_layers, hid_pad, emb_pad):
    H_pad, E_pad = hid_pad, emb_pad
    seq_len, batch = src.shape
    emb_dim = emb_table.shape[1]
    B_pad = max(8, _round_up(batch, 8))

    # Embedding gather + eval-mode dropout (identity) in JAX glue, bf16 output.
    embedded = emb_table[src].astype(jnp.bfloat16)             # (seq, batch, emb)
    x_p = jnp.pad(embedded,
                  ((0, 0), (0, B_pad - batch), (0, E_pad - emb_dim)))
    x2d = x_p.reshape(seq_len * B_pad, E_pad)                  # (seq*B_pad, E_pad)

    kernel = functools.partial(
        _encoder_lstm_kernel, seq_len=seq_len, batch_pad=B_pad,
        hid_pad=H_pad, n_layers=n_layers)

    # Conservative VMEM budget (inputs + outputs + scratch), clamped for v7x.
    bytes_needed = (
        x2d.size * 2
        + w_ih0_t.size * 2 + w_ihr_t.size * 2
        + w_hh_t.size * 2 + b.size * 4
        + 2 * n_layers * B_pad * H_pad * 4
        + seq_len * B_pad * 4 * H_pad * 4
        + seq_len * B_pad * H_pad * 2)
    vmem_limit = int(min(max(2 * bytes_needed, 16 * 2**20), 48 * 2**20))

    hidden_p, cell_p = pl.pallas_call(
        kernel,
        out_shape=(
            jax.ShapeDtypeStruct((n_layers, B_pad, H_pad), jnp.float32),
            jax.ShapeDtypeStruct((n_layers, B_pad, H_pad), jnp.float32),
        ),
        in_specs=[pl.BlockSpec(memory_space=pltpu.MemorySpace.VMEM)] * 5,
        out_specs=(
            pl.BlockSpec(memory_space=pltpu.MemorySpace.VMEM),
            pl.BlockSpec(memory_space=pltpu.MemorySpace.VMEM),
        ),
        scratch_shapes=[
            pltpu.VMEM((seq_len * B_pad, 4 * H_pad), jnp.float32),  # gates
            pltpu.VMEM((seq_len * B_pad, H_pad), jnp.bfloat16),     # layer seq out
        ],
        compiler_params=pltpu.CompilerParams(vmem_limit_bytes=vmem_limit),
    )(x2d, w_ih0_t, w_ihr_t, w_hh_t, b)

    hidden = hidden_p[:, :batch, :hid_dim]
    cell = cell_p[:, :batch, :hid_dim]
    return hidden, cell


def encoder_forward(packed, src, src_lengths):
    # pack_padded_sequence result is unused in the reference forward.
    del src_lengths
    return _encoder_forward_impl(
        packed["embedding"], packed["w_ih0_t"], packed["w_ihr_t"],
        packed["w_hh_t"], packed["b"], src,
        hid_dim=packed["hid_dim"], n_layers=packed["n_layers"],
        hid_pad=packed["hid_pad"], emb_pad=packed["emb_pad"])


if __name__ == "__main__":
    VOCAB, EMB, HID, N_LAYERS = 50, 16, 32, 2
    SEQ, BATCH = 8, 2

    key = jax.random.PRNGKey(0)
    k_params, k_src = jax.random.split(key)

    raw_params = init_encoder_params(k_params, VOCAB, EMB, HID, N_LAYERS)
    packed = pack_encoder_params(raw_params, EMB, HID, N_LAYERS)

    src = jax.random.randint(k_src, (SEQ, BATCH), 0, VOCAB, dtype=jnp.int32)
    src_lengths = jnp.full((BATCH,), SEQ, dtype=jnp.int32)

    hidden, cell = encoder_forward(packed, src, src_lengths)
    jax.block_until_ready((hidden, cell))

    assert hidden.shape == (N_LAYERS, BATCH, HID)
    assert cell.shape == (N_LAYERS, BATCH, HID)
    assert bool(jnp.all(jnp.isfinite(hidden))) and bool(jnp.all(jnp.isfinite(cell)))
    print("KERNEL_OK")
</pallas_src>

<mosaic_0001>
module attributes {stable_mosaic.version = 11 : i64} {
  func.func @_encoder_lstm_kernel(%arg0: memref<64x128xbf16, #tpu.memory_space<vmem>>, %arg1: memref<128x512xbf16, #tpu.memory_space<vmem>>, %arg2: memref<1x128x512xbf16, #tpu.memory_space<vmem>>, %arg3: memref<2x128x512xbf16, #tpu.memory_space<vmem>>, %arg4: memref<2x1x512xf32, #tpu.memory_space<vmem>>, %arg5: memref<2x8x128xf32, #tpu.memory_space<vmem>>, %arg6: memref<2x8x128xf32, #tpu.memory_space<vmem>>, %arg7: memref<64x512xf32, #tpu.memory_space<vmem>>, %arg8: memref<64x128xbf16, #tpu.memory_space<vmem>>) attributes {dimension_semantics = [], scalar_prefetch = 0 : i64, scratch_operands = 2 : i64, tpu.core_type = #tpu.core_type<tc>} {
    %c0 = arith.constant 0 : index
    %c0_0 = arith.constant 0 : index
    %0 = vector.load %arg0[%c0, %c0_0] : memref<64x128xbf16, #tpu.memory_space<vmem>>, vector<64x128xbf16>
    %c0_1 = arith.constant 0 : index
    %c0_2 = arith.constant 0 : index
    %1 = vector.load %arg1[%c0_1, %c0_2] : memref<128x512xbf16, #tpu.memory_space<vmem>>, vector<128x512xbf16>
    %cst = arith.constant dense<0.000000e+00> : vector<64x512xf32>
    %2 = tpu.matmul %0, %1, %cst {dimension_numbers = #tpu.dot_dimension_numbers<[1], [0], [0], [1], [0, 0, 1, 1], [], []>} : vector<64x128xbf16>, vector<128x512xbf16>, vector<64x512xf32> -> vector<64x512xf32>
    %c0_3 = arith.constant 0 : index
    %c0_4 = arith.constant 0 : index
    %c0_5 = arith.constant 0 : index
    %3 = vector.load %arg4[%c0_3, %c0_4, %c0_5] : memref<2x1x512xf32, #tpu.memory_space<vmem>>, vector<1x1x512xf32>
    %4 = vector.shape_cast %3 : vector<1x1x512xf32> to vector<1x512xf32>
    %5 = vector.broadcast %4 : vector<1x512xf32> to vector<64x512xf32>
    %6 = arith.addf %2, %5 : vector<64x512xf32>
    %c0_6 = arith.constant 0 : index
    %c0_7 = arith.constant 0 : index
    %7 = vector.load %arg7[%c0_6, %c0_7] : memref<64x512xf32, #tpu.memory_space<vmem>>, vector<64x512xf32>
    tpu.vector_store %arg7[%c0_6, %c0_7], %6 {strides = array<i32>} : memref<64x512xf32, #tpu.memory_space<vmem>>, vector<64x512xf32>,
    %c0_8 = arith.constant 0 : index
    %c0_9 = arith.constant 0 : index
    %c0_10 = arith.constant 0 : index
    %8 = vector.load %arg3[%c0_8, %c0_9, %c0_10] : memref<2x128x512xbf16, #tpu.memory_space<vmem>>, vector<1x128x512xbf16>
    %9 = vector.shape_cast %8 : vector<1x128x512xbf16> to vector<128x512xbf16>
    %cst_11 = arith.constant 0.000000e+00 : f32
    %10 = vector.broadcast %cst_11 : f32 to vector<8x128xf32>
    %cst_12 = arith.constant 0.000000e+00 : f32
    %11 = vector.broadcast %cst_12 : f32 to vector<8x128xf32>
    %c0_i32 = arith.constant 0 : i32
    %c8_i32 = arith.constant 8 : i32
    %12 = arith.muli %c0_i32, %c8_i32 : i32
    %13 = tpu.assume_multiple %12, 8 : i32
    %14 = arith.index_cast %13 : i32 to index
    %c0_13 = arith.constant 0 : index
    %15 = vector.load %arg7[%14, %c0_13] : memref<64x512xf32, #tpu.memory_space<vmem>>, vector<8x512xf32>
    %16 = arith.truncf %10 : vector<8x128xf32> to vector<8x128xbf16>
    %cst_14 = arith.constant dense<0.000000e+00> : vector<8x512xf32>
    %17 = tpu.matmul %16, %9, %cst_14 {dimension_numbers = #tpu.dot_dimension_numbers<[1], [0], [0], [1], [0, 0, 1, 1], [], []>} : vector<8x128xbf16>, vector<128x512xbf16>, vector<8x512xf32> -> vector<8x512xf32>
    %18 = arith.addf %15, %17 : vector<8x512xf32>
    %19 = vector.extract_strided_slice %18 {offsets = [0, 0], sizes = [8, 128], strides = [1, 1]} : vector<8x512xf32> to vector<8x128xf32>
    %20 = arith.negf %19 : vector<8x128xf32>
    %21 = math.exp %20 : vector<8x128xf32>
    %cst_15 = arith.constant 1.000000e+00 : f32
    %22 = vector.broadcast %cst_15 : f32 to vector<8x128xf32>
    %23 = arith.addf %22, %21 : vector<8x128xf32>
    %24 = arith.divf %22, %23 : vector<8x128xf32>
    %25 = vector.extract_strided_slice %18 {offsets = [0, 128], sizes = [8, 128], strides = [1, 1]} : vector<8x512xf32> to vector<8x128xf32>
    %26 = arith.negf %25 : vector<8x128xf32>
    %27 = math.exp %26 : vector<8x128xf32>
    %cst_16 = arith.constant 1.000000e+00 : f32
    %28 = vector.broadcast %cst_16 : f32 to vector<8x128xf32>
    %29 = arith.addf %28, %27 : vector<8x128xf32>
    %30 = arith.divf %28, %29 : vector<8x128xf32>
    %31 = vector.extract_strided_slice %18 {offsets = [0, 256], sizes = [8, 128], strides = [1, 1]} : vector<8x512xf32> to vector<8x128xf32>
    %32 = math.tanh %31 : vector<8x128xf32>
    %33 = vector.extract_strided_slice %18 {offsets = [0, 384], sizes = [8, 128], strides = [1, 1]} : vector<8x512xf32> to vector<8x128xf32>
    %34 = arith.negf %33 : vector<8x128xf32>
    %35 = math.exp %34 : vector<8x128xf32>
    %cst_17 = arith.constant 1.000000e+00 : f32
    %36 = vector.broadcast %cst_17 : f32 to vector<8x128xf32>
    %37 = arith.addf %36, %35 : vector<8x128xf32>
    %38 = arith.divf %36, %37 : vector<8x128xf32>
    %39 = arith.mulf %30, %11 : vector<8x128xf32>
    %40 = arith.mulf %24, %32 : vector<8x128xf32>
    %41 = arith.addf %39, %40 : vector<8x128xf32>
    %42 = math.tanh %41 : vector<8x128xf32>
    %43 = arith.mulf %38, %42 : vector<8x128xf32>
    %44 = arith.truncf %43 : vector<8x128xf32> to vector<8x128xbf16>
    %45 = arith.index_cast %13 : i32 to index
    %c0_18 = arith.constant 0 : index
    %46 = vector.load %arg8[%45, %c0_18] : memref<64x128xbf16, #tpu.memory_space<vmem>>, vector<8x128xbf16>
    tpu.vector_store %arg8[%45, %c0_18], %44 {strides = array<i32>} : memref<64x128xbf16, #tpu.memory_space<vmem>>, vector<8x128xbf16>,
    %c1_i32 = arith.constant 1 : i32
    %c8_i32_19 = arith.constant 8 : i32
    %47 = arith.muli %c1_i32, %c8_i32_19 : i32
    %48 = tpu.assume_multiple %47, 8 : i32
    %49 = arith.index_cast %48 : i32 to index
    %c0_20 = arith.constant 0 : index
    %50 = vector.load %arg7[%49, %c0_20] : memref<64x512xf32, #tpu.memory_space<vmem>>, vector<8x512xf32>
    %51 = arith.truncf %43 : vector<8x128xf32> to vector<8x128xbf16>
    %cst_21 = arith.constant dense<0.000000e+00> : vector<8x512xf32>
    %52 = tpu.matmul %51, %9, %cst_21 {dimension_numbers = #tpu.dot_dimension_numbers<[1], [0], [0], [1], [0, 0, 1, 1], [], []>} : vector<8x128xbf16>, vector<128x512xbf16>, vector<8x512xf32> -> vector<8x512xf32>
    %53 = arith.addf %50, %52 : vector<8x512xf32>
    %54 = vector.extract_strided_slice %53 {offsets = [0, 0], sizes = [8, 128], strides = [1, 1]} : vector<8x512xf32> to vector<8x128xf32>
    %55 = arith.negf %54 : vector<8x128xf32>
    %56 = math.exp %55 : vector<8x128xf32>
    %cst_22 = arith.constant 1.000000e+00 : f32
    %57 = vector.broadcast %cst_22 : f32 to vector<8x128xf32>
    %58 = arith.addf %57, %56 : vector<8x128xf32>
    %59 = arith.divf %57, %58 : vector<8x128xf32>
    %60 = vector.extract_strided_slice %53 {offsets = [0, 128], sizes = [8, 128], strides = [1, 1]} : vector<8x512xf32> to vector<8x128xf32>
    %61 = arith.negf %60 : vector<8x128xf32>
    %62 = math.exp %61 : vector<8x128xf32>
    %cst_23 = arith.constant 1.000000e+00 : f32
    %63 = vector.broadcast %cst_23 : f32 to vector<8x128xf32>
    %64 = arith.addf %63, %62 : vector<8x128xf32>
    %65 = arith.divf %63, %64 : vector<8x128xf32>
    %66 = vector.extract_strided_slice %53 {offsets = [0, 256], sizes = [8, 128], strides = [1, 1]} : vector<8x512xf32> to vector<8x128xf32>
    %67 = math.tanh %66 : vector<8x128xf32>
    %68 = vector.extract_strided_slice %53 {offsets = [0, 384], sizes = [8, 128], strides = [1, 1]} : vector<8x512xf32> to vector<8x128xf32>
    %69 = arith.negf %68 : vector<8x128xf32>
    %70 = math.exp %69 : vector<8x128xf32>
    %cst_24 = arith.constant 1.000000e+00 : f32
    %71 = vector.broadcast %cst_24 : f32 to vector<8x128xf32>
    %72 = arith.addf %71, %70 : vector<8x128xf32>
    %73 = arith.divf %71, %72 : vector<8x128xf32>
    %74 = arith.mulf %65, %41 : vector<8x128xf32>
    %75 = arith.mulf %59, %67 : vector<8x128xf32>
    %76 = arith.addf %74, %75 : vector<8x128xf32>
    %77 = math.tanh %76 : vector<8x128xf32>
    %78 = arith.mulf %73, %77 : vector<8x128xf32>
    %79 = arith.truncf %78 : vector<8x128xf32> to vector<8x128xbf16>
    %80 = arith.index_cast %48 : i32 to index
    %c0_25 = arith.constant 0 : index
    %81 = vector.load %arg8[%80, %c0_25] : memref<64x128xbf16, #tpu.memory_space<vmem>>, vector<8x128xbf16>
    tpu.vector_store %arg8[%80, %c0_25], %79 {strides = array<i32>} : memref<64x128xbf16, #tpu.memory_space<vmem>>, vector<8x128xbf16>,
    %c2_i32 = arith.constant 2 : i32
    %c8_i32_26 = arith.constant 8 : i32
    %82 = arith.muli %c2_i32, %c8_i32_26 : i32
    %83 = tpu.assume_multiple %82, 8 : i32
    %84 = arith.index_cast %83 : i32 to index
    %c0_27 = arith.constant 0 : index
    %85 = vector.load %arg7[%84, %c0_27] : memref<64x512xf32, #tpu.memory_space<vmem>>, vector<8x512xf32>
    %86 = arith.truncf %78 : vector<8x128xf32> to vector<8x128xbf16>
    %cst_28 = arith.constant dense<0.000000e+00> : vector<8x512xf32>
    %87 = tpu.matmul %86, %9, %cst_28 {dimension_numbers = #tpu.dot_dimension_numbers<[1], [0], [0], [1], [0, 0, 1, 1], [], []>} : vector<8x128xbf16>, vector<128x512xbf16>, vector<8x512xf32> -> vector<8x512xf32>
    %88 = arith.addf %85, %87 : vector<8x512xf32>
    %89 = vector.extract_strided_slice %88 {offsets = [0, 0], sizes = [8, 128], strides = [1, 1]} : vector<8x512xf32> to vector<8x128xf32>
    %90 = arith.negf %89 : vector<8x128xf32>
    %91 = math.exp %90 : vector<8x128xf32>
    %cst_29 = arith.constant 1.000000e+00 : f32
    %92 = vector.broadcast %cst_29 : f32 to vector<8x128xf32>
    %93 = arith.addf %92, %91 : vector<8x128xf32>
    %94 = arith.divf %92, %93 : vector<8x128xf32>
    %95 = vector.extract_strided_slice %88 {offsets = [0, 128], sizes = [8, 128], strides = [1, 1]} : vector<8x512xf32> to vector<8x128xf32>
    %96 = arith.negf %95 : vector<8x128xf32>
    %97 = math.exp %96 : vector<8x128xf32>
    %cst_30 = arith.constant 1.000000e+00 : f32
    %98 = vector.broadcast %cst_30 : f32 to vector<8x128xf32>
    %99 = arith.addf %98, %97 : vector<8x128xf32>
    %100 = arith.divf %98, %99 : vector<8x128xf32>
    %101 = vector.extract_strided_slice %88 {offsets = [0, 256], sizes = [8, 128], strides = [1, 1]} : vector<8x512xf32> to vector<8x128xf32>
    %102 = math.tanh %101 : vector<8x128xf32>
    %103 = vector.extract_strided_slice %88 {offsets = [0, 384], sizes = [8, 128], strides = [1, 1]} : vector<8x512xf32> to vector<8x128xf32>
    %104 = arith.negf %103 : vector<8x128xf32>
    %105 = math.exp %104 : vector<8x128xf32>
    %cst_31 = arith.constant 1.000000e+00 : f32
    %106 = vector.broadcast %cst_31 : f32 to vector<8x128xf32>
    %107 = arith.addf %106, %105 : vector<8x128xf32>
    %108 = arith.divf %106, %107 : vector<8x128xf32>
    %109 = arith.mulf %100, %76 : vector<8x128xf32>
    %110 = arith.mulf %94, %102 : vector<8x128xf32>
    %111 = arith.addf %109, %110 : vector<8x128xf32>
    %112 = math.tanh %111 : vector<8x128xf32>
    %113 = arith.mulf %108, %112 : vector<8x128xf32>
    %114 = arith.truncf %113 : vector<8x128xf32> to vector<8x128xbf16>
    %115 = arith.index_cast %83 : i32 to index
    %c0_32 = arith.constant 0 : index
    %116 = vector.load %arg8[%115, %c0_32] : memref<64x128xbf16, #tpu.memory_space<vmem>>, vector<8x128xbf16>
    tpu.vector_store %arg8[%115, %c0_32], %114 {strides = array<i32>} : memref<64x128xbf16, #tpu.memory_space<vmem>>, vector<8x128xbf16>,
    %c3_i32 = arith.constant 3 : i32
    %c8_i32_33 = arith.constant 8 : i32
    %117 = arith.muli %c3_i32, %c8_i32_33 : i32
    %118 = tpu.assume_multiple %117, 8 : i32
    %119 = arith.index_cast %118 : i32 to index
    %c0_34 = arith.constant 0 : index
    %120 = vector.load %arg7[%119, %c0_34] : memref<64x512xf32, #tpu.memory_space<vmem>>, vector<8x512xf32>
    %121 = arith.truncf %113 : vector<8x128xf32> to vector<8x128xbf16>
    %cst_35 = arith.constant dense<0.000000e+00> : vector<8x512xf32>
    %122 = tpu.matmul %121, %9, %cst_35 {dimension_numbers = #tpu.dot_dimension_numbers<[1], [0], [0], [1], [0, 0, 1, 1], [], []>} : vector<8x128xbf16>, vector<128x512xbf16>, vector<8x512xf32> -> vector<8x512xf32>
    %123 = arith.addf %120, %122 : vector<8x512xf32>
    %124 = vector.extract_strided_slice %123 {offsets = [0, 0], sizes = [8, 128], strides = [1, 1]} : vector<8x512xf32> to vector<8x128xf32>
    %125 = arith.negf %124 : vector<8x128xf32>
    %126 = math.exp %125 : vector<8x128xf32>
    %cst_36 = arith.constant 1.000000e+00 : f32
    %127 = vector.broadcast %cst_36 : f32 to vector<8x128xf32>
    %128 = arith.addf %127, %126 : vector<8x128xf32>
    %129 = arith.divf %127, %128 : vector<8x128xf32>
    %130 = vector.extract_strided_slice %123 {offsets = [0, 128], sizes = [8, 128], strides = [1, 1]} : vector<8x512xf32> to vector<8x128xf32>
    %131 = arith.negf %130 : vector<8x128xf32>
    %132 = math.exp %131 : vector<8x128xf32>
    %cst_37 = arith.constant 1.000000e+00 : f32
    %133 = vector.broadcast %cst_37 : f32 to vector<8x128xf32>
    %134 = arith.addf %133, %132 : vector<8x128xf32>
    %135 = arith.divf %133, %134 : vector<8x128xf32>
    %136 = vector.extract_strided_slice %123 {offsets = [0, 256], sizes = [8, 128], strides = [1, 1]} : vector<8x512xf32> to vector<8x128xf32>
    %137 = math.tanh %136 : vector<8x128xf32>
    %138 = vector.extract_strided_slice %123 {offsets = [0, 384], sizes = [8, 128], strides = [1, 1]} : vector<8x512xf32> to vector<8x128xf32>
    %139 = arith.negf %138 : vector<8x128xf32>
    %140 = math.exp %139 : vector<8x128xf32>
    %cst_38 = arith.constant 1.000000e+00 : f32
    %141 = vector.broadcast %cst_38 : f32 to vector<8x128xf32>
    %142 = arith.addf %141, %140 : vector<8x128xf32>
    %143 = arith.divf %141, %142 : vector<8x128xf32>
    %144 = arith.mulf %135, %111 : vector<8x128xf32>
    %145 = arith.mulf %129, %137 : vector<8x128xf32>
    %146 = arith.addf %144, %145 : vector<8x128xf32>
    %147 = math.tanh %146 : vector<8x128xf32>
    %148 = arith.mulf %143, %147 : vector<8x128xf32>
    %149 = arith.truncf %148 : vector<8x128xf32> to vector<8x128xbf16>
    %150 = arith.index_cast %118 : i32 to index
    %c0_39 = arith.constant 0 : index
    %151 = vector.load %arg8[%150, %c0_39] : memref<64x128xbf16, #tpu.memory_space<vmem>>, vector<8x128xbf16>
    tpu.vector_store %arg8[%150, %c0_39], %149 {strides = array<i32>} : memref<64x128xbf16, #tpu.memory_space<vmem>>, vector<8x128xbf16>,
    %c4_i32 = arith.constant 4 : i32
    %c8_i32_40 = arith.constant 8 : i32
    %152 = arith.muli %c4_i32, %c8_i32_40 : i32
    %153 = tpu.assume_multiple %152, 8 : i32
    %154 = arith.index_cast %153 : i32 to index
    %c0_41 = arith.constant 0 : index
    %155 = vector.load %arg7[%154, %c0_41] : memref<64x512xf32, #tpu.memory_space<vmem>>, vector<8x512xf32>
    %156 = arith.truncf %148 : vector<8x128xf32> to vector<8x128xbf16>
    %cst_42 = arith.constant dense<0.000000e+00> : vector<8x512xf32>
    %157 = tpu.matmul %156, %9, %cst_42 {dimension_numbers = #tpu.dot_dimension_numbers<[1], [0], [0], [1], [0, 0, 1, 1], [], []>} : vector<8x128xbf16>, vector<128x512xbf16>, vector<8x512xf32> -> vector<8x512xf32>
    %158 = arith.addf %155, %157 : vector<8x512xf32>
    %159 = vector.extract_strided_slice %158 {offsets = [0, 0], sizes = [8, 128], strides = [1, 1]} : vector<8x512xf32> to vector<8x128xf32>
    %160 = arith.negf %159 : vector<8x128xf32>
    %161 = math.exp %160 : vector<8x128xf32>
    %cst_43 = arith.constant 1.000000e+00 : f32
    %162 = vector.broadcast %cst_43 : f32 to vector<8x128xf32>
    %163 = arith.addf %162, %161 : vector<8x128xf32>
    %164 = arith.divf %162, %163 : vector<8x128xf32>
    %165 = vector.extract_strided_slice %158 {offsets = [0, 128], sizes = [8, 128], strides = [1, 1]} : vector<8x512xf32> to vector<8x128xf32>
    %166 = arith.negf %165 : vector<8x128xf32>
    %167 = math.exp %166 : vector<8x128xf32>
    %cst_44 = arith.constant 1.000000e+00 : f32
    %168 = vector.broadcast %cst_44 : f32 to vector<8x128xf32>
    %169 = arith.addf %168, %167 : vector<8x128xf32>
    %170 = arith.divf %168, %169 : vector<8x128xf32>
    %171 = vector.extract_strided_slice %158 {offsets = [0, 256], sizes = [8, 128], strides = [1, 1]} : vector<8x512xf32> to vector<8x128xf32>
    %172 = math.tanh %171 : vector<8x128xf32>
    %173 = vector.extract_strided_slice %158 {offsets = [0, 384], sizes = [8, 128], strides = [1, 1]} : vector<8x512xf32> to vector<8x128xf32>
    %174 = arith.negf %173 : vector<8x128xf32>
    %175 = math.exp %174 : vector<8x128xf32>
    %cst_45 = arith.constant 1.000000e+00 : f32
    %176 = vector.broadcast %cst_45 : f32 to vector<8x128xf32>
    %177 = arith.addf %176, %175 : vector<8x128xf32>
    %178 = arith.divf %176, %177 : vector<8x128xf32>
    %179 = arith.mulf %170, %146 : vector<8x128xf32>
    %180 = arith.mulf %164, %172 : vector<8x128xf32>
    %181 = arith.addf %179, %180 : vector<8x128xf32>
    %182 = math.tanh %181 : vector<8x128xf32>
    %183 = arith.mulf %178, %182 : vector<8x128xf32>
    %184 = arith.truncf %183 : vector<8x128xf32> to vector<8x128xbf16>
    %185 = arith.index_cast %153 : i32 to index
    %c0_46 = arith.constant 0 : index
    %186 = vector.load %arg8[%185, %c0_46] : memref<64x128xbf16, #tpu.memory_space<vmem>>, vector<8x128xbf16>
    tpu.vector_store %arg8[%185, %c0_46], %184 {strides = array<i32>} : memref<64x128xbf16, #tpu.memory_space<vmem>>, vector<8x128xbf16>,
    %c5_i32 = arith.constant 5 : i32
    %c8_i32_47 = arith.constant 8 : i32
    %187 = arith.muli %c5_i32, %c8_i32_47 : i32
    %188 = tpu.assume_multiple %187, 8 : i32
    %189 = arith.index_cast %188 : i32 to index
    %c0_48 = arith.constant 0 : index
    %190 = vector.load %arg7[%189, %c0_48] : memref<64x512xf32, #tpu.memory_space<vmem>>, vector<8x512xf32>
    %191 = arith.truncf %183 : vector<8x128xf32> to vector<8x128xbf16>
    %cst_49 = arith.constant dense<0.000000e+00> : vector<8x512xf32>
    %192 = tpu.matmul %191, %9, %cst_49 {dimension_numbers = #tpu.dot_dimension_numbers<[1], [0], [0], [1], [0, 0, 1, 1], [], []>} : vector<8x128xbf16>, vector<128x512xbf16>, vector<8x512xf32> -> vector<8x512xf32>
    %193 = arith.addf %190, %192 : vector<8x512xf32>
    %194 = vector.extract_strided_slice %193 {offsets = [0, 0], sizes = [8, 128], strides = [1, 1]} : vector<8x512xf32> to vector<8x128xf32>
    %195 = arith.negf %194 : vector<8x128xf32>
    %196 = math.exp %195 : vector<8x128xf32>
    %cst_50 = arith.constant 1.000000e+00 : f32
    %197 = vector.broadcast %cst_50 : f32 to vector<8x128xf32>
    %198 = arith.addf %197, %196 : vector<8x128xf32>
    %199 = arith.divf %197, %198 : vector<8x128xf32>
    %200 = vector.extract_strided_slice %193 {offsets = [0, 128], sizes = [8, 128], strides = [1, 1]} : vector<8x512xf32> to vector<8x128xf32>
    %201 = arith.negf %200 : vector<8x128xf32>
    %202 = math.exp %201 : vector<8x128xf32>
    %cst_51 = arith.constant 1.000000e+00 : f32
    %203 = vector.broadcast %cst_51 : f32 to vector<8x128xf32>
    %204 = arith.addf %203, %202 : vector<8x128xf32>
    %205 = arith.divf %203, %204 : vector<8x128xf32>
    %206 = vector.extract_strided_slice %193 {offsets = [0, 256], sizes = [8, 128], strides = [1, 1]} : vector<8x512xf32> to vector<8x128xf32>
    %207 = math.tanh %206 : vector<8x128xf32>
    %208 = vector.extract_strided_slice %193 {offsets = [0, 384], sizes = [8, 128], strides = [1, 1]} : vector<8x512xf32> to vector<8x128xf32>
    %209 = arith.negf %208 : vector<8x128xf32>
    %210 = math.exp %209 : vector<8x128xf32>
    %cst_52 = arith.constant 1.000000e+00 : f32
    %211 = vector.broadcast %cst_52 : f32 to vector<8x128xf32>
    %212 = arith.addf %211, %210 : vector<8x128xf32>
    %213 = arith.divf %211, %212 : vector<8x128xf32>
    %214 = arith.mulf %205, %181 : vector<8x128xf32>
    %215 = arith.mulf %199, %207 : vector<8x128xf32>
    %216 = arith.addf %214, %215 : vector<8x128xf32>
    %217 = math.tanh %216 : vector<8x128xf32>
    %218 = arith.mulf %213, %217 : vector<8x128xf32>
    %219 = arith.truncf %218 : vector<8x128xf32> to vector<8x128xbf16>
    %220 = arith.index_cast %188 : i32 to index
    %c0_53 = arith.constant 0 : index
    %221 = vector.load %arg8[%220, %c0_53] : memref<64x128xbf16, #tpu.memory_space<vmem>>, vector<8x128xbf16>
    tpu.vector_store %arg8[%220, %c0_53], %219 {strides = array<i32>} : memref<64x128xbf16, #tpu.memory_space<vmem>>, vector<8x128xbf16>,
    %c6_i32 = arith.constant 6 : i32
    %c8_i32_54 = arith.constant 8 : i32
    %222 = arith.muli %c6_i32, %c8_i32_54 : i32
    %223 = tpu.assume_multiple %222, 8 : i32
    %224 = arith.index_cast %223 : i32 to index
    %c0_55 = arith.constant 0 : index
    %225 = vector.load %arg7[%224, %c0_55] : memref<64x512xf32, #tpu.memory_space<vmem>>, vector<8x512xf32>
    %226 = arith.truncf %218 : vector<8x128xf32> to vector<8x128xbf16>
    %cst_56 = arith.constant dense<0.000000e+00> : vector<8x512xf32>
    %227 = tpu.matmul %226, %9, %cst_56 {dimension_numbers = #tpu.dot_dimension_numbers<[1], [0], [0], [1], [0, 0, 1, 1], [], []>} : vector<8x128xbf16>, vector<128x512xbf16>, vector<8x512xf32> -> vector<8x512xf32>
    %228 = arith.addf %225, %227 : vector<8x512xf32>
    %229 = vector.extract_strided_slice %228 {offsets = [0, 0], sizes = [8, 128], strides = [1, 1]} : vector<8x512xf32> to vector<8x128xf32>
    %230 = arith.negf %229 : vector<8x128xf32>
    %231 = math.exp %230 : vector<8x128xf32>
    %cst_57 = arith.constant 1.000000e+00 : f32
    %232 = vector.broadcast %cst_57 : f32 to vector<8x128xf32>
    %233 = arith.addf %232, %231 : vector<8x128xf32>
    %234 = arith.divf %232, %233 : vector<8x128xf32>
    %235 = vector.extract_strided_slice %228 {offsets = [0, 128], sizes = [8, 128], strides = [1, 1]} : vector<8x512xf32> to vector<8x128xf32>
    %236 = arith.negf %235 : vector<8x128xf32>
    %237 = math.exp %236 : vector<8x128xf32>
    %cst_58 = arith.constant 1.000000e+00 : f32
    %238 = vector.broadcast %cst_58 : f32 to vector<8x128xf32>
    %239 = arith.addf %238, %237 : vector<8x128xf32>
    %240 = arith.divf %238, %239 : vector<8x128xf32>
    %241 = vector.extract_strided_slice %228 {offsets = [0, 256], sizes = [8, 128], strides = [1, 1]} : vector<8x512xf32> to vector<8x128xf32>
    %242 = math.tanh %241 : vector<8x128xf32>
    %243 = vector.extract_strided_slice %228 {offsets = [0, 384], sizes = [8, 128], strides = [1, 1]} : vector<8x512xf32> to vector<8x128xf32>
    %244 = arith.negf %243 : vector<8x128xf32>
    %245 = math.exp %244 : vector<8x128xf32>
    %cst_59 = arith.constant 1.000000e+00 : f32
    %246 = vector.broadcast %cst_59 : f32 to vector<8x128xf32>
    %247 = arith.addf %246, %245 : vector<8x128xf32>
    %248 = arith.divf %246, %247 : vector<8x128xf32>
    %249 = arith.mulf %240, %216 : vector<8x128xf32>
    %250 = arith.mulf %234, %242 : vector<8x128xf32>
    %251 = arith.addf %249, %250 : vector<8x128xf32>
    %252 = math.tanh %251 : vector<8x128xf32>
    %253 = arith.mulf %248, %252 : vector<8x128xf32>
    %254 = arith.truncf %253 : vector<8x128xf32> to vector<8x128xbf16>
    %255 = arith.index_cast %223 : i32 to index
    %c0_60 = arith.constant 0 : index
    %256 = vector.load %arg8[%255, %c0_60] : memref<64x128xbf16, #tpu.memory_space<vmem>>, vector<8x128xbf16>
    tpu.vector_store %arg8[%255, %c0_60], %254 {strides = array<i32>} : memref<64x128xbf16, #tpu.memory_space<vmem>>, vector<8x128xbf16>,
    %c7_i32 = arith.constant 7 : i32
    %c8_i32_61 = arith.constant 8 : i32
    %257 = arith.muli %c7_i32, %c8_i32_61 : i32
    %258 = tpu.assume_multiple %257, 8 : i32
    %259 = arith.index_cast %258 : i32 to index
    %c0_62 = arith.constant 0 : index
    %260 = vector.load %arg7[%259, %c0_62] : memref<64x512xf32, #tpu.memory_space<vmem>>, vector<8x512xf32>
    %261 = arith.truncf %253 : vector<8x128xf32> to vector<8x128xbf16>
    %cst_63 = arith.constant dense<0.000000e+00> : vector<8x512xf32>
    %262 = tpu.matmul %261, %9, %cst_63 {dimension_numbers = #tpu.dot_dimension_numbers<[1], [0], [0], [1], [0, 0, 1, 1], [], []>} : vector<8x128xbf16>, vector<128x512xbf16>, vector<8x512xf32> -> vector<8x512xf32>
    %263 = arith.addf %260, %262 : vector<8x512xf32>
    %264 = vector.extract_strided_slice %263 {offsets = [0, 0], sizes = [8, 128], strides = [1, 1]} : vector<8x512xf32> to vector<8x128xf32>
    %265 = arith.negf %264 : vector<8x128xf32>
    %266 = math.exp %265 : vector<8x128xf32>
    %cst_64 = arith.constant 1.000000e+00 : f32
    %267 = vector.broadcast %cst_64 : f32 to vector<8x128xf32>
    %268 = arith.addf %267, %266 : vector<8x128xf32>
    %269 = arith.divf %267, %268 : vector<8x128xf32>
    %270 = vector.extract_strided_slice %263 {offsets = [0, 128], sizes = [8, 128], strides = [1, 1]} : vector<8x512xf32> to vector<8x128xf32>
    %271 = arith.negf %270 : vector<8x128xf32>
    %272 = math.exp %271 : vector<8x128xf32>
    %cst_65 = arith.constant 1.000000e+00 : f32
    %273 = vector.broadcast %cst_65 : f32 to vector<8x128xf32>
    %274 = arith.addf %273, %272 : vector<8x128xf32>
    %275 = arith.divf %273, %274 : vector<8x128xf32>
    %276 = vector.extract_strided_slice %263 {offsets = [0, 256], sizes = [8, 128], strides = [1, 1]} : vector<8x512xf32> to vector<8x128xf32>
    %277 = math.tanh %276 : vector<8x128xf32>
    %278 = vector.extract_strided_slice %263 {offsets = [0, 384], sizes = [8, 128], strides = [1, 1]} : vector<8x512xf32> to vector<8x128xf32>
    %279 = arith.negf %278 : vector<8x128xf32>
    %280 = math.exp %279 : vector<8x128xf32>
    %cst_66 = arith.constant 1.000000e+00 : f32
    %281 = vector.broadcast %cst_66 : f32 to vector<8x128xf32>
    %282 = arith.addf %281, %280 : vector<8x128xf32>
    %283 = arith.divf %281, %282 : vector<8x128xf32>
    %284 = arith.mulf %275, %251 : vector<8x128xf32>
    %285 = arith.mulf %269, %277 : vector<8x128xf32>
    %286 = arith.addf %284, %285 : vector<8x128xf32>
    %287 = math.tanh %286 : vector<8x128xf32>
    %288 = arith.mulf %283, %287 : vector<8x128xf32>
    %289 = arith.truncf %288 : vector<8x128xf32> to vector<8x128xbf16>
    %290 = arith.index_cast %258 : i32 to index
    %c0_67 = arith.constant 0 : index
    %291 = vector.load %arg8[%290, %c0_67] : memref<64x128xbf16, #tpu.memory_space<vmem>>, vector<8x128xbf16>
    tpu.vector_store %arg8[%290, %c0_67], %289 {strides = array<i32>} : memref<64x128xbf16, #tpu.memory_space<vmem>>, vector<8x128xbf16>,
    %c8_i32_68 = arith.constant 8 : i32
    %c0_69 = arith.constant 0 : index
    %c0_70 = arith.constant 0 : index
    %c0_71 = arith.constant 0 : index
    %292 = vector.load %arg5[%c0_69, %c0_70, %c0_71] : memref<2x8x128xf32, #tpu.memory_space<vmem>>, vector<1x8x128xf32>
    %293 = vector.shape_cast %292 : vector<1x8x128xf32> to vector<8x128xf32>
    %294 = vector.shape_cast %288 : vector<8x128xf32> to vector<1x8x128xf32>
    tpu.vector_store %arg5[%c0_69, %c0_70, %c0_71], %294 {strides = array<i32>} : memref<2x8x128xf32, #tpu.memory_space<vmem>>, vector<1x8x128xf32>,
    %c0_72 = arith.constant 0 : index
    %c0_73 = arith.constant 0 : index
    %c0_74 = arith.constant 0 : index
    %295 = vector.load %arg6[%c0_72, %c0_73, %c0_74] : memref<2x8x128xf32, #tpu.memory_space<vmem>>, vector<1x8x128xf32>
    %296 = vector.shape_cast %295 : vector<1x8x128xf32> to vector<8x128xf32>
    %297 = vector.shape_cast %286 : vector<8x128xf32> to vector<1x8x128xf32>
    tpu.vector_store %arg6[%c0_72, %c0_73, %c0_74], %297 {strides = array<i32>} : memref<2x8x128xf32, #tpu.memory_space<vmem>>, vector<1x8x128xf32>,
    %c0_75 = arith.constant 0 : index
    %c0_76 = arith.constant 0 : index
    %298 = vector.load %arg8[%c0_75, %c0_76] : memref<64x128xbf16, #tpu.memory_space<vmem>>, vector<64x128xbf16>
    %c0_77 = arith.constant 0 : index
    %c0_78 = arith.constant 0 : index
    %c0_79 = arith.constant 0 : index
    %299 = vector.load %arg2[%c0_77, %c0_78, %c0_79] : memref<1x128x512xbf16, #tpu.memory_space<vmem>>, vector<1x128x512xbf16>
    %300 = vector.shape_cast %299 : vector<1x128x512xbf16> to vector<128x512xbf16>
    %cst_80 = arith.constant dense<0.000000e+00> : vector<64x512xf32>
    %301 = tpu.matmul %298, %300, %cst_80 {dimension_numbers = #tpu.dot_dimension_numbers<[1], [0], [0], [1], [0, 0, 1, 1], [], []>} : vector<64x128xbf16>, vector<128x512xbf16>, vector<64x512xf32> -> vector<64x512xf32>
    %c1 = arith.constant 1 : index
    %c0_81 = arith.constant 0 : index
    %c0_82 = arith.constant 0 : index
    %302 = vector.load %arg4[%c1, %c0_81, %c0_82] : memref<2x1x512xf32, #tpu.memory_space<vmem>>, vector<1x1x512xf32>
    %303 = vector.shape_cast %302 : vector<1x1x512xf32> to vector<1x512xf32>
    %304 = vector.broadcast %303 : vector<1x512xf32> to vector<64x512xf32>
    %305 = arith.addf %301, %304 : vector<64x512xf32>
    %c0_83 = arith.constant 0 : index
    %c0_84 = arith.constant 0 : index
    %306 = vector.load %arg7[%c0_83, %c0_84] : memref<64x512xf32, #tpu.memory_space<vmem>>, vector<64x512xf32>
    tpu.vector_store %arg7[%c0_83, %c0_84], %305 {strides = array<i32>} : memref<64x512xf32, #tpu.memory_space<vmem>>, vector<64x512xf32>,
    %c1_85 = arith.constant 1 : index
    %c0_86 = arith.constant 0 : index
    %c0_87 = arith.constant 0 : index
    %307 = vector.load %arg3[%c1_85, %c0_86, %c0_87] : memref<2x128x512xbf16, #tpu.memory_space<vmem>>, vector<1x128x512xbf16>
    %308 = vector.shape_cast %307 : vector<1x128x512xbf16> to vector<128x512xbf16>
    %cst_88 = arith.constant 0.000000e+00 : f32
    %309 = vector.broadcast %cst_88 : f32 to vector<8x128xf32>
    %cst_89 = arith.constant 0.000000e+00 : f32
    %310 = vector.broadcast %cst_89 : f32 to vector<8x128xf32>
    %c0_i32_90 = arith.constant 0 : i32
    %c8_i32_91 = arith.constant 8 : i32
    %311 = arith.muli %c0_i32_90, %c8_i32_91 : i32
    %312 = tpu.assume_multiple %311, 8 : i32
    %313 = arith.index_cast %312 : i32 to index
    %c0_92 = arith.constant 0 : index
    %314 = vector.load %arg7[%313, %c0_92] : memref<64x512xf32, #tpu.memory_space<vmem>>, vector<8x512xf32>
    %315 = arith.truncf %309 : vector<8x128xf32> to vector<8x128xbf16>
    %cst_93 = arith.constant dense<0.000000e+00> : vector<8x512xf32>
    %316 = tpu.matmul %315, %308, %cst_93 {dimension_numbers = #tpu.dot_dimension_numbers<[1], [0], [0], [1], [0, 0, 1, 1], [], []>} : vector<8x128xbf16>, vector<128x512xbf16>, vector<8x512xf32> -> vector<8x512xf32>
    %317 = arith.addf %314, %316 : vector<8x512xf32>
    %318 = vector.extract_strided_slice %317 {offsets = [0, 0], sizes = [8, 128], strides = [1, 1]} : vector<8x512xf32> to vector<8x128xf32>
    %319 = arith.negf %318 : vector<8x128xf32>
    %320 = math.exp %319 : vector<8x128xf32>
    %cst_94 = arith.constant 1.000000e+00 : f32
    %321 = vector.broadcast %cst_94 : f32 to vector<8x128xf32>
    %322 = arith.addf %321, %320 : vector<8x128xf32>
    %323 = arith.divf %321, %322 : vector<8x128xf32>
    %324 = vector.extract_strided_slice %317 {offsets = [0, 128], sizes = [8, 128], strides = [1, 1]} : vector<8x512xf32> to vector<8x128xf32>
    %325 = arith.negf %324 : vector<8x128xf32>
    %326 = math.exp %325 : vector<8x128xf32>
    %cst_95 = arith.constant 1.000000e+00 : f32
    %327 = vector.broadcast %cst_95 : f32 to vector<8x128xf32>
    %328 = arith.addf %327, %326 : vector<8x128xf32>
    %329 = arith.divf %327, %328 : vector<8x128xf32>
    %330 = vector.extract_strided_slice %317 {offsets = [0, 256], sizes = [8, 128], strides = [1, 1]} : vector<8x512xf32> to vector<8x128xf32>
    %331 = math.tanh %330 : vector<8x128xf32>
    %332 = vector.extract_strided_slice %317 {offsets = [0, 384], sizes = [8, 128], strides = [1, 1]} : vector<8x512xf32> to vector<8x128xf32>
    %333 = arith.negf %332 : vector<8x128xf32>
    %334 = math.exp %333 : vector<8x128xf32>
    %cst_96 = arith.constant 1.000000e+00 : f32
    %335 = vector.broadcast %cst_96 : f32 to vector<8x128xf32>
    %336 = arith.addf %335, %334 : vector<8x128xf32>
    %337 = arith.divf %335, %336 : vector<8x128xf32>
    %338 = arith.mulf %329, %310 : vector<8x128xf32>
    %339 = arith.mulf %323, %331 : vector<8x128xf32>
    %340 = arith.addf %338, %339 : vector<8x128xf32>
    %341 = math.tanh %340 : vector<8x128xf32>
    %342 = arith.mulf %337, %341 : vector<8x128xf32>
    %c1_i32_97 = arith.constant 1 : i32
    %c8_i32_98 = arith.constant 8 : i32
    %343 = arith.muli %c1_i32_97, %c8_i32_98 : i32
    %344 = tpu.assume_multiple %343, 8 : i32
    %345 = arith.index_cast %344 : i32 to index
    %c0_99 = arith.constant 0 : index
    %346 = vector.load %arg7[%345, %c0_99] : memref<64x512xf32, #tpu.memory_space<vmem>>, vector<8x512xf32>
    %347 = arith.truncf %342 : vector<8x128xf32> to vector<8x128xbf16>
    %cst_100 = arith.constant dense<0.000000e+00> : vector<8x512xf32>
    %348 = tpu.matmul %347, %308, %cst_100 {dimension_numbers = #tpu.dot_dimension_numbers<[1], [0], [0], [1], [0, 0, 1, 1], [], []>} : vector<8x128xbf16>, vector<128x512xbf16>, vector<8x512xf32> -> vector<8x512xf32>
    %349 = arith.addf %346, %348 : vector<8x512xf32>
    %350 = vector.extract_strided_slice %349 {offsets = [0, 0], sizes = [8, 128], strides = [1, 1]} : vector<8x512xf32> to vector<8x128xf32>
    %351 = arith.negf %350 : vector<8x128xf32>
    %352 = math.exp %351 : vector<8x128xf32>
    %cst_101 = arith.constant 1.000000e+00 : f32
    %353 = vector.broadcast %cst_101 : f32 to vector<8x128xf32>
    %354 = arith.addf %353, %352 : vector<8x128xf32>
    %355 = arith.divf %353, %354 : vector<8x128xf32>
    %356 = vector.extract_strided_slice %349 {offsets = [0, 128], sizes = [8, 128], strides = [1, 1]} : vector<8x512xf32> to vector<8x128xf32>
    %357 = arith.negf %356 : vector<8x128xf32>
    %358 = math.exp %357 : vector<8x128xf32>
    %cst_102 = arith.constant 1.000000e+00 : f32
    %359 = vector.broadcast %cst_102 : f32 to vector<8x128xf32>
    %360 = arith.addf %359, %358 : vector<8x128xf32>
    %361 = arith.divf %359, %360 : vector<8x128xf32>
    %362 = vector.extract_strided_slice %349 {offsets = [0, 256], sizes = [8, 128], strides = [1, 1]} : vector<8x512xf32> to vector<8x128xf32>
    %363 = math.tanh %362 : vector<8x128xf32>
    %364 = vector.extract_strided_slice %349 {offsets = [0, 384], sizes = [8, 128], strides = [1, 1]} : vector<8x512xf32> to vector<8x128xf32>
    %365 = arith.negf %364 : vector<8x128xf32>
    %366 = math.exp %365 : vector<8x128xf32>
    %cst_103 = arith.constant 1.000000e+00 : f32
    %367 = vector.broadcast %cst_103 : f32 to vector<8x128xf32>
    %368 = arith.addf %367, %366 : vector<8x128xf32>
    %369 = arith.divf %367, %368 : vector<8x128xf32>
    %370 = arith.mulf %361, %340 : vector<8x128xf32>
    %371 = arith.mulf %355, %363 : vector<8x128xf32>
    %372 = arith.addf %370, %371 : vector<8x128xf32>
    %373 = math.tanh %372 : vector<8x128xf32>
    %374 = arith.mulf %369, %373 : vector<8x128xf32>
    %c2_i32_104 = arith.constant 2 : i32
    %c8_i32_105 = arith.constant 8 : i32
    %375 = arith.muli %c2_i32_104, %c8_i32_105 : i32
    %376 = tpu.assume_multiple %375, 8 : i32
    %377 = arith.index_cast %376 : i32 to index
    %c0_106 = arith.constant 0 : index
    %378 = vector.load %arg7[%377, %c0_106] : memref<64x512xf32, #tpu.memory_space<vmem>>, vector<8x512xf32>
    %379 = arith.truncf %374 : vector<8x128xf32> to vector<8x128xbf16>
    %cst_107 = arith.constant dense<0.000000e+00> : vector<8x512xf32>
    %380 = tpu.matmul %379, %308, %cst_107 {dimension_numbers = #tpu.dot_dimension_numbers<[1], [0], [0], [1], [0, 0, 1, 1], [], []>} : vector<8x128xbf16>, vector<128x512xbf16>, vector<8x512xf32> -> vector<8x512xf32>
    %381 = arith.addf %378, %380 : vector<8x512xf32>
    %382 = vector.extract_strided_slice %381 {offsets = [0, 0], sizes = [8, 128], strides = [1, 1]} : vector<8x512xf32> to vector<8x128xf32>
    %383 = arith.negf %382 : vector<8x128xf32>
    %384 = math.exp %383 : vector<8x128xf32>
    %cst_108 = arith.constant 1.000000e+00 : f32
    %385 = vector.broadcast %cst_108 : f32 to vector<8x128xf32>
    %386 = arith.addf %385, %384 : vector<8x128xf32>
    %387 = arith.divf %385, %386 : vector<8x128xf32>
    %388 = vector.extract_strided_slice %381 {offsets = [0, 128], sizes = [8, 128], strides = [1, 1]} : vector<8x512xf32> to vector<8x128xf32>
    %389 = arith.negf %388 : vector<8x128xf32>
    %390 = math.exp %389 : vector<8x128xf32>
    %cst_109 = arith.constant 1.000000e+00 : f32
    %391 = vector.broadcast %cst_109 : f32 to vector<8x128xf32>
    %392 = arith.addf %391, %390 : vector<8x128xf32>
    %393 = arith.divf %391, %392 : vector<8x128xf32>
    %394 = vector.extract_strided_slice %381 {offsets = [0, 256], sizes = [8, 128], strides = [1, 1]} : vector<8x512xf32> to vector<8x128xf32>
    %395 = math.tanh %394 : vector<8x128xf32>
    %396 = vector.extract_strided_slice %381 {offsets = [0, 384], sizes = [8, 128], strides = [1, 1]} : vector<8x512xf32> to vector<8x128xf32>
    %397 = arith.negf %396 : vector<8x128xf32>
    %398 = math.exp %397 : vector<8x128xf32>
    %cst_110 = arith.constant 1.000000e+00 : f32
    %399 = vector.broadcast %cst_110 : f32 to vector<8x128xf32>
    %400 = arith.addf %399, %398 : vector<8x128xf32>
    %401 = arith.divf %399, %400 : vector<8x128xf32>
    %402 = arith.mulf %393, %372 : vector<8x128xf32>
    %403 = arith.mulf %387, %395 : vector<8x128xf32>
    %404 = arith.addf %402, %403 : vector<8x128xf32>
    %405 = math.tanh %404 : vector<8x128xf32>
    %406 = arith.mulf %401, %405 : vector<8x128xf32>
    %c3_i32_111 = arith.constant 3 : i32
    %c8_i32_112 = arith.constant 8 : i32
    %407 = arith.muli %c3_i32_111, %c8_i32_112 : i32
    %408 = tpu.assume_multiple %407, 8 : i32
    %409 = arith.index_cast %408 : i32 to index
    %c0_113 = arith.constant 0 : index
    %410 = vector.load %arg7[%409, %c0_113] : memref<64x512xf32, #tpu.memory_space<vmem>>, vector<8x512xf32>
    %411 = arith.truncf %406 : vector<8x128xf32> to vector<8x128xbf16>
    %cst_114 = arith.constant dense<0.000000e+00> : vector<8x512xf32>
    %412 = tpu.matmul %411, %308, %cst_114 {dimension_numbers = #tpu.dot_dimension_numbers<[1], [0], [0], [1], [0, 0, 1, 1], [], []>} : vector<8x128xbf16>, vector<128x512xbf16>, vector<8x512xf32> -> vector<8x512xf32>
    %413 = arith.addf %410, %412 : vector<8x512xf32>
    %414 = vector.extract_strided_slice %413 {offsets = [0, 0], sizes = [8, 128], strides = [1, 1]} : vector<8x512xf32> to vector<8x128xf32>
    %415 = arith.negf %414 : vector<8x128xf32>
    %416 = math.exp %415 : vector<8x128xf32>
    %cst_115 = arith.constant 1.000000e+00 : f32
    %417 = vector.broadcast %cst_115 : f32 to vector<8x128xf32>
    %418 = arith.addf %417, %416 : vector<8x128xf32>
    %419 = arith.divf %417, %418 : vector<8x128xf32>
    %420 = vector.extract_strided_slice %413 {offsets = [0, 128], sizes = [8, 128], strides = [1, 1]} : vector<8x512xf32> to vector<8x128xf32>
    %421 = arith.negf %420 : vector<8x128xf32>
    %422 = math.exp %421 : vector<8x128xf32>
    %cst_116 = arith.constant 1.000000e+00 : f32
    %423 = vector.broadcast %cst_116 : f32 to vector<8x128xf32>
    %424 = arith.addf %423, %422 : vector<8x128xf32>
    %425 = arith.divf %423, %424 : vector<8x128xf32>
    %426 = vector.extract_strided_slice %413 {offsets = [0, 256], sizes = [8, 128], strides = [1, 1]} : vector<8x512xf32> to vector<8x128xf32>
    %427 = math.tanh %426 : vector<8x128xf32>
    %428 = vector.extract_strided_slice %413 {offsets = [0, 384], sizes = [8, 128], strides = [1, 1]} : vector<8x512xf32> to vector<8x128xf32>
    %429 = arith.negf %428 : vector<8x128xf32>
    %430 = math.exp %429 : vector<8x128xf32>
    %cst_117 = arith.constant 1.000000e+00 : f32
    %431 = vector.broadcast %cst_117 : f32 to vector<8x128xf32>
    %432 = arith.addf %431, %430 : vector<8x128xf32>
    %433 = arith.divf %431, %432 : vector<8x128xf32>
    %434 = arith.mulf %425, %404 : vector<8x128xf32>
    %435 = arith.mulf %419, %427 : vector<8x128xf32>
    %436 = arith.addf %434, %435 : vector<8x128xf32>
    %437 = math.tanh %436 : vector<8x128xf32>
    %438 = arith.mulf %433, %437 : vector<8x128xf32>
    %c4_i32_118 = arith.constant 4 : i32
    %c8_i32_119 = arith.constant 8 : i32
    %439 = arith.muli %c4_i32_118, %c8_i32_119 : i32
    %440 = tpu.assume_multiple %439, 8 : i32
    %441 = arith.index_cast %440 : i32 to index
    %c0_120 = arith.constant 0 : index
    %442 = vector.load %arg7[%441, %c0_120] : memref<64x512xf32, #tpu.memory_space<vmem>>, vector<8x512xf32>
    %443 = arith.truncf %438 : vector<8x128xf32> to vector<8x128xbf16>
    %cst_121 = arith.constant dense<0.000000e+00> : vector<8x512xf32>
    %444 = tpu.matmul %443, %308, %cst_121 {dimension_numbers = #tpu.dot_dimension_numbers<[1], [0], [0], [1], [0, 0, 1, 1], [], []>} : vector<8x128xbf16>, vector<128x512xbf16>, vector<8x512xf32> -> vector<8x512xf32>
    %445 = arith.addf %442, %444 : vector<8x512xf32>
    %446 = vector.extract_strided_slice %445 {offsets = [0, 0], sizes = [8, 128], strides = [1, 1]} : vector<8x512xf32> to vector<8x128xf32>
    %447 = arith.negf %446 : vector<8x128xf32>
    %448 = math.exp %447 : vector<8x128xf32>
    %cst_122 = arith.constant 1.000000e+00 : f32
    %449 = vector.broadcast %cst_122 : f32 to vector<8x128xf32>
    %450 = arith.addf %449, %448 : vector<8x128xf32>
    %451 = arith.divf %449, %450 : vector<8x128xf32>
    %452 = vector.extract_strided_slice %445 {offsets = [0, 128], sizes = [8, 128], strides = [1, 1]} : vector<8x512xf32> to vector<8x128xf32>
    %453 = arith.negf %452 : vector<8x128xf32>
    %454 = math.exp %453 : vector<8x128xf32>
    %cst_123 = arith.constant 1.000000e+00 : f32
    %455 = vector.broadcast %cst_123 : f32 to vector<8x128xf32>
    %456 = arith.addf %455, %454 : vector<8x128xf32>
    %457 = arith.divf %455, %456 : vector<8x128xf32>
    %458 = vector.extract_strided_slice %445 {offsets = [0, 256], sizes = [8, 128], strides = [1, 1]} : vector<8x512xf32> to vector<8x128xf32>
    %459 = math.tanh %458 : vector<8x128xf32>
    %460 = vector.extract_strided_slice %445 {offsets = [0, 384], sizes = [8, 128], strides = [1, 1]} : vector<8x512xf32> to vector<8x128xf32>
    %461 = arith.negf %460 : vector<8x128xf32>
    %462 = math.exp %461 : vector<8x128xf32>
    %cst_124 = arith.constant 1.000000e+00 : f32
    %463 = vector.broadcast %cst_124 : f32 to vector<8x128xf32>
    %464 = arith.addf %463, %462 : vector<8x128xf32>
    %465 = arith.divf %463, %464 : vector<8x128xf32>
    %466 = arith.mulf %457, %436 : vector<8x128xf32>
    %467 = arith.mulf %451, %459 : vector<8x128xf32>
    %468 = arith.addf %466, %467 : vector<8x128xf32>
    %469 = math.tanh %468 : vector<8x128xf32>
    %470 = arith.mulf %465, %469 : vector<8x128xf32>
    %c5_i32_125 = arith.constant 5 : i32
    %c8_i32_126 = arith.constant 8 : i32
    %471 = arith.muli %c5_i32_125, %c8_i32_126 : i32
    %472 = tpu.assume_multiple %471, 8 : i32
    %473 = arith.index_cast %472 : i32 to index
    %c0_127 = arith.constant 0 : index
    %474 = vector.load %arg7[%473, %c0_127] : memref<64x512xf32, #tpu.memory_space<vmem>>, vector<8x512xf32>
    %475 = arith.truncf %470 : vector<8x128xf32> to vector<8x128xbf16>
    %cst_128 = arith.constant dense<0.000000e+00> : vector<8x512xf32>
    %476 = tpu.matmul %475, %308, %cst_128 {dimension_numbers = #tpu.dot_dimension_numbers<[1], [0], [0], [1], [0, 0, 1, 1], [], []>} : vector<8x128xbf16>, vector<128x512xbf16>, vector<8x512xf32> -> vector<8x512xf32>
    %477 = arith.addf %474, %476 : vector<8x512xf32>
    %478 = vector.extract_strided_slice %477 {offsets = [0, 0], sizes = [8, 128], strides = [1, 1]} : vector<8x512xf32> to vector<8x128xf32>
    %479 = arith.negf %478 : vector<8x128xf32>
    %480 = math.exp %479 : vector<8x128xf32>
    %cst_129 = arith.constant 1.000000e+00 : f32
    %481 = vector.broadcast %cst_129 : f32 to vector<8x128xf32>
    %482 = arith.addf %481, %480 : vector<8x128xf32>
    %483 = arith.divf %481, %482 : vector<8x128xf32>
    %484 = vector.extract_strided_slice %477 {offsets = [0, 128], sizes = [8, 128], strides = [1, 1]} : vector<8x512xf32> to vector<8x128xf32>
    %485 = arith.negf %484 : vector<8x128xf32>
    %486 = math.exp %485 : vector<8x128xf32>
    %cst_130 = arith.constant 1.000000e+00 : f32
    %487 = vector.broadcast %cst_130 : f32 to vector<8x128xf32>
    %488 = arith.addf %487, %486 : vector<8x128xf32>
    %489 = arith.divf %487, %488 : vector<8x128xf32>
    %490 = vector.extract_strided_slice %477 {offsets = [0, 256], sizes = [8, 128], strides = [1, 1]} : vector<8x512xf32> to vector<8x128xf32>
    %491 = math.tanh %490 : vector<8x128xf32>
    %492 = vector.extract_strided_slice %477 {offsets = [0, 384], sizes = [8, 128], strides = [1, 1]} : vector<8x512xf32> to vector<8x128xf32>
    %493 = arith.negf %492 : vector<8x128xf32>
    %494 = math.exp %493 : vector<8x128xf32>
    %cst_131 = arith.constant 1.000000e+00 : f32
    %495 = vector.broadcast %cst_131 : f32 to vector<8x128xf32>
    %496 = arith.addf %495, %494 : vector<8x128xf32>
    %497 = arith.divf %495, %496 : vector<8x128xf32>
    %498 = arith.mulf %489, %468 : vector<8x128xf32>
    %499 = arith.mulf %483, %491 : vector<8x128xf32>
    %500 = arith.addf %498, %499 : vector<8x128xf32>
    %501 = math.tanh %500 : vector<8x128xf32>
    %502 = arith.mulf %497, %501 : vector<8x128xf32>
    %c6_i32_132 = arith.constant 6 : i32
    %c8_i32_133 = arith.constant 8 : i32
    %503 = arith.muli %c6_i32_132, %c8_i32_133 : i32
    %504 = tpu.assume_multiple %503, 8 : i32
    %505 = arith.index_cast %504 : i32 to index
    %c0_134 = arith.constant 0 : index
    %506 = vector.load %arg7[%505, %c0_134] : memref<64x512xf32, #tpu.memory_space<vmem>>, vector<8x512xf32>
    %507 = arith.truncf %502 : vector<8x128xf32> to vector<8x128xbf16>
    %cst_135 = arith.constant dense<0.000000e+00> : vector<8x512xf32>
    %508 = tpu.matmul %507, %308, %cst_135 {dimension_numbers = #tpu.dot_dimension_numbers<[1], [0], [0], [1], [0, 0, 1, 1], [], []>} : vector<8x128xbf16>, vector<128x512xbf16>, vector<8x512xf32> -> vector<8x512xf32>
    %509 = arith.addf %506, %508 : vector<8x512xf32>
    %510 = vector.extract_strided_slice %509 {offsets = [0, 0], sizes = [8, 128], strides = [1, 1]} : vector<8x512xf32> to vector<8x128xf32>
    %511 = arith.negf %510 : vector<8x128xf32>
    %512 = math.exp %511 : vector<8x128xf32>
    %cst_136 = arith.constant 1.000000e+00 : f32
    %513 = vector.broadcast %cst_136 : f32 to vector<8x128xf32>
    %514 = arith.addf %513, %512 : vector<8x128xf32>
    %515 = arith.divf %513, %514 : vector<8x128xf32>
    %516 = vector.extract_strided_slice %509 {offsets = [0, 128], sizes = [8, 128], strides = [1, 1]} : vector<8x512xf32> to vector<8x128xf32>
    %517 = arith.negf %516 : vector<8x128xf32>
    %518 = math.exp %517 : vector<8x128xf32>
    %cst_137 = arith.constant 1.000000e+00 : f32
    %519 = vector.broadcast %cst_137 : f32 to vector<8x128xf32>
    %520 = arith.addf %519, %518 : vector<8x128xf32>
    %521 = arith.divf %519, %520 : vector<8x128xf32>
    %522 = vector.extract_strided_slice %509 {offsets = [0, 256], sizes = [8, 128], strides = [1, 1]} : vector<8x512xf32> to vector<8x128xf32>
    %523 = math.tanh %522 : vector<8x128xf32>
    %524 = vector.extract_strided_slice %509 {offsets = [0, 384], sizes = [8, 128], strides = [1, 1]} : vector<8x512xf32> to vector<8x128xf32>
    %525 = arith.negf %524 : vector<8x128xf32>
    %526 = math.exp %525 : vector<8x128xf32>
    %cst_138 = arith.constant 1.000000e+00 : f32
    %527 = vector.broadcast %cst_138 : f32 to vector<8x128xf32>
    %528 = arith.addf %527, %526 : vector<8x128xf32>
    %529 = arith.divf %527, %528 : vector<8x128xf32>
    %530 = arith.mulf %521, %500 : vector<8x128xf32>
    %531 = arith.mulf %515, %523 : vector<8x128xf32>
    %532 = arith.addf %530, %531 : vector<8x128xf32>
    %533 = math.tanh %532 : vector<8x128xf32>
    %534 = arith.mulf %529, %533 : vector<8x128xf32>
    %c7_i32_139 = arith.constant 7 : i32
    %c8_i32_140 = arith.constant 8 : i32
    %535 = arith.muli %c7_i32_139, %c8_i32_140 : i32
    %536 = tpu.assume_multiple %535, 8 : i32
    %537 = arith.index_cast %536 : i32 to index
    %c0_141 = arith.constant 0 : index
    %538 = vector.load %arg7[%537, %c0_141] : memref<64x512xf32, #tpu.memory_space<vmem>>, vector<8x512xf32>
    %539 = arith.truncf %534 : vector<8x128xf32> to vector<8x128xbf16>
    %cst_142 = arith.constant dense<0.000000e+00> : vector<8x512xf32>
    %540 = tpu.matmul %539, %308, %cst_142 {dimension_numbers = #tpu.dot_dimension_numbers<[1], [0], [0], [1], [0, 0, 1, 1], [], []>} : vector<8x128xbf16>, vector<128x512xbf16>, vector<8x512xf32> -> vector<8x512xf32>
    %541 = arith.addf %538, %540 : vector<8x512xf32>
    %542 = vector.extract_strided_slice %541 {offsets = [0, 0], sizes = [8, 128], strides = [1, 1]} : vector<8x512xf32> to vector<8x128xf32>
    %543 = arith.negf %542 : vector<8x128xf32>
    %544 = math.exp %543 : vector<8x128xf32>
    %cst_143 = arith.constant 1.000000e+00 : f32
    %545 = vector.broadcast %cst_143 : f32 to vector<8x128xf32>
    %546 = arith.addf %545, %544 : vector<8x128xf32>
    %547 = arith.divf %545, %546 : vector<8x128xf32>
    %548 = vector.extract_strided_slice %541 {offsets = [0, 128], sizes = [8, 128], strides = [1, 1]} : vector<8x512xf32> to vector<8x128xf32>
    %549 = arith.negf %548 : vector<8x128xf32>
    %550 = math.exp %549 : vector<8x128xf32>
    %cst_144 = arith.constant 1.000000e+00 : f32
    %551 = vector.broadcast %cst_144 : f32 to vector<8x128xf32>
    %552 = arith.addf %551, %550 : vector<8x128xf32>
    %553 = arith.divf %551, %552 : vector<8x128xf32>
    %554 = vector.extract_strided_slice %541 {offsets = [0, 256], sizes = [8, 128], strides = [1, 1]} : vector<8x512xf32> to vector<8x128xf32>
    %555 = math.tanh %554 : vector<8x128xf32>
    %556 = vector.extract_strided_slice %541 {offsets = [0, 384], sizes = [8, 128], strides = [1, 1]} : vector<8x512xf32> to vector<8x128xf32>
    %557 = arith.negf %556 : vector<8x128xf32>
    %558 = math.exp %557 : vector<8x128xf32>
    %cst_145 = arith.constant 1.000000e+00 : f32
    %559 = vector.broadcast %cst_145 : f32 to vector<8x128xf32>
    %560 = arith.addf %559, %558 : vector<8x128xf32>
    %561 = arith.divf %559, %560 : vector<8x128xf32>
    %562 = arith.mulf %553, %532 : vector<8x128xf32>
    %563 = arith.mulf %547, %555 : vector<8x128xf32>
    %564 = arith.addf %562, %563 : vector<8x128xf32>
    %565 = math.tanh %564 : vector<8x128xf32>
    %566 = arith.mulf %561, %565 : vector<8x128xf32>
    %c8_i32_146 = arith.constant 8 : i32
    %c1_147 = arith.constant 1 : index
    %c0_148 = arith.constant 0 : index
    %c0_149 = arith.constant 0 : index
    %567 = vector.load %arg5[%c1_147, %c0_148, %c0_149] : memref<2x8x128xf32, #tpu.memory_space<vmem>>, vector<1x8x128xf32>
    %568 = vector.shape_cast %567 : vector<1x8x128xf32> to vector<8x128xf32>
    %569 = vector.shape_cast %566 : vector<8x128xf32> to vector<1x8x128xf32>
    tpu.vector_store %arg5[%c1_147, %c0_148, %c0_149], %569 {strides = array<i32>} : memref<2x8x128xf32, #tpu.memory_space<vmem>>, vector<1x8x128xf32>,
    %c1_150 = arith.constant 1 : index
    %c0_151 = arith.constant 0 : index
    %c0_152 = arith.constant 0 : index
    %570 = vector.load %arg6[%c1_150, %c0_151, %c0_152] : memref<2x8x128xf32, #tpu.memory_space<vmem>>, vector<1x8x128xf32>
    %571 = vector.shape_cast %570 : vector<1x8x128xf32> to vector<8x128xf32>
    %572 = vector.shape_cast %564 : vector<8x128xf32> to vector<1x8x128xf32>
    tpu.vector_store %arg6[%c1_150, %c0_151, %c0_152], %572 {strides = array<i32>} : memref<2x8x128xf32, #tpu.memory_space<vmem>>, vector<1x8x128xf32>,
    return
  }
}

</mosaic_0001>

<llo_original>
// kernel: _encoder_forward_impl.1
$region0: #{_encoder_forward_impl.1}
  #allocation0 [shape = 'u32[]', space=smem, size = 0x4, offset = 0x4, fixed_abs, tag = 'smem constant byte address 0x4 - core index']
  #allocation1 [shape = 'u32[72,128]{1,0:T(1,128)}', space=vmem, size = 0x9000, scoped, tag = 'internal scratch']
  #allocation2 [shape = 'f32[64,512]{1,0:T(8,128)}', space=vmem, size = 0x20000, scoped, tag = 'scratch operand']
  #allocation3 [shape = 'bf16[64,128]{1,0:T(8,128)(2,1)}', space=vmem, size = 0x4000, scoped, tag = 'scratch operand']
  %s0 = inlined_call_operand.vmem [shape: bf16[64,128], index: 0, kind: input, shape index: {}]
  %s1 = inlined_call_operand.hbm [shape: bf16[128,512], index: 1, kind: input, shape index: {}]
  %s2 = inlined_call_operand.hbm [shape: bf16[1,128,512], index: 2, kind: input, shape index: {}]
  %s3 = inlined_call_operand.hbm [shape: bf16[2,128,512], index: 3, kind: input, shape index: {}]
  %s4 = inlined_call_operand.vmem [shape: f32[2,1,512], index: 4, kind: input, shape index: {}]
  %s5 = inlined_call_operand.vmem [shape: f32[2,8,128], index: 5, kind: output, shape index: {0}]
  %s6 = inlined_call_operand.vmem [shape: f32[2,8,128], index: 6, kind: output, shape index: {1}]
  %7 = xla_tuple %s5, %s6
  %s8 = sld [smem:[#allocation0]]
  $region50: #{_encoder_forward_impl.1} parent=0
    _
  %s10 = ssub.s32 1, %s8
  %s11 = scalar_select 0, %s10, %s8
  $region1: #{_encoder_forward_impl.1} parent=0
    #allocation4 [shape = 'u8[131072]{0}', space=vmem, size = 0x20000, scoped, tag = 'input window, operand 1, single buffered']
    #allocation5 [shape = 's32[1]{0}', space=sflag, size = 0x4, scoped, tag = 'scoped memory for _encoder_forward_impl.1']
    #allocation6 [shape = 'u8[131072]{0}', space=vmem, size = 0x20000, scoped, tag = 'input window, operand 2, single buffered']
    #allocation7 [shape = 's32[1]{0}', space=sflag, size = 0x4, scoped, tag = 'scoped memory for _encoder_forward_impl.1']
    #allocation8 [shape = 'u8[262144]{0}', space=vmem, size = 0x40000, scoped, tag = 'input window, operand 3, single buffered']
    %12 = vsyncpa [#allocation5], 0
    %13 = vsyncpa [#allocation7], 0
    // Predicated region
    $region2: #{_encoder_forward_impl.1} parent=1 // pred_check
      _
    $region3: #{_encoder_forward_impl.1} parent=1 // pred_check_branch
      %15 = sbr.rel (0) target = $region5
    $region4: #{_encoder_forward_impl.1} parent=1 // pred_region
      _
    $region5: #{_encoder_forward_impl.1} parent=1 // pred_fallthru
      _
    // Predicated region
    $region6: #{_encoder_forward_impl.1} parent=1 // pred_check
      _
    $region7: #{_encoder_forward_impl.1} parent=1 // pred_check_branch
      %17 = sbr.rel (0) target = $region9
    $region8: #{_encoder_forward_impl.1} parent=1 // pred_region
      %19 = vsyncadd [#allocation5], 0
      %s20 = sshll.u32 %s1, 4
      %s21 = int_to_ptr.hbm [resolvable:$true] %s20
      %s22 = sshll.u32 [#allocation4], 4
      %s23 = int_to_ptr.vmem [resolvable:$true] %s22
      %28 = dma.hbm_to_vmem [thread:$0]  %s21, 4096, %s23, [#allocation5], 256, 256, 16
    $region9: #{_encoder_forward_impl.1} parent=1 // pred_fallthru
      _
    // Predicated region
    $region10: #{_encoder_forward_impl.1} parent=1 // pred_check
      _
    $region11: #{_encoder_forward_impl.1} parent=1 // pred_check_branch
      %30 = sbr.rel (0) target = $region13
    $region12: #{_encoder_forward_impl.1} parent=1 // pred_region
      %32 = vsyncadd [#allocation7], 0
      %s33 = sshll.u32 %s2, 4
      %s34 = int_to_ptr.hbm [resolvable:$true] %s33
      %s35 = sshll.u32 [#allocation6], 4
      %s36 = int_to_ptr.vmem [resolvable:$true] %s35
      %41 = dma.hbm_to_vmem [thread:$0]  %s34, 4096, %s36, [#allocation7], 256, 256, 16
    $region13: #{_encoder_forward_impl.1} parent=1 // pred_fallthru
      _
    // Predicated region
    $region14: #{_encoder_forward_impl.1} parent=1 // pred_check
      _
    $region15: #{_encoder_forward_impl.1} parent=1 // pred_check_branch
      %43 = sbr.rel (0) target = $region17
    $region16: #{_encoder_forward_impl.1} parent=1 // pred_region
      %45 = vsyncadd [#allocation7], 0
      %s46 = sshll.u32 %s3, 4
      %s47 = int_to_ptr.hbm [resolvable:$true] %s46
      %s48 = sshll.u32 [#allocation8], 4
      %s49 = int_to_ptr.vmem [resolvable:$true] %s48
      %54 = dma.hbm_to_vmem [thread:$0]  %s47, 8192, %s49, [#allocation7], 256, 256, 16
    $region17: #{_encoder_forward_impl.1} parent=1 // pred_fallthru
      _
    // Predicated region
    $region18: #{_encoder_forward_impl.1} parent=1 // pred_check
      _
    $region19: #{_encoder_forward_impl.1} parent=1 // pred_check_branch
      %56 = sbr.rel (0) target = $region21
    $region20: #{_encoder_forward_impl.1} parent=1 // pred_region
      _
    $region21: #{_encoder_forward_impl.1} parent=1 // pred_fallthru
      _
    // Predicated region
    $region22: #{_encoder_forward_impl.1} parent=1 // pred_check
      _
    $region23: #{_encoder_forward_impl.1} parent=1 // pred_check_branch
      %58 = sbr.rel (0) target = $region25
    $region24: #{_encoder_forward_impl.1} parent=1 // pred_region
      %60 = dma.done [#allocation5], 4096
    $region25: #{_encoder_forward_impl.1} parent=1 // pred_fallthru
      _
    // Predicated region
    $region26: #{_encoder_forward_impl.1} parent=1 // pred_check
      _
    $region27: #{_encoder_forward_impl.1} parent=1 // pred_check_branch
      %62 = sbr.rel (0) target = $region29
    $region28: #{_encoder_forward_impl.1} parent=1 // pred_region
      %64 = dma.done [#allocation7], 4096
    $region29: #{_encoder_forward_impl.1} parent=1 // pred_fallthru
      _
    // Predicated region
    $region30: #{_encoder_forward_impl.1} parent=1 // pred_check
      _
    $region31: #{_encoder_forward_impl.1} parent=1 // pred_check_branch
      %66 = sbr.rel (0) target = $region33
    $region32: #{_encoder_forward_impl.1} parent=1 // pred_region
      %68 = dma.done [#allocation7], 8192
    $region33: #{_encoder_forward_impl.1} parent=1 // pred_fallthru
      _
    %v70 = vld [vmem:[%s0] sm:$0xf]
    %v71 = vld [vmem:[%s0 + $0x4] sm:$0xf]
    %v72 = vld [vmem:[%s0 + $0x8] sm:$0xf]
    %v73 = vld [vmem:[%s0 + $0xc] sm:$0xf]
    %v74 = vld [vmem:[%s0 + $0x10] sm:$0xf]
    %v75 = vld [vmem:[%s0 + $0x14] sm:$0xf]
    %v76 = vld [vmem:[%s0 + $0x18] sm:$0xf]
    %v77 = vld [vmem:[%s0 + $0x1c] sm:$0xf]
    %v78 = vld [vmem:[#allocation4] sm:$0xff]
    %v79 = vld [vmem:[#allocation4 + $0x8] sm:$0xff]
    %v80 = vld [vmem:[#allocation4 + $0x10] sm:$0xff]
    %v81 = vld [vmem:[#allocation4 + $0x18] sm:$0xff]
    %v82 = vld [vmem:[#allocation4 + $0x20] sm:$0xff]
    %v83 = vld [vmem:[#allocation4 + $0x28] sm:$0xff]
    %v84 = vld [vmem:[#allocation4 + $0x30] sm:$0xff]
    %v85 = vld [vmem:[#allocation4 + $0x38] sm:$0xff]
    %v86 = vld [vmem:[#allocation4 + $0x40] sm:$0xff]
    %v87 = vld [vmem:[#allocation4 + $0x48] sm:$0xff]
    %v88 = vld [vmem:[#allocation4 + $0x50] sm:$0xff]
    %v89 = vld [vmem:[#allocation4 + $0x58] sm:$0xff]
    %v90 = vld [vmem:[#allocation4 + $0x60] sm:$0xff]
    %v91 = vld [vmem:[#allocation4 + $0x68] sm:$0xff]
    %v92 = vld [vmem:[#allocation4 + $0x70] sm:$0xff]
    %v93 = vld [vmem:[#allocation4 + $0x78] sm:$0xff]
    %v94 = vld [vmem:[#allocation4 + $0x80] sm:$0xff]
    %v95 = vld [vmem:[#allocation4 + $0x88] sm:$0xff]
    %v96 = vld [vmem:[#allocation4 + $0x90] sm:$0xff]
    %v97 = vld [vmem:[#allocation4 + $0x98] sm:$0xff]
    %v98 = vld [vmem:[#allocation4 + $0xa0] sm:$0xff]
    %v99 = vld [vmem:[#allocation4 + $0xa8] sm:$0xff]
    %v100 = vld [vmem:[#allocation4 + $0xb0] sm:$0xff]
    %v101 = vld [vmem:[#allocation4 + $0xb8] sm:$0xff]
    %v102 = vld [vmem:[#allocation4 + $0xc0] sm:$0xff]
    %v103 = vld [vmem:[#allocation4 + $0xc8] sm:$0xff]
    %v104 = vld [vmem:[#allocation4 + $0xd0] sm:$0xff]
    %v105 = vld [vmem:[#allocation4 + $0xd8] sm:$0xff]
    %v106 = vld [vmem:[#allocation4 + $0xe0] sm:$0xff]
    %v107 = vld [vmem:[#allocation4 + $0xe8] sm:$0xff]
    %v108 = vld [vmem:[#allocation4 + $0xf0] sm:$0xff]
    %v109 = vld [vmem:[#allocation4 + $0xf8] sm:$0xff]
    %v110 = vld [vmem:[%s4] sm:$0xf]
    %v112 = vperm.slane %v110, 0
    %v113 = vperm.slane %v110, 1
    %v114 = vperm.slane %v110, 2
    %v115 = vperm.slane %v110, 3
    %v128 = vunpack.c.l.b16 %v70
    %v129 = vunpack.c.l.b16 %v71
    %v130 = vunpack.c.l.b16 %v72
    %v131 = vunpack.c.l.b16 %v73
    %v132 = vunpack.c.l.b16 %v74
    %v133 = vunpack.c.l.b16 %v75
    %v134 = vunpack.c.l.b16 %v76
    %v135 = vunpack.c.l.b16 %v77
    %v136 = vpack.c.b16 %v129, %v128
    %v137 = vpack.c.b16 %v131, %v130
    %v138 = vpack.c.b16 %v133, %v132
    %v139 = vpack.c.b16 %v135, %v134
    %v176 = vunpack.c.l.b16 %v78
    %v177 = vunpack.c.h.b16 %v78
    %v178 = vunpack.c.l.b16 %v79
    %v179 = vunpack.c.h.b16 %v79
    %v180 = vunpack.c.l.b16 %v80
    %v181 = vunpack.c.h.b16 %v80
    %v182 = vunpack.c.l.b16 %v81
    %v183 = vunpack.c.h.b16 %v81
    %v184 = vunpack.c.l.b16 %v82
    %v185 = vunpack.c.h.b16 %v82
    %v186 = vunpack.c.l.b16 %v83
    %v187 = vunpack.c.h.b16 %v83
    %v188 = vunpack.c.l.b16 %v84
    %v189 = vunpack.c.h.b16 %v84
    %v190 = vunpack.c.l.b16 %v85
    %v191 = vunpack.c.h.b16 %v85
    %v192 = vunpack.c.l.b16 %v86
    %v193 = vunpack.c.h.b16 %v86
    %v194 = vunpack.c.l.b16 %v87
    %v195 = vunpack.c.h.b16 %v87
    %v196 = vunpack.c.l.b16 %v88
    %v197 = vunpack.c.h.b16 %v88
    %v198 = vunpack.c.l.b16 %v89
    %v199 = vunpack.c.h.b16 %v89
    %v200 = vunpack.c.l.b16 %v90
    %v201 = vunpack.c.h.b16 %v90
    %v202 = vunpack.c.l.b16 %v91
    %v203 = vunpack.c.h.b16 %v91
    %v204 = vunpack.c.l.b16 %v92
    %v205 = vunpack.c.h.b16 %v92
    %v206 = vunpack.c.l.b16 %v93
    %v207 = vunpack.c.h.b16 %v93
    %v208 = vunpack.c.l.b16 %v94
    %v209 = vunpack.c.h.b16 %v94
    %v210 = vunpack.c.l.b16 %v95
    %v211 = vunpack.c.h.b16 %v95
    %v212 = vunpack.c.l.b16 %v96
    %v213 = vunpack.c.h.b16 %v96
    %v214 = vunpack.c.l.b16 %v97
    %v215 = vunpack.c.h.b16 %v97
    %v216 = vunpack.c.l.b16 %v98
    %v217 = vunpack.c.h.b16 %v98
    %v218 = vunpack.c.l.b16 %v99
    %v219 = vunpack.c.h.b16 %v99
    %v220 = vunpack.c.l.b16 %v100
    %v221 = vunpack.c.h.b16 %v100
    %v222 = vunpack.c.l.b16 %v101
    %v223 = vunpack.c.h.b16 %v101
    %v224 = vunpack.c.l.b16 %v102
    %v225 = vunpack.c.h.b16 %v102
    %v226 = vunpack.c.l.b16 %v103
    %v227 = vunpack.c.h.b16 %v103
    %v228 = vunpack.c.l.b16 %v104
    %v229 = vunpack.c.h.b16 %v104
    %v230 = vunpack.c.l.b16 %v105
    %v231 = vunpack.c.h.b16 %v105
    %v232 = vunpack.c.l.b16 %v106
    %v233 = vunpack.c.h.b16 %v106
    %v234 = vunpack.c.l.b16 %v107
    %v235 = vunpack.c.h.b16 %v107
    %v236 = vunpack.c.l.b16 %v108
    %v237 = vunpack.c.h.b16 %v108
    %v238 = vunpack.c.l.b16 %v109
    %v239 = vunpack.c.h.b16 %v109
    %v240 = vpack.c.b16 %v180, %v176
    %v241 = vpack.c.b16 %v181, %v177
    %v242 = vpack.c.b16 %v182, %v178
    %v243 = vpack.c.b16 %v183, %v179
    %v244 = vpack.c.b16 %v188, %v184
    %v245 = vpack.c.b16 %v189, %v185
    %v246 = vpack.c.b16 %v190, %v186
    %v247 = vpack.c.b16 %v191, %v187
    %v248 = vpack.c.b16 %v196, %v192
    %v249 = vpack.c.b16 %v197, %v193
    %v250 = vpack.c.b16 %v198, %v194
    %v251 = vpack.c.b16 %v199, %v195
    %v252 = vpack.c.b16 %v204, %v200
    %v253 = vpack.c.b16 %v205, %v201
    %v254 = vpack.c.b16 %v206, %v202
    %v255 = vpack.c.b16 %v207, %v203
    %v256 = vpack.c.b16 %v212, %v208
    %v257 = vpack.c.b16 %v213, %v209
    %v258 = vpack.c.b16 %v214, %v210
    %v259 = vpack.c.b16 %v215, %v211
    %v260 = vpack.c.b16 %v220, %v216
    %v261 = vpack.c.b16 %v221, %v217
    %v262 = vpack.c.b16 %v222, %v218
    %v263 = vpack.c.b16 %v223, %v219
    %v264 = vpack.c.b16 %v228, %v224
    %v265 = vpack.c.b16 %v229, %v225
    %v266 = vpack.c.b16 %v230, %v226
    %v267 = vpack.c.b16 %v231, %v227
    %v268 = vpack.c.b16 %v236, %v232
    %v269 = vpack.c.b16 %v237, %v233
    %v270 = vpack.c.b16 %v238, %v234
    %v271 = vpack.c.b16 %v239, %v235
    %304 = vmatpush.bf16.msra.mxu0 %v268
    %305 = vmatpush.bf16.msra.mxu0 %v264
    %306 = vmatpush.bf16.msra.mxu0 %v260
    %307 = vmatpush.bf16.msra.mxu0 %v256
    %308 = vmatpush.bf16.msra.mxu0 %v252
    %309 = vmatpush.bf16.msra.mxu0 %v248
    %310 = vmatpush.bf16.msra.mxu0 %v244
    %311 = vmatpush.bf16.msra.mxu0 %v240
    %312 = vmatmul.bf16.gmra.mxu0 %v136
    %v313 = vpop.f32.mrf.mxu0
    %v314 = vadd.f32 %v112, %v313
    %v315 = vpop.f32.mrf.mxu0
    %v316 = vadd.f32 %v112, %v315
    %317 = vmatmul.bf16.gmra.mxu0 %v137
    %v318 = vpop.f32.mrf.mxu0
    %v319 = vadd.f32 %v112, %v318
    %v320 = vpop.f32.mrf.mxu0
    %v321 = vadd.f32 %v112, %v320
    %322 = vmatmul.bf16.gmra.mxu0 %v138
    %v323 = vpop.f32.mrf.mxu0
    %v324 = vadd.f32 %v112, %v323
    %v325 = vpop.f32.mrf.mxu0
    %v326 = vadd.f32 %v112, %v325
    %327 = vmatmul.bf16.gmra.mxu0 %v139
    %v328 = vpop.f32.mrf.mxu0
    %v329 = vadd.f32 %v112, %v328
    %v330 = vpop.f32.mrf.mxu0
    %v331 = vadd.f32 %v112, %v330
    %332 = vdwg.mxu0
    %333 = vmatpush.bf16.msra.mxu0 %v269
    %334 = vmatpush.bf16.msra.mxu0 %v265
    %335 = vmatpush.bf16.msra.mxu0 %v261
    %336 = vmatpush.bf16.msra.mxu0 %v257
    %337 = vmatpush.bf16.msra.mxu0 %v253
    %338 = vmatpush.bf16.msra.mxu0 %v249
    %339 = vmatpush.bf16.msra.mxu0 %v245
    %340 = vmatpush.bf16.msra.mxu0 %v241
    %341 = vmatmul.bf16.gmra.mxu0 %v136
    %v342 = vpop.f32.mrf.mxu0
    %v343 = vadd.f32 %v113, %v342
    %v344 = vpop.f32.mrf.mxu0
    %v345 = vadd.f32 %v113, %v344
    %346 = vmatmul.bf16.gmra.mxu0 %v137
    %v347 = vpop.f32.mrf.mxu0
    %v348 = vadd.f32 %v113, %v347
    %v349 = vpop.f32.mrf.mxu0
    %v350 = vadd.f32 %v113, %v349
    %351 = vmatmul.bf16.gmra.mxu0 %v138
    %v352 = vpop.f32.mrf.mxu0
    %v353 = vadd.f32 %v113, %v352
    %v354 = vpop.f32.mrf.mxu0
    %v355 = vadd.f32 %v113, %v354
    %356 = vmatmul.bf16.gmra.mxu0 %v139
    %v357 = vpop.f32.mrf.mxu0
    %v358 = vadd.f32 %v113, %v357
    %v359 = vpop.f32.mrf.mxu0
    %v360 = vadd.f32 %v113, %v359
    %361 = vdwg.mxu0
    %362 = vmatpush.bf16.msra.mxu0 %v270
    %363 = vmatpush.bf16.msra.mxu0 %v266
    %364 = vmatpush.bf16.msra.mxu0 %v262
    %365 = vmatpush.bf16.msra.mxu0 %v258
    %366 = vmatpush.bf16.msra.mxu0 %v254
    %367 = vmatpush.bf16.msra.mxu0 %v250
    %368 = vmatpush.bf16.msra.mxu0 %v246
    %369 = vmatpush.bf16.msra.mxu0 %v242
    %370 = vmatmul.bf16.gmra.mxu0 %v136
    %v371 = vpop.f32.mrf.mxu0
    %v372 = vadd.f32 %v114, %v371
    %v373 = vpop.f32.mrf.mxu0
    %v374 = vadd.f32 %v114, %v373
    %375 = vmatmul.bf16.gmra.mxu0 %v137
    %v376 = vpop.f32.mrf.mxu0
    %v377 = vadd.f32 %v114, %v376
    %v378 = vpop.f32.mrf.mxu0
    %v379 = vadd.f32 %v114, %v378
    %380 = vmatmul.bf16.gmra.mxu0 %v138
    %v381 = vpop.f32.mrf.mxu0
    %v382 = vadd.f32 %v114, %v381
    %v383 = vpop.f32.mrf.mxu0
    %v384 = vadd.f32 %v114, %v383
    %385 = vmatmul.bf16.gmra.mxu0 %v139
    %v386 = vpop.f32.mrf.mxu0
    %v387 = vadd.f32 %v114, %v386
    %v388 = vpop.f32.mrf.mxu0
    %v389 = vadd.f32 %v114, %v388
    %390 = vdwg.mxu0
    %391 = vmatpush.bf16.msra.mxu0 %v271
    %392 = vmatpush.bf16.msra.mxu0 %v267
    %393 = vmatpush.bf16.msra.mxu0 %v263
    %394 = vmatpush.bf16.msra.mxu0 %v259
    %395 = vmatpush.bf16.msra.mxu0 %v255
    %396 = vmatpush.bf16.msra.mxu0 %v251
    %397 = vmatpush.bf16.msra.mxu0 %v247
    %398 = vmatpush.bf16.msra.mxu0 %v243
    %399 = vmatmul.bf16.gmra.mxu0 %v136
    %v400 = vpop.f32.mrf.mxu0
    %v401 = vadd.f32 %v115, %v400
    %v402 = vpop.f32.mrf.mxu0
    %v403 = vadd.f32 %v115, %v402
    %404 = vmatmul.bf16.gmra.mxu0 %v137
    %v405 = vpop.f32.mrf.mxu0
    %v406 = vadd.f32 %v115, %v405
    %v407 = vpop.f32.mrf.mxu0
    %v408 = vadd.f32 %v115, %v407
    %409 = vmatmul.bf16.gmra.mxu0 %v138
    %v410 = vpop.f32.mrf.mxu0
    %v411 = vadd.f32 %v115, %v410
    %v412 = vpop.f32.mrf.mxu0
    %v413 = vadd.f32 %v115, %v412
    %414 = vmatmul.bf16.gmra.mxu0 %v139
    %v415 = vpop.f32.mrf.mxu0
    %v416 = vadd.f32 %v115, %v415
    %v417 = vpop.f32.mrf.mxu0
    %v418 = vadd.f32 %v115, %v417
    %419 = vdwg.mxu0
    %420 = vst [vmem:[#allocation2] sm:$0xff] %v314
    %421 = vst [vmem:[#allocation2 + $0x8] sm:$0xff] %v343
    %422 = vst [vmem:[#allocation2 + $0x10] sm:$0xff] %v372
    %423 = vst [vmem:[#allocation2 + $0x18] sm:$0xff] %v401
    %424 = vst [vmem:[#allocation2 + $0x20] sm:$0xff] %v316
    %425 = vst [vmem:[#allocation2 + $0x28] sm:$0xff] %v345
    %426 = vst [vmem:[#allocation2 + $0x30] sm:$0xff] %v374
    %427 = vst [vmem:[#allocation2 + $0x38] sm:$0xff] %v403
    %428 = vst [vmem:[#allocation2 + $0x40] sm:$0xff] %v319
    %429 = vst [vmem:[#allocation2 + $0x48] sm:$0xff] %v348
    %430 = vst [vmem:[#allocation2 + $0x50] sm:$0xff] %v377
    %431 = vst [vmem:[#allocation2 + $0x58] sm:$0xff] %v406
    %432 = vst [vmem:[#allocation2 + $0x60] sm:$0xff] %v321
    %433 = vst [vmem:[#allocation2 + $0x68] sm:$0xff] %v350
    %434 = vst [vmem:[#allocation2 + $0x70] sm:$0xff] %v379
    %435 = vst [vmem:[#allocation2 + $0x78] sm:$0xff] %v408
    %436 = vst [vmem:[#allocation2 + $0x80] sm:$0xff] %v324
    %437 = vst [vmem:[#allocation2 + $0x88] sm:$0xff] %v353
    %438 = vst [vmem:[#allocation2 + $0x90] sm:$0xff] %v382
    %439 = vst [vmem:[#allocation2 + $0x98] sm:$0xff] %v411
    %440 = vst [vmem:[#allocation2 + $0xa0] sm:$0xff] %v326
    %441 = vst [vmem:[#allocation2 + $0xa8] sm:$0xff] %v355
    %442 = vst [vmem:[#allocation2 + $0xb0] sm:$0xff] %v384
    %443 = vst [vmem:[#allocation2 + $0xb8] sm:$0xff] %v413
    %444 = vst [vmem:[#allocation2 + $0xc0] sm:$0xff] %v329
    %445 = vst [vmem:[#allocation2 + $0xc8] sm:$0xff] %v358
    %446 = vst [vmem:[#allocation2 + $0xd0] sm:$0xff] %v387
    %447 = vst [vmem:[#allocation2 + $0xd8] sm:$0xff] %v416
    %448 = vst [vmem:[#allocation2 + $0xe0] sm:$0xff] %v331
    %449 = vst [vmem:[#allocation2 + $0xe8] sm:$0xff] %v360
    %450 = vst [vmem:[#allocation2 + $0xf0] sm:$0xff] %v389
    %451 = vst [vmem:[#allocation2 + $0xf8] sm:$0xff] %v418
    %v452 = vld [vmem:[#allocation8] sm:$0xff]
    %v453 = vld [vmem:[#allocation8 + $0x8] sm:$0xff]
    %v454 = vld [vmem:[#allocation8 + $0x10] sm:$0xff]
    %v455 = vld [vmem:[#allocation8 + $0x18] sm:$0xff]
    %v456 = vld [vmem:[#allocation8 + $0x20] sm:$0xff]
    %v457 = vld [vmem:[#allocation8 + $0x28] sm:$0xff]
    %v458 = vld [vmem:[#allocation8 + $0x30] sm:$0xff]
    %v459 = vld [vmem:[#allocation8 + $0x38] sm:$0xff]
    %v460 = vld [vmem:[#allocation8 + $0x40] sm:$0xff]
    %v461 = vld [vmem:[#allocation8 + $0x48] sm:$0xff]
    %v462 = vld [vmem:[#allocation8 + $0x50] sm:$0xff]
    %v463 = vld [vmem:[#allocation8 + $0x58] sm:$0xff]
    %v464 = vld [vmem:[#allocation8 + $0x60] sm:$0xff]
    %v465 = vld [vmem:[#allocation8 + $0x68] sm:$0xff]
    %v466 = vld [vmem:[#allocation8 + $0x70] sm:$0xff]
    %v467 = vld [vmem:[#allocation8 + $0x78] sm:$0xff]
    %v468 = vld [vmem:[#allocation8 + $0x80] sm:$0xff]
    %v469 = vld [vmem:[#allocation8 + $0x88] sm:$0xff]
    %v470 = vld [vmem:[#allocation8 + $0x90] sm:$0xff]
    %v471 = vld [vmem:[#allocation8 + $0x98] sm:$0xff]
    %v472 = vld [vmem:[#allocation8 + $0xa0] sm:$0xff]
    %v473 = vld [vmem:[#allocation8 + $0xa8] sm:$0xff]
    %v474 = vld [vmem:[#allocation8 + $0xb0] sm:$0xff]
    %v475 = vld [vmem:[#allocation8 + $0xb8] sm:$0xff]
    %v476 = vld [vmem:[#allocation8 + $0xc0] sm:$0xff]
    %v477 = vld [vmem:[#allocation8 + $0xc8] sm:$0xff]
    %v478 = vld [vmem:[#allocation8 + $0xd0] sm:$0xff]
    %v479 = vld [vmem:[#allocation8 + $0xd8] sm:$0xff]
    %v480 = vld [vmem:[#allocation8 + $0xe0] sm:$0xff]
    %v481 = vld [vmem:[#allocation8 + $0xe8] sm:$0xff]
    %v482 = vld [vmem:[#allocation8 + $0xf0] sm:$0xff]
    %v483 = vld [vmem:[#allocation8 + $0xf8] sm:$0xff]
    %s484 = smul.u32 0, 4
    %s485 = smul.addr %s484, 8
    %s486 = scalar_lea.vmem [#allocation2], %s485
    %v487 = vld [vmem:[%s486] sm:$0xff]
    %v488 = vld [vmem:[%s486 + $0x8] sm:$0xff]
    %v489 = vld [vmem:[%s486 + $0x10] sm:$0xff]
    %v490 = vld [vmem:[%s486 + $0x18] sm:$0xff]
    %v523 = vunpack.c.l.b16 %v452
    %v524 = vunpack.c.h.b16 %v452
    %v525 = vunpack.c.l.b16 %v453
    %v526 = vunpack.c.h.b16 %v453
    %v527 = vunpack.c.l.b16 %v454
    %v528 = vunpack.c.h.b16 %v454
    %v529 = vunpack.c.l.b16 %v455
    %v530 = vunpack.c.h.b16 %v455
    %v531 = vunpack.c.l.b16 %v456
    %v532 = vunpack.c.h.b16 %v456
    %v533 = vunpack.c.l.b16 %v457
    %v534 = vunpack.c.h.b16 %v457
    %v535 = vunpack.c.l.b16 %v458
    %v536 = vunpack.c.h.b16 %v458
    %v537 = vunpack.c.l.b16 %v459
    %v538 = vunpack.c.h.b16 %v459
    %v539 = vunpack.c.l.b16 %v460
    %v540 = vunpack.c.h.b16 %v460
    %v541 = vunpack.c.l.b16 %v461
    %v542 = vunpack.c.h.b16 %v461
    %v543 = vunpack.c.l.b16 %v462
    %v544 = vunpack.c.h.b16 %v462
    %v545 = vunpack.c.l.b16 %v463
    %v546 = vunpack.c.h.b16 %v463
    %v547 = vunpack.c.l.b16 %v464
    %v548 = vunpack.c.h.b16 %v464
    %v549 = vunpack.c.l.b16 %v465
    %v550 = vunpack.c.h.b16 %v465
    %v551 = vunpack.c.l.b16 %v466
    %v552 = vunpack.c.h.b16 %v466
    %v553 = vunpack.c.l.b16 %v467
    %v554 = vunpack.c.h.b16 %v467
    %v555 = vunpack.c.l.b16 %v468
    %v556 = vunpack.c.h.b16 %v468
    %v557 = vunpack.c.l.b16 %v469
    %v558 = vunpack.c.h.b16 %v469
    %v559 = vunpack.c.l.b16 %v470
    %v560 = vunpack.c.h.b16 %v470
    %v561 = vunpack.c.l.b16 %v471
    %v562 = vunpack.c.h.b16 %v471
    %v563 = vunpack.c.l.b16 %v472
    %v564 = vunpack.c.h.b16 %v472
    %v565 = vunpack.c.l.b16 %v473
    %v566 = vunpack.c.h.b16 %v473
    %v567 = vunpack.c.l.b16 %v474
    %v568 = vunpack.c.h.b16 %v474
    %v569 = vunpack.c.l.b16 %v475
    %v570 = vunpack.c.h.b16 %v475
    %v571 = vunpack.c.l.b16 %v476
    %v572 = vunpack.c.h.b16 %v476
    %v573 = vunpack.c.l.b16 %v477
    %v574 = vunpack.c.h.b16 %v477
    %v575 = vunpack.c.l.b16 %v478
    %v576 = vunpack.c.h.b16 %v478
    %v577 = vunpack.c.l.b16 %v479
    %v578 = vunpack.c.h.b16 %v479
    %v579 = vunpack.c.l.b16 %v480
    %v580 = vunpack.c.h.b16 %v480
    %v581 = vunpack.c.l.b16 %v481
    %v582 = vunpack.c.h.b16 %v481
    %v583 = vunpack.c.l.b16 %v482
    %v584 = vunpack.c.h.b16 %v482
    %v585 = vunpack.c.l.b16 %v483
    %v586 = vunpack.c.h.b16 %v483
    %v587 = vpack.c.b16 %v527, %v523
    %v588 = vpack.c.b16 %v528, %v524
    %v589 = vpack.c.b16 %v529, %v525
    %v590 = vpack.c.b16 %v530, %v526
    %v591 = vpack.c.b16 %v535, %v531
    %v592 = vpack.c.b16 %v536, %v532
    %v593 = vpack.c.b16 %v537, %v533
    %v594 = vpack.c.b16 %v538, %v534
    %v595 = vpack.c.b16 %v543, %v539
    %v596 = vpack.c.b16 %v544, %v540
    %v597 = vpack.c.b16 %v545, %v541
    %v598 = vpack.c.b16 %v546, %v542
    %v599 = vpack.c.b16 %v551, %v547
    %v600 = vpack.c.b16 %v552, %v548
    %v601 = vpack.c.b16 %v553, %v549
    %v602 = vpack.c.b16 %v554, %v550
    %v603 = vpack.c.b16 %v559, %v555
    %v604 = vpack.c.b16 %v560, %v556
    %v605 = vpack.c.b16 %v561, %v557
    %v606 = vpack.c.b16 %v562, %v558
    %v607 = vpack.c.b16 %v567, %v563
    %v608 = vpack.c.b16 %v568, %v564
    %v609 = vpack.c.b16 %v569, %v565
    %v610 = vpack.c.b16 %v570, %v566
    %v611 = vpack.c.b16 %v575, %v571
    %v612 = vpack.c.b16 %v576, %v572
    %v613 = vpack.c.b16 %v577, %v573
    %v614 = vpack.c.b16 %v578, %v574
    %v615 = vpack.c.b16 %v583, %v579
    %v616 = vpack.c.b16 %v584, %v580
    %v617 = vpack.c.b16 %v585, %v581
    %v618 = vpack.c.b16 %v586, %v582
    %651 = vmatpush.bf16.msra.mxu0 %v615
    %652 = vmatpush.bf16.msra.mxu0 %v611
    %653 = vmatpush.bf16.msra.mxu0 %v607
    %654 = vmatpush.bf16.msra.mxu0 %v603
    %655 = vmatpush.bf16.msra.mxu0 %v599
    %656 = vmatpush.bf16.msra.mxu0 %v595
    %657 = vmatpush.bf16.msra.mxu0 %v591
    %658 = vmatpush.bf16.msra.mxu0 %v587
    %659 = vmatmul.bf16.gmra.mxu0 0
    %v660 = vpop.f32.mrf.mxu0
    %v661 = vadd.f32 0.0, %v660
    %v662 = vpop.f32.mrf.mxu0
    %663 = vdwg.mxu0
    %664 = vmatpush.bf16.msra.mxu0 %v616
    %665 = vmatpush.bf16.msra.mxu0 %v612
    %666 = vmatpush.bf16.msra.mxu0 %v608
    %667 = vmatpush.bf16.msra.mxu0 %v604
    %668 = vmatpush.bf16.msra.mxu0 %v600
    %669 = vmatpush.bf16.msra.mxu0 %v596
    %670 = vmatpush.bf16.msra.mxu0 %v592
    %671 = vmatpush.bf16.msra.mxu0 %v588
    %672 = vmatmul.bf16.gmra.mxu0 0
    %v673 = vpop.f32.mrf.mxu0
    %v674 = vadd.f32 0.0, %v673
    %v675 = vpop.f32.mrf.mxu0
    %676 = vdwg.mxu0
    %677 = vmatpush.bf16.msra.mxu0 %v617
    %678 = vmatpush.bf16.msra.mxu0 %v613
    %679 = vmatpush.bf16.msra.mxu0 %v609
    %680 = vmatpush.bf16.msra.mxu0 %v605
    %681 = vmatpush.bf16.msra.mxu0 %v601
    %682 = vmatpush.bf16.msra.mxu0 %v597
    %683 = vmatpush.bf16.msra.mxu0 %v593
    %684 = vmatpush.bf16.msra.mxu0 %v589
    %685 = vmatmul.bf16.gmra.mxu0 0
    %v686 = vpop.f32.mrf.mxu0
    %v687 = vadd.f32 0.0, %v686
    %v688 = vpop.f32.mrf.mxu0
    %689 = vdwg.mxu0
    %690 = vmatpush.bf16.msra.mxu0 %v618
    %691 = vmatpush.bf16.msra.mxu0 %v614
    %692 = vmatpush.bf16.msra.mxu0 %v610
    %693 = vmatpush.bf16.msra.mxu0 %v606
    %694 = vmatpush.bf16.msra.mxu0 %v602
    %695 = vmatpush.bf16.msra.mxu0 %v598
    %696 = vmatpush.bf16.msra.mxu0 %v594
    %697 = vmatpush.bf16.msra.mxu0 %v590
    %698 = vmatmul.bf16.gmra.mxu0 0
    %v699 = vpop.f32.mrf.mxu0
    %v700 = vadd.f32 0.0, %v699
    %v701 = vpop.f32.mrf.mxu0
    %702 = vdwg.mxu0
    %v703 = vadd.f32 %v487, %v661
    %v704 = vadd.f32 %v488, %v674
    %v705 = vadd.f32 %v489, %v687
    %v706 = vadd.f32 %v490, %v700
    %v707 = vxor.u32 %v703, 2147483648
    %v708 = vmul.f32 %v707, 1.442695
    %v709 = vpow.pop %v708
    %v710 = vadd.f32 %v709, 1.0
    %v711 = vrcp.pop %v710
    %v712 = vmul.f32 %v710, %v711
    %v713 = vsub.f32 1.0, %v712
    %v714 = vmul.f32 %v711, %v713
    %v715 = vadd.f32 %v711, %v714
    %vm716 = vweird.f32 %v710
    %vm717 = vweird.f32 %v711
    %vm718 = vmor %vm716, %vm717
    %v719 = vsel %vm718, %v711, %v715
    %v720 = vand.u32 2147483647, %v710
    %vm721 = vcmp.eq.f32.partialorder %v720, 8.507059e+37
    %v722 = vand.u32 %v710, 2147483648
    %v723 = vor.u32 1.1754944e-38, %v722
    %v724 = vsel %vm721, %v723, %v719
    %v725 = vmul.f32 1.0, %v724
    %v726 = vxor.u32 %v704, 2147483648
    %v727 = vmul.f32 %v726, 1.442695
    %v728 = vpow.pop %v727
    %v729 = vadd.f32 %v728, 1.0
    %v730 = vrcp.pop %v729
    %v731 = vmul.f32 %v729, %v730
    %v732 = vsub.f32 1.0, %v731
    %v733 = vmul.f32 %v730, %v732
    %v734 = vadd.f32 %v730, %v733
    %vm735 = vweird.f32 %v729
    %vm736 = vweird.f32 %v730
    %vm737 = vmor %vm735, %vm736
    %v738 = vsel %vm737, %v730, %v734
    %v739 = vand.u32 2147483647, %v729
    %vm740 = vcmp.eq.f32.partialorder %v739, 8.507059e+37
    %v741 = vand.u32 %v729, 2147483648
    %v742 = vor.u32 1.1754944e-38, %v741
    %v743 = vsel %vm740, %v742, %v738
    %v744 = vmul.f32 1.0, %v743
    %v745 = vtanh.pop %v705
    %v746 = vxor.u32 %v706, 2147483648
    %v747 = vmul.f32 %v746, 1.442695
    %v748 = vpow.pop %v747
    %v749 = vadd.f32 %v748, 1.0
    %v750 = vrcp.pop %v749
    %v751 = vmul.f32 %v749, %v750
    %v752 = vsub.f32 1.0, %v751
    %v753 = vmul.f32 %v750, %v752
    %v754 = vadd.f32 %v750, %v753
    %vm755 = vweird.f32 %v749
    %vm756 = vweird.f32 %v750
    %vm757 = vmor %vm755, %vm756
    %v758 = vsel %vm757, %v750, %v754
    %v759 = vand.u32 2147483647, %v749
    %vm760 = vcmp.eq.f32.partialorder %v759, 8.507059e+37
    %v761 = vand.u32 %v749, 2147483648
    %v762 = vor.u32 1.1754944e-38, %v761
    %v763 = vsel %vm760, %v762, %v758
    %v764 = vmul.f32 1.0, %v763
    %v765 = vmul.f32 %v744, 0.0
    %v766 = vmul.f32 %v725, %v745
    %v767 = vadd.f32 %v765, %v766
    %v768 = vtanh.pop %v767
    %v769 = vmul.f32 %v764, %v768
    %v770 = vpack.c.bf16 %v769, %v769
    %771 = vst [vmem:[#allocation3] sm:$0xf] %v770
    %s772 = smul.u32 1, 4
    %s773 = smul.addr %s772, 8
    %s774 = scalar_lea.vmem [#allocation2], %s773
    %v775 = vld [vmem:[%s774] sm:$0xff]
    %v776 = vld [vmem:[%s774 + $0x8] sm:$0xff]
    %v777 = vld [vmem:[%s774 + $0x10] sm:$0xff]
    %v778 = vld [vmem:[%s774 + $0x18] sm:$0xff]
    %779 = vmatpush.bf16.msra.mxu0 %v615
    %780 = vmatpush.bf16.msra.mxu0 %v611
    %781 = vmatpush.bf16.msra.mxu0 %v607
    %782 = vmatpush.bf16.msra.mxu0 %v603
    %783 = vmatpush.bf16.msra.mxu0 %v599
    %784 = vmatpush.bf16.msra.mxu0 %v595
    %785 = vmatpush.bf16.msra.mxu0 %v591
    %786 = vmatpush.bf16.msra.mxu0 %v587
    %787 = vmatmul.bf16.gmra.mxu0 %v770
    %v788 = vpop.f32.mrf.mxu0
    %v789 = vadd.f32 0.0, %v788
    %v790 = vpop.f32.mrf.mxu0
    %791 = vdwg.mxu0
    %792 = vmatpush.bf16.msra.mxu0 %v616
    %793 = vmatpush.bf16.msra.mxu0 %v612
    %794 = vmatpush.bf16.msra.mxu0 %v608
    %795 = vmatpush.bf16.msra.mxu0 %v604
    %796 = vmatpush.bf16.msra.mxu0 %v600
    %797 = vmatpush.bf16.msra.mxu0 %v596
    %798 = vmatpush.bf16.msra.mxu0 %v592
    %799 = vmatpush.bf16.msra.mxu0 %v588
    %800 = vmatmul.bf16.gmra.mxu0 %v770
    %v801 = vpop.f32.mrf.mxu0
    %v802 = vadd.f32 0.0, %v801
    %v803 = vpop.f32.mrf.mxu0
    %804 = vdwg.mxu0
    %805 = vmatpush.bf16.msra.mxu0 %v617
    %806 = vmatpush.bf16.msra.mxu0 %v613
    %807 = vmatpush.bf16.msra.mxu0 %v609
    %808 = vmatpush.bf16.msra.mxu0 %v605
    %809 = vmatpush.bf16.msra.mxu0 %v601
    %810 = vmatpush.bf16.msra.mxu0 %v597
    %811 = vmatpush.bf16.msra.mxu0 %v593
    %812 = vmatpush.bf16.msra.mxu0 %v589
    %813 = vmatmul.bf16.gmra.mxu0 %v770
    %v814 = vpop.f32.mrf.mxu0
    %v815 = vadd.f32 0.0, %v814
    %v816 = vpop.f32.mrf.mxu0
    %817 = vdwg.mxu0
    %818 = vmatpush.bf16.msra.mxu0 %v618
    %819 = vmatpush.bf16.msra.mxu0 %v614
    %820 = vmatpush.bf16.msra.mxu0 %v610
    %821 = vmatpush.bf16.msra.mxu0 %v606
    %822 = vmatpush.bf16.msra.mxu0 %v602
    %823 = vmatpush.bf16.msra.mxu0 %v598
    %824 = vmatpush.bf16.msra.mxu0 %v594
    %825 = vmatpush.bf16.msra.mxu0 %v590
    %826 = vmatmul.bf16.gmra.mxu0 %v770
    %v827 = vpop.f32.mrf.mxu0
    %v828 = vadd.f32 0.0, %v827
    %v829 = vpop.f32.mrf.mxu0
    %830 = vdwg.mxu0
    %v831 = vadd.f32 %v775, %v789
    %v832 = vadd.f32 %v776, %v802
    %v833 = vadd.f32 %v777, %v815
    %v834 = vadd.f32 %v778, %v828
    %v835 = vxor.u32 %v831, 2147483648
    %v836 = vmul.f32 %v835, 1.442695
    %v837 = vpow.pop %v836
    %v838 = vadd.f32 %v837, 1.0
    %v839 = vrcp.pop %v838
    %v840 = vmul.f32 %v838, %v839
    %v841 = vsub.f32 1.0, %v840
    %v842 = vmul.f32 %v839, %v841
    %v843 = vadd.f32 %v839, %v842
    %vm844 = vweird.f32 %v838
    %vm845 = vweird.f32 %v839
    %vm846 = vmor %vm844, %vm845
    %v847 = vsel %vm846, %v839, %v843
    %v848 = vand.u32 2147483647, %v838
    %vm849 = vcmp.eq.f32.partialorder %v848, 8.507059e+37
    %v850 = vand.u32 %v838, 2147483648
    %v851 = vor.u32 1.1754944e-38, %v850
    %v852 = vsel %vm849, %v851, %v847
    %v853 = vmul.f32 1.0, %v852
    %v854 = vxor.u32 %v832, 2147483648
    %v855 = vmul.f32 %v854, 1.442695
    %v856 = vpow.pop %v855
    %v857 = vadd.f32 %v856, 1.0
    %v858 = vrcp.pop %v857
    %v859 = vmul.f32 %v857, %v858
    %v860 = vsub.f32 1.0, %v859
    %v861 = vmul.f32 %v858, %v860
    %v862 = vadd.f32 %v858, %v861
    %vm863 = vweird.f32 %v857
    %vm864 = vweird.f32 %v858
    %vm865 = vmor %vm863, %vm864
    %v866 = vsel %vm865, %v858, %v862
    %v867 = vand.u32 2147483647, %v857
    %vm868 = vcmp.eq.f32.partialorder %v867, 8.507059e+37
    %v869 = vand.u32 %v857, 2147483648
    %v870 = vor.u32 1.1754944e-38, %v869
    %v871 = vsel %vm868, %v870, %v866
    %v872 = vmul.f32 1.0, %v871
    %v873 = vtanh.pop %v833
    %v874 = vxor.u32 %v834, 2147483648
    %v875 = vmul.f32 %v874, 1.442695
    %v876 = vpow.pop %v875
    %v877 = vadd.f32 %v876, 1.0
    %v878 = vrcp.pop %v877
    %v879 = vmul.f32 %v877, %v878
    %v880 = vsub.f32 1.0, %v879
    %v881 = vmul.f32 %v878, %v880
    %v882 = vadd.f32 %v878, %v881
    %vm883 = vweird.f32 %v877
    %vm884 = vweird.f32 %v878
    %vm885 = vmor %vm883, %vm884
    %v886 = vsel %vm885, %v878, %v882
    %v887 = vand.u32 2147483647, %v877
    %vm888 = vcmp.eq.f32.partialorder %v887, 8.507059e+37
    %v889 = vand.u32 %v877, 2147483648
    %v890 = vor.u32 1.1754944e-38, %v889
    %v891 = vsel %vm888, %v890, %v886
    %v892 = vmul.f32 1.0, %v891
    %v893 = vmul.f32 %v872, %v767
    %v894 = vmul.f32 %v853, %v873
    %v895 = vadd.f32 %v893, %v894
    %v896 = vtanh.pop %v895
    %v897 = vmul.f32 %v892, %v896
    %v898 = vpack.c.bf16 %v897, %v897
    %s899 = scalar_lea.vmem [#allocation3], 4
    %900 = vst [vmem:[%s899] sm:$0xf] %v898
    %s901 = smul.u32 2, 4
    %s902 = smul.addr %s901, 8
    %s903 = scalar_lea.vmem [#allocation2], %s902
    %v904 = vld [vmem:[%s903] sm:$0xff]
    %v905 = vld [vmem:[%s903 + $0x8] sm:$0xff]
    %v906 = vld [vmem:[%s903 + $0x10] sm:$0xff]
    %v907 = vld [vmem:[%s903 + $0x18] sm:$0xff]
    %908 = vmatpush.bf16.msra.mxu0 %v615
    %909 = vmatpush.bf16.msra.mxu0 %v611
    %910 = vmatpush.bf16.msra.mxu0 %v607
    %911 = vmatpush.bf16.msra.mxu0 %v603
    %912 = vmatpush.bf16.msra.mxu0 %v599
    %913 = vmatpush.bf16.msra.mxu0 %v595
    %914 = vmatpush.bf16.msra.mxu0 %v591
    %915 = vmatpush.bf16.msra.mxu0 %v587
    %916 = vmatmul.bf16.gmra.mxu0 %v898
    %v917 = vpop.f32.mrf.mxu0
    %v918 = vadd.f32 0.0, %v917
    %v919 = vpop.f32.mrf.mxu0
    %920 = vdwg.mxu0
    %921 = vmatpush.bf16.msra.mxu0 %v616
    %922 = vmatpush.bf16.msra.mxu0 %v612
    %923 = vmatpush.bf16.msra.mxu0 %v608
    %924 = vmatpush.bf16.msra.mxu0 %v604
    %925 = vmatpush.bf16.msra.mxu0 %v600
    %926 = vmatpush.bf16.msra.mxu0 %v596
    %927 = vmatpush.bf16.msra.mxu0 %v592
    %928 = vmatpush.bf16.msra.mxu0 %v588
    %929 = vmatmul.bf16.gmra.mxu0 %v898
    %v930 = vpop.f32.mrf.mxu0
    %v931 = vadd.f32 0.0, %v930
    %v932 = vpop.f32.mrf.mxu0
    %933 = vdwg.mxu0
    %934 = vmatpush.bf16.msra.mxu0 %v617
    %935 = vmatpush.bf16.msra.mxu0 %v613
    %936 = vmatpush.bf16.msra.mxu0 %v609
    %937 = vmatpush.bf16.msra.mxu0 %v605
    %938 = vmatpush.bf16.msra.mxu0 %v601
    %939 = vmatpush.bf16.msra.mxu0 %v597
    %940 = vmatpush.bf16.msra.mxu0 %v593
    %941 = vmatpush.bf16.msra.mxu0 %v589
    %942 = vmatmul.bf16.gmra.mxu0 %v898
    %v943 = vpop.f32.mrf.mxu0
    %v944 = vadd.f32 0.0, %v943
    %v945 = vpop.f32.mrf.mxu0
    %946 = vdwg.mxu0
    %947 = vmatpush.bf16.msra.mxu0 %v618
    %948 = vmatpush.bf16.msra.mxu0 %v614
    %949 = vmatpush.bf16.msra.mxu0 %v610
    %950 = vmatpush.bf16.msra.mxu0 %v606
    %951 = vmatpush.bf16.msra.mxu0 %v602
    %952 = vmatpush.bf16.msra.mxu0 %v598
    %953 = vmatpush.bf16.msra.mxu0 %v594
    %954 = vmatpush.bf16.msra.mxu0 %v590
    %955 = vmatmul.bf16.gmra.mxu0 %v898
    %v956 = vpop.f32.mrf.mxu0
    %v957 = vadd.f32 0.0, %v956
    %v958 = vpop.f32.mrf.mxu0
    %959 = vdwg.mxu0
    %v960 = vadd.f32 %v904, %v918
    %v961 = vadd.f32 %v905, %v931
    %v962 = vadd.f32 %v906, %v944
    %v963 = vadd.f32 %v907, %v957
    %v964 = vxor.u32 %v960, 2147483648
    %v965 = vmul.f32 %v964, 1.442695
    %v966 = vpow.pop %v965
    %v967 = vadd.f32 %v966, 1.0
    %v968 = vrcp.pop %v967
    %v969 = vmul.f32 %v967, %v968
    %v970 = vsub.f32 1.0, %v969
    %v971 = vmul.f32 %v968, %v970
    %v972 = vadd.f32 %v968, %v971
    %vm973 = vweird.f32 %v967
    %vm974 = vweird.f32 %v968
    %vm975 = vmor %vm973, %vm974
    %v976 = vsel %vm975, %v968, %v972
    %v977 = vand.u32 2147483647, %v967
    %vm978 = vcmp.eq.f32.partialorder %v977, 8.507059e+37
    %v979 = vand.u32 %v967, 2147483648
    %v980 = vor.u32 1.1754944e-38, %v979
    %v981 = vsel %vm978, %v980, %v976
    %v982 = vmul.f32 1.0, %v981
    %v983 = vxor.u32 %v961, 2147483648
    %v984 = vmul.f32 %v983, 1.442695
    %v985 = vpow.pop %v984
    %v986 = vadd.f32 %v985, 1.0
    %v987 = vrcp.pop %v986
    %v988 = vmul.f32 %v986, %v987
    %v989 = vsub.f32 1.0, %v988
    %v990 = vmul.f32 %v987, %v989
    %v991 = vadd.f32 %v987, %v990
    %vm992 = vweird.f32 %v986
    %vm993 = vweird.f32 %v987
    %vm994 = vmor %vm992, %vm993
    %v995 = vsel %vm994, %v987, %v991
    %v996 = vand.u32 2147483647, %v986
    %vm997 = vcmp.eq.f32.partialorder %v996, 8.507059e+37
    %v998 = vand.u32 %v986, 2147483648
    %v999 = vor.u32 1.1754944e-38, %v998
    %v1000 = vsel %vm997, %v999, %v995
    %v1001 = vmul.f32 1.0, %v1000
    %v1002 = vtanh.pop %v962
    %v1003 = vxor.u32 %v963, 2147483648
    %v1004 = vmul.f32 %v1003, 1.442695
    %v1005 = vpow.pop %v1004
    %v1006 = vadd.f32 %v1005, 1.0
    %v1007 = vrcp.pop %v1006
    %v1008 = vmul.f32 %v1006, %v1007
    %v1009 = vsub.f32 1.0, %v1008
    %v1010 = vmul.f32 %v1007, %v1009
    %v1011 = vadd.f32 %v1007, %v1010
    %vm1012 = vweird.f32 %v1006
    %vm1013 = vweird.f32 %v1007
    %vm1014 = vmor %vm1012, %vm1013
    %v1015 = vsel %vm1014, %v1007, %v1011
    %v1016 = vand.u32 2147483647, %v1006
    %vm1017 = vcmp.eq.f32.partialorder %v1016, 8.507059e+37
    %v1018 = vand.u32 %v1006, 2147483648
    %v1019 = vor.u32 1.1754944e-38, %v1018
    %v1020 = vsel %vm1017, %v1019, %v1015
    %v1021 = vmul.f32 1.0, %v1020
    %v1022 = vmul.f32 %v1001, %v895
    %v1023 = vmul.f32 %v982, %v1002
    %v1024 = vadd.f32 %v1022, %v1023
    %v1025 = vtanh.pop %v1024
    %v1026 = vmul.f32 %v1021, %v1025
    %v1027 = vpack.c.bf16 %v1026, %v1026
    %s1028 = scalar_lea.vmem [#allocation3], 8
    %1029 = vst [vmem:[%s1028] sm:$0xf] %v1027
    %s1030 = smul.u32 3, 4
    %s1031 = smul.addr %s1030, 8
    %s1032 = scalar_lea.vmem [#allocation2], %s1031
    %v1033 = vld [vmem:[%s1032] sm:$0xff]
    %v1034 = vld [vmem:[%s1032 + $0x8] sm:$0xff]
    %v1035 = vld [vmem:[%s1032 + $0x10] sm:$0xff]
    %v1036 = vld [vmem:[%s1032 + $0x18] sm:$0xff]
    %1037 = vmatpush.bf16.msra.mxu0 %v615
    %1038 = vmatpush.bf16.msra.mxu0 %v611
    %1039 = vmatpush.bf16.msra.mxu0 %v607
    %1040 = vmatpush.bf16.msra.mxu0 %v603
    %1041 = vmatpush.bf16.msra.mxu0 %v599
    %1042 = vmatpush.bf16.msra.mxu0 %v595
    %1043 = vmatpush.bf16.msra.mxu0 %v591
    %1044 = vmatpush.bf16.msra.mxu0 %v587
    %1045 = vmatmul.bf16.gmra.mxu0 %v1027
    %v1046 = vpop.f32.mrf.mxu0
    %v1047 = vadd.f32 0.0, %v1046
    %v1048 = vpop.f32.mrf.mxu0
    %1049 = vdwg.mxu0
    %1050 = vmatpush.bf16.msra.mxu0 %v616
    %1051 = vmatpush.bf16.msra.mxu0 %v612
    %1052 = vmatpush.bf16.msra.mxu0 %v608
    %1053 = vmatpush.bf16.msra.mxu0 %v604
    %1054 = vmatpush.bf16.msra.mxu0 %v600
    %1055 = vmatpush.bf16.msra.mxu0 %v596
    %1056 = vmatpush.bf16.msra.mxu0 %v592
    %1057 = vmatpush.bf16.msra.mxu0 %v588
    %1058 = vmatmul.bf16.gmra.mxu0 %v1027
    %v1059 = vpop.f32.mrf.mxu0
    %v1060 = vadd.f32 0.0, %v1059
    %v1061 = vpop.f32.mrf.mxu0
    %1062 = vdwg.mxu0
    %1063 = vmatpush.bf16.msra.mxu0 %v617
    %1064 = vmatpush.bf16.msra.mxu0 %v613
    %1065 = vmatpush.bf16.msra.mxu0 %v609
    %1066 = vmatpush.bf16.msra.mxu0 %v605
    %1067 = vmatpush.bf16.msra.mxu0 %v601
    %1068 = vmatpush.bf16.msra.mxu0 %v597
    %1069 = vmatpush.bf16.msra.mxu0 %v593
    %1070 = vmatpush.bf16.msra.mxu0 %v589
    %1071 = vmatmul.bf16.gmra.mxu0 %v1027
    %v1072 = vpop.f32.mrf.mxu0
    %v1073 = vadd.f32 0.0, %v1072
    %v1074 = vpop.f32.mrf.mxu0
    %1075 = vdwg.mxu0
    %1076 = vmatpush.bf16.msra.mxu0 %v618
    %1077 = vmatpush.bf16.msra.mxu0 %v614
    %1078 = vmatpush.bf16.msra.mxu0 %v610
    %1079 = vmatpush.bf16.msra.mxu0 %v606
    %1080 = vmatpush.bf16.msra.mxu0 %v602
    %1081 = vmatpush.bf16.msra.mxu0 %v598
    %1082 = vmatpush.bf16.msra.mxu0 %v594
    %1083 = vmatpush.bf16.msra.mxu0 %v590
    %1084 = vmatmul.bf16.gmra.mxu0 %v1027
    %v1085 = vpop.f32.mrf.mxu0
    %v1086 = vadd.f32 0.0, %v1085
    %v1087 = vpop.f32.mrf.mxu0
    %1088 = vdwg.mxu0
    %v1089 = vadd.f32 %v1033, %v1047
    %v1090 = vadd.f32 %v1034, %v1060
    %v1091 = vadd.f32 %v1035, %v1073
    %v1092 = vadd.f32 %v1036, %v1086
    %v1093 = vxor.u32 %v1089, 2147483648
    %v1094 = vmul.f32 %v1093, 1.442695
    %v1095 = vpow.pop %v1094
    %v1096 = vadd.f32 %v1095, 1.0
    %v1097 = vrcp.pop %v1096
    %v1098 = vmul.f32 %v1096, %v1097
    %v1099 = vsub.f32 1.0, %v1098
    %v1100 = vmul.f32 %v1097, %v1099
    %v1101 = vadd.f32 %v1097, %v1100
    %vm1102 = vweird.f32 %v1096
    %vm1103 = vweird.f32 %v1097
    %vm1104 = vmor %vm1102, %vm1103
    %v1105 = vsel %vm1104, %v1097, %v1101
    %v1106 = vand.u32 2147483647, %v1096
    %vm1107 = vcmp.eq.f32.partialorder %v1106, 8.507059e+37
    %v1108 = vand.u32 %v1096, 2147483648
    %v1109 = vor.u32 1.1754944e-38, %v1108
    %v1110 = vsel %vm1107, %v1109, %v1105
    %v1111 = vmul.f32 1.0, %v1110
    %v1112 = vxor.u32 %v1090, 2147483648
    %v1113 = vmul.f32 %v1112, 1.442695
    %v1114 = vpow.pop %v1113
    %v1115 = vadd.f32 %v1114, 1.0
    %v1116 = vrcp.pop %v1115
    %v1117 = vmul.f32 %v1115, %v1116
    %v1118 = vsub.f32 1.0, %v1117
    %v1119 = vmul.f32 %v1116, %v1118
    %v1120 = vadd.f32 %v1116, %v1119
    %vm1121 = vweird.f32 %v1115
    %vm1122 = vweird.f32 %v1116
    %vm1123 = vmor %vm1121, %vm1122
    %v1124 = vsel %vm1123, %v1116, %v1120
    %v1125 = vand.u32 2147483647, %v1115
    %vm1126 = vcmp.eq.f32.partialorder %v1125, 8.507059e+37
    %v1127 = vand.u32 %v1115, 2147483648
    %v1128 = vor.u32 1.1754944e-38, %v1127
    %v1129 = vsel %vm1126, %v1128, %v1124
    %v1130 = vmul.f32 1.0, %v1129
    %v1131 = vtanh.pop %v1091
    %v1132 = vxor.u32 %v1092, 2147483648
    %v1133 = vmul.f32 %v1132, 1.442695
    %v1134 = vpow.pop %v1133
    %v1135 = vadd.f32 %v1134, 1.0
    %v1136 = vrcp.pop %v1135
    %v1137 = vmul.f32 %v1135, %v1136
    %v1138 = vsub.f32 1.0, %v1137
    %v1139 = vmul.f32 %v1136, %v1138
    %v1140 = vadd.f32 %v1136, %v1139
    %vm1141 = vweird.f32 %v1135
    %vm1142 = vweird.f32 %v1136
    %vm1143 = vmor %vm1141, %vm1142
    %v1144 = vsel %vm1143, %v1136, %v1140
    %v1145 = vand.u32 2147483647, %v1135
    %vm1146 = vcmp.eq.f32.partialorder %v1145, 8.507059e+37
    %v1147 = vand.u32 %v1135, 2147483648
    %v1148 = vor.u32 1.1754944e-38, %v1147
    %v1149 = vsel %vm1146, %v1148, %v1144
    %v1150 = vmul.f32 1.0, %v1149
    %v1151 = vmul.f32 %v1130, %v1024
    %v1152 = vmul.f32 %v1111, %v1131
    %v1153 = vadd.f32 %v1151, %v1152
    %v1154 = vtanh.pop %v1153
    %v1155 = vmul.f32 %v1150, %v1154
    %v1156 = vpack.c.bf16 %v1155, %v1155
    %s1157 = scalar_lea.vmem [#allocation3], 12
    %1158 = vst [vmem:[%s1157] sm:$0xf] %v1156
    %s1159 = smul.u32 4, 4
    %s1160 = smul.addr %s1159, 8
    %s1161 = scalar_lea.vmem [#allocation2], %s1160
    %v1162 = vld [vmem:[%s1161] sm:$0xff]
    %v1163 = vld [vmem:[%s1161 + $0x8] sm:$0xff]
    %v1164 = vld [vmem:[%s1161 + $0x10] sm:$0xff]
    %v1165 = vld [vmem:[%s1161 + $0x18] sm:$0xff]
    %1166 = vmatpush.bf16.msra.mxu0 %v615
    %1167 = vmatpush.bf16.msra.mxu0 %v611
    %1168 = vmatpush.bf16.msra.mxu0 %v607
    %1169 = vmatpush.bf16.msra.mxu0 %v603
    %1170 = vmatpush.bf16.msra.mxu0 %v599
    %1171 = vmatpush.bf16.msra.mxu0 %v595
    %1172 = vmatpush.bf16.msra.mxu0 %v591
    %1173 = vmatpush.bf16.msra.mxu0 %v587
    %1174 = vmatmul.bf16.gmra.mxu0 %v1156
    %v1175 = vpop.f32.mrf.mxu0
    %v1176 = vadd.f32 0.0, %v1175
    %v1177 = vpop.f32.mrf.mxu0
    %1178 = vdwg.mxu0
    %1179 = vmatpush.bf16.msra.mxu0 %v616
    %1180 = vmatpush.bf16.msra.mxu0 %v612
    %1181 = vmatpush.bf16.msra.mxu0 %v608
    %1182 = vmatpush.bf16.msra.mxu0 %v604
    %1183 = vmatpush.bf16.msra.mxu0 %v600
    %1184 = vmatpush.bf16.msra.mxu0 %v596
    %1185 = vmatpush.bf16.msra.mxu0 %v592
    %1186 = vmatpush.bf16.msra.mxu0 %v588
    %1187 = vmatmul.bf16.gmra.mxu0 %v1156
    %v1188 = vpop.f32.mrf.mxu0
    %v1189 = vadd.f32 0.0, %v1188
    %v1190 = vpop.f32.mrf.mxu0
    %1191 = vdwg.mxu0
    %1192 = vmatpush.bf16.msra.mxu0 %v617
    %1193 = vmatpush.bf16.msra.mxu0 %v613
    %1194 = vmatpush.bf16.msra.mxu0 %v609
    %1195 = vmatpush.bf16.msra.mxu0 %v605
    %1196 = vmatpush.bf16.msra.mxu0 %v601
    %1197 = vmatpush.bf16.msra.mxu0 %v597
    %1198 = vmatpush.bf16.msra.mxu0 %v593
    %1199 = vmatpush.bf16.msra.mxu0 %v589
    %1200 = vmatmul.bf16.gmra.mxu0 %v1156
    %v1201 = vpop.f32.mrf.mxu0
    %v1202 = vadd.f32 0.0, %v1201
    %v1203 = vpop.f32.mrf.mxu0
    %1204 = vdwg.mxu0
    %1205 = vmatpush.bf16.msra.mxu0 %v618
    %1206 = vmatpush.bf16.msra.mxu0 %v614
    %1207 = vmatpush.bf16.msra.mxu0 %v610
    %1208 = vmatpush.bf16.msra.mxu0 %v606
    %1209 = vmatpush.bf16.msra.mxu0 %v602
    %1210 = vmatpush.bf16.msra.mxu0 %v598
    %1211 = vmatpush.bf16.msra.mxu0 %v594
    %1212 = vmatpush.bf16.msra.mxu0 %v590
    %1213 = vmatmul.bf16.gmra.mxu0 %v1156
    %v1214 = vpop.f32.mrf.mxu0
    %v1215 = vadd.f32 0.0, %v1214
    %v1216 = vpop.f32.mrf.mxu0
    %1217 = vdwg.mxu0
    %v1218 = vadd.f32 %v1162, %v1176
    %v1219 = vadd.f32 %v1163, %v1189
    %v1220 = vadd.f32 %v1164, %v1202
    %v1221 = vadd.f32 %v1165, %v1215
    %v1222 = vxor.u32 %v1218, 2147483648
    %v1223 = vmul.f32 %v1222, 1.442695
    %v1224 = vpow.pop %v1223
    %v1225 = vadd.f32 %v1224, 1.0
    %v1226 = vrcp.pop %v1225
    %v1227 = vmul.f32 %v1225, %v1226
    %v1228 = vsub.f32 1.0, %v1227
    %v1229 = vmul.f32 %v1226, %v1228
    %v1230 = vadd.f32 %v1226, %v1229
    %vm1231 = vweird.f32 %v1225
    %vm1232 = vweird.f32 %v1226
    %vm1233 = vmor %vm1231, %vm1232
    %v1234 = vsel %vm1233, %v1226, %v1230
    %v1235 = vand.u32 2147483647, %v1225
    %vm1236 = vcmp.eq.f32.partialorder %v1235, 8.507059e+37
    %v1237 = vand.u32 %v1225, 2147483648
    %v1238 = vor.u32 1.1754944e-38, %v1237
    %v1239 = vsel %vm1236, %v1238, %v1234
    %v1240 = vmul.f32 1.0, %v1239
    %v1241 = vxor.u32 %v1219, 2147483648
    %v1242 = vmul.f32 %v1241, 1.442695
    %v1243 = vpow.pop %v1242
    %v1244 = vadd.f32 %v1243, 1.0
    %v1245 = vrcp.pop %v1244
    %v1246 = vmul.f32 %v1244, %v1245
    %v1247 = vsub.f32 1.0, %v1246
    %v1248 = vmul.f32 %v1245, %v1247
    %v1249 = vadd.f32 %v1245, %v1248
    %vm1250 = vweird.f32 %v1244
    %vm1251 = vweird.f32 %v1245
    %vm1252 = vmor %vm1250, %vm1251
    %v1253 = vsel %vm1252, %v1245, %v1249
    %v1254 = vand.u32 2147483647, %v1244
    %vm1255 = vcmp.eq.f32.partialorder %v1254, 8.507059e+37
    %v1256 = vand.u32 %v1244, 2147483648
    %v1257 = vor.u32 1.1754944e-38, %v1256
    %v1258 = vsel %vm1255, %v1257, %v1253
    %v1259 = vmul.f32 1.0, %v1258
    %v1260 = vtanh.pop %v1220
    %v1261 = vxor.u32 %v1221, 2147483648
    %v1262 = vmul.f32 %v1261, 1.442695
    %v1263 = vpow.pop %v1262
    %v1264 = vadd.f32 %v1263, 1.0
    %v1265 = vrcp.pop %v1264
    %v1266 = vmul.f32 %v1264, %v1265
    %v1267 = vsub.f32 1.0, %v1266
    %v1268 = vmul.f32 %v1265, %v1267
    %v1269 = vadd.f32 %v1265, %v1268
    %vm1270 = vweird.f32 %v1264
    %vm1271 = vweird.f32 %v1265
    %vm1272 = vmor %vm1270, %vm1271
    %v1273 = vsel %vm1272, %v1265, %v1269
    %v1274 = vand.u32 2147483647, %v1264
    %vm1275 = vcmp.eq.f32.partialorder %v1274, 8.507059e+37
    %v1276 = vand.u32 %v1264, 2147483648
    %v1277 = vor.u32 1.1754944e-38, %v1276
    %v1278 = vsel %vm1275, %v1277, %v1273
    %v1279 = vmul.f32 1.0, %v1278
    %v1280 = vmul.f32 %v1259, %v1153
    %v1281 = vmul.f32 %v1240, %v1260
    %v1282 = vadd.f32 %v1280, %v1281
    %v1283 = vtanh.pop %v1282
    %v1284 = vmul.f32 %v1279, %v1283
    %v1285 = vpack.c.bf16 %v1284, %v1284
    %s1286 = scalar_lea.vmem [#allocation3], 16
    %1287 = vst [vmem:[%s1286] sm:$0xf] %v1285
    %s1288 = smul.u32 5, 4
    %s1289 = smul.addr %s1288, 8
    %s1290 = scalar_lea.vmem [#allocation2], %s1289
    %v1291 = vld [vmem:[%s1290] sm:$0xff]
    %v1292 = vld [vmem:[%s1290 + $0x8] sm:$0xff]
    %v1293 = vld [vmem:[%s1290 + $0x10] sm:$0xff]
    %v1294 = vld [vmem:[%s1290 + $0x18] sm:$0xff]
    %1295 = vmatpush.bf16.msra.mxu0 %v615
    %1296 = vmatpush.bf16.msra.mxu0 %v611
    %1297 = vmatpush.bf16.msra.mxu0 %v607
    %1298 = vmatpush.bf16.msra.mxu0 %v603
    %1299 = vmatpush.bf16.msra.mxu0 %v599
    %1300 = vmatpush.bf16.msra.mxu0 %v595
    %1301 = vmatpush.bf16.msra.mxu0 %v591
    %1302 = vmatpush.bf16.msra.mxu0 %v587
    %1303 = vmatmul.bf16.gmra.mxu0 %v1285
    %v1304 = vpop.f32.mrf.mxu0
    %v1305 = vadd.f32 0.0, %v1304
    %v1306 = vpop.f32.mrf.mxu0
    %1307 = vdwg.mxu0
    %1308 = vmatpush.bf16.msra.mxu0 %v616
    %1309 = vmatpush.bf16.msra.mxu0 %v612
    %1310 = vmatpush.bf16.msra.mxu0 %v608
    %1311 = vmatpush.bf16.msra.mxu0 %v604
    %1312 = vmatpush.bf16.msra.mxu0 %v600
    %1313 = vmatpush.bf16.msra.mxu0 %v596
    %1314 = vmatpush.bf16.msra.mxu0 %v592
    %1315 = vmatpush.bf16.msra.mxu0 %v588
    %1316 = vmatmul.bf16.gmra.mxu0 %v1285
    %v1317 = vpop.f32.mrf.mxu0
    %v1318 = vadd.f32 0.0, %v1317
    %v1319 = vpop.f32.mrf.mxu0
    %1320 = vdwg.mxu0
    %1321 = vmatpush.bf16.msra.mxu0 %v617
    %1322 = vmatpush.bf16.msra.mxu0 %v613
    %1323 = vmatpush.bf16.msra.mxu0 %v609
    %1324 = vmatpush.bf16.msra.mxu0 %v605
    %1325 = vmatpush.bf16.msra.mxu0 %v601
    %1326 = vmatpush.bf16.msra.mxu0 %v597
    %1327 = vmatpush.bf16.msra.mxu0 %v593
    %1328 = vmatpush.bf16.msra.mxu0 %v589
    %1329 = vmatmul.bf16.gmra.mxu0 %v1285
    %v1330 = vpop.f32.mrf.mxu0
    %v1331 = vadd.f32 0.0, %v1330
    %v1332 = vpop.f32.mrf.mxu0
    %1333 = vdwg.mxu0
    %1334 = vmatpush.bf16.msra.mxu0 %v618
    %1335 = vmatpush.bf16.msra.mxu0 %v614
    %1336 = vmatpush.bf16.msra.mxu0 %v610
    %1337 = vmatpush.bf16.msra.mxu0 %v606
    %1338 = vmatpush.bf16.msra.mxu0 %v602
    %1339 = vmatpush.bf16.msra.mxu0 %v598
    %1340 = vmatpush.bf16.msra.mxu0 %v594
    %1341 = vmatpush.bf16.msra.mxu0 %v590
    %1342 = vmatmul.bf16.gmra.mxu0 %v1285
    %v1343 = vpop.f32.mrf.mxu0
    %v1344 = vadd.f32 0.0, %v1343
    %v1345 = vpop.f32.mrf.mxu0
    %1346 = vdwg.mxu0
    %v1347 = vadd.f32 %v1291, %v1305
    %v1348 = vadd.f32 %v1292, %v1318
    %v1349 = vadd.f32 %v1293, %v1331
    %v1350 = vadd.f32 %v1294, %v1344
    %v1351 = vxor.u32 %v1347, 2147483648
    %v1352 = vmul.f32 %v1351, 1.442695
    %v1353 = vpow.pop %v1352
    %v1354 = vadd.f32 %v1353, 1.0
    %v1355 = vrcp.pop %v1354
    %v1356 = vmul.f32 %v1354, %v1355
    %v1357 = vsub.f32 1.0, %v1356
    %v1358 = vmul.f32 %v1355, %v1357
    %v1359 = vadd.f32 %v1355, %v1358
    %vm1360 = vweird.f32 %v1354
    %vm1361 = vweird.f32 %v1355
    %vm1362 = vmor %vm1360, %vm1361
    %v1363 = vsel %vm1362, %v1355, %v1359
    %v1364 = vand.u32 2147483647, %v1354
    %vm1365 = vcmp.eq.f32.partialorder %v1364, 8.507059e+37
    %v1366 = vand.u32 %v1354, 2147483648
    %v1367 = vor.u32 1.1754944e-38, %v1366
    %v1368 = vsel %vm1365, %v1367, %v1363
    %v1369 = vmul.f32 1.0, %v1368
    %v1370 = vxor.u32 %v1348, 2147483648
    %v1371 = vmul.f32 %v1370, 1.442695
    %v1372 = vpow.pop %v1371
    %v1373 = vadd.f32 %v1372, 1.0
    %v1374 = vrcp.pop %v1373
    %v1375 = vmul.f32 %v1373, %v1374
    %v1376 = vsub.f32 1.0, %v1375
    %v1377 = vmul.f32 %v1374, %v1376
    %v1378 = vadd.f32 %v1374, %v1377
    %vm1379 = vweird.f32 %v1373
    %vm1380 = vweird.f32 %v1374
    %vm1381 = vmor %vm1379, %vm1380
    %v1382 = vsel %vm1381, %v1374, %v1378
    %v1383 = vand.u32 2147483647, %v1373
    %vm1384 = vcmp.eq.f32.partialorder %v1383, 8.507059e+37
    %v1385 = vand.u32 %v1373, 2147483648
    %v1386 = vor.u32 1.1754944e-38, %v1385
    %v1387 = vsel %vm1384, %v1386, %v1382
    %v1388 = vmul.f32 1.0, %v1387
    %v1389 = vtanh.pop %v1349
    %v1390 = vxor.u32 %v1350, 2147483648
    %v1391 = vmul.f32 %v1390, 1.442695
    %v1392 = vpow.pop %v1391
    %v1393 = vadd.f32 %v1392, 1.0
    %v1394 = vrcp.pop %v1393
    %v1395 = vmul.f32 %v1393, %v1394
    %v1396 = vsub.f32 1.0, %v1395
    %v1397 = vmul.f32 %v1394, %v1396
    %v1398 = vadd.f32 %v1394, %v1397
    %vm1399 = vweird.f32 %v1393
    %vm1400 = vweird.f32 %v1394
    %vm1401 = vmor %vm1399, %vm1400
    %v1402 = vsel %vm1401, %v1394, %v1398
    %v1403 = vand.u32 2147483647, %v1393
    %vm1404 = vcmp.eq.f32.partialorder %v1403, 8.507059e+37
    %v1405 = vand.u32 %v1393, 2147483648
    %v1406 = vor.u32 1.1754944e-38, %v1405
    %v1407 = vsel %vm1404, %v1406, %v1402
    %v1408 = vmul.f32 1.0, %v1407
    %v1409 = vmul.f32 %v1388, %v1282
    %v1410 = vmul.f32 %v1369, %v1389
    %v1411 = vadd.f32 %v1409, %v1410
    %v1412 = vtanh.pop %v1411
    %v1413 = vmul.f32 %v1408, %v1412
    %v1414 = vpack.c.bf16 %v1413, %v1413
    %s1415 = scalar_lea.vmem [#allocation3], 20
    %1416 = vst [vmem:[%s1415] sm:$0xf] %v1414
    %s1417 = smul.u32 6, 4
    %s1418 = smul.addr %s1417, 8
    %s1419 = scalar_lea.vmem [#allocation2], %s1418
    %v1420 = vld [vmem:[%s1419] sm:$0xff]
    %v1421 = vld [vmem:[%s1419 + $0x8] sm:$0xff]
    %v1422 = vld [vmem:[%s1419 + $0x10] sm:$0xff]
    %v1423 = vld [vmem:[%s1419 + $0x18] sm:$0xff]
    %1424 = vmatpush.bf16.msra.mxu0 %v615
    %1425 = vmatpush.bf16.msra.mxu0 %v611
    %1426 = vmatpush.bf16.msra.mxu0 %v607
    %1427 = vmatpush.bf16.msra.mxu0 %v603
    %1428 = vmatpush.bf16.msra.mxu0 %v599
    %1429 = vmatpush.bf16.msra.mxu0 %v595
    %1430 = vmatpush.bf16.msra.mxu0 %v591
    %1431 = vmatpush.bf16.msra.mxu0 %v587
    %1432 = vmatmul.bf16.gmra.mxu0 %v1414
    %v1433 = vpop.f32.mrf.mxu0
    %v1434 = vadd.f32 0.0, %v1433
    %v1435 = vpop.f32.mrf.mxu0
    %1436 = vdwg.mxu0
    %1437 = vmatpush.bf16.msra.mxu0 %v616
    %1438 = vmatpush.bf16.msra.mxu0 %v612
    %1439 = vmatpush.bf16.msra.mxu0 %v608
    %1440 = vmatpush.bf16.msra.mxu0 %v604
    %1441 = vmatpush.bf16.msra.mxu0 %v600
    %1442 = vmatpush.bf16.msra.mxu0 %v596
    %1443 = vmatpush.bf16.msra.mxu0 %v592
    %1444 = vmatpush.bf16.msra.mxu0 %v588
    %1445 = vmatmul.bf16.gmra.mxu0 %v1414
    %v1446 = vpop.f32.mrf.mxu0
    %v1447 = vadd.f32 0.0, %v1446
    %v1448 = vpop.f32.mrf.mxu0
    %1449 = vdwg.mxu0
    %1450 = vmatpush.bf16.msra.mxu0 %v617
    %1451 = vmatpush.bf16.msra.mxu0 %v613
    %1452 = vmatpush.bf16.msra.mxu0 %v609
    %1453 = vmatpush.bf16.msra.mxu0 %v605
    %1454 = vmatpush.bf16.msra.mxu0 %v601
    %1455 = vmatpush.bf16.msra.mxu0 %v597
    %1456 = vmatpush.bf16.msra.mxu0 %v593
    %1457 = vmatpush.bf16.msra.mxu0 %v589
    %1458 = vmatmul.bf16.gmra.mxu0 %v1414
    %v1459 = vpop.f32.mrf.mxu0
    %v1460 = vadd.f32 0.0, %v1459
    %v1461 = vpop.f32.mrf.mxu0
    %1462 = vdwg.mxu0
    %1463 = vmatpush.bf16.msra.mxu0 %v618
    %1464 = vmatpush.bf16.msra.mxu0 %v614
    %1465 = vmatpush.bf16.msra.mxu0 %v610
    %1466 = vmatpush.bf16.msra.mxu0 %v606
    %1467 = vmatpush.bf16.msra.mxu0 %v602
    %1468 = vmatpush.bf16.msra.mxu0 %v598
    %1469 = vmatpush.bf16.msra.mxu0 %v594
    %1470 = vmatpush.bf16.msra.mxu0 %v590
    %1471 = vmatmul.bf16.gmra.mxu0 %v1414
    %v1472 = vpop.f32.mrf.mxu0
    %v1473 = vadd.f32 0.0, %v1472
    %v1474 = vpop.f32.mrf.mxu0
    %1475 = vdwg.mxu0
    %v1476 = vadd.f32 %v1420, %v1434
    %v1477 = vadd.f32 %v1421, %v1447
    %v1478 = vadd.f32 %v1422, %v1460
    %v1479 = vadd.f32 %v1423, %v1473
    %v1480 = vxor.u32 %v1476, 2147483648
    %v1481 = vmul.f32 %v1480, 1.442695
    %v1482 = vpow.pop %v1481
    %v1483 = vadd.f32 %v1482, 1.0
    %v1484 = vrcp.pop %v1483
    %v1485 = vmul.f32 %v1483, %v1484
    %v1486 = vsub.f32 1.0, %v1485
    %v1487 = vmul.f32 %v1484, %v1486
    %v1488 = vadd.f32 %v1484, %v1487
    %vm1489 = vweird.f32 %v1483
    %vm1490 = vweird.f32 %v1484
    %vm1491 = vmor %vm1489, %vm1490
    %v1492 = vsel %vm1491, %v1484, %v1488
    %v1493 = vand.u32 2147483647, %v1483
    %vm1494 = vcmp.eq.f32.partialorder %v1493, 8.507059e+37
    %v1495 = vand.u32 %v1483, 2147483648
    %v1496 = vor.u32 1.1754944e-38, %v1495
    %v1497 = vsel %vm1494, %v1496, %v1492
    %v1498 = vmul.f32 1.0, %v1497
    %v1499 = vxor.u32 %v1477, 2147483648
    %v1500 = vmul.f32 %v1499, 1.442695
    %v1501 = vpow.pop %v1500
    %v1502 = vadd.f32 %v1501, 1.0
    %v1503 = vrcp.pop %v1502
    %v1504 = vmul.f32 %v1502, %v1503
    %v1505 = vsub.f32 1.0, %v1504
    %v1506 = vmul.f32 %v1503, %v1505
    %v1507 = vadd.f32 %v1503, %v1506
    %vm1508 = vweird.f32 %v1502
    %vm1509 = vweird.f32 %v1503
    %vm1510 = vmor %vm1508, %vm1509
    %v1511 = vsel %vm1510, %v1503, %v1507
    %v1512 = vand.u32 2147483647, %v1502
    %vm1513 = vcmp.eq.f32.partialorder %v1512, 8.507059e+37
    %v1514 = vand.u32 %v1502, 2147483648
    %v1515 = vor.u32 1.1754944e-38, %v1514
    %v1516 = vsel %vm1513, %v1515, %v1511
    %v1517 = vmul.f32 1.0, %v1516
    %v1518 = vtanh.pop %v1478
    %v1519 = vxor.u32 %v1479, 2147483648
    %v1520 = vmul.f32 %v1519, 1.442695
    %v1521 = vpow.pop %v1520
    %v1522 = vadd.f32 %v1521, 1.0
    %v1523 = vrcp.pop %v1522
    %v1524 = vmul.f32 %v1522, %v1523
    %v1525 = vsub.f32 1.0, %v1524
    %v1526 = vmul.f32 %v1523, %v1525
    %v1527 = vadd.f32 %v1523, %v1526
    %vm1528 = vweird.f32 %v1522
    %vm1529 = vweird.f32 %v1523
    %vm1530 = vmor %vm1528, %vm1529
    %v1531 = vsel %vm1530, %v1523, %v1527
    %v1532 = vand.u32 2147483647, %v1522
    %vm1533 = vcmp.eq.f32.partialorder %v1532, 8.507059e+37
    %v1534 = vand.u32 %v1522, 2147483648
    %v1535 = vor.u32 1.1754944e-38, %v1534
    %v1536 = vsel %vm1533, %v1535, %v1531
    %v1537 = vmul.f32 1.0, %v1536
    %v1538 = vmul.f32 %v1517, %v1411
    %v1539 = vmul.f32 %v1498, %v1518
    %v1540 = vadd.f32 %v1538, %v1539
    %v1541 = vtanh.pop %v1540
    %v1542 = vmul.f32 %v1537, %v1541
    %v1543 = vpack.c.bf16 %v1542, %v1542
    %s1544 = scalar_lea.vmem [#allocation3], 24
    %1545 = vst [vmem:[%s1544] sm:$0xf] %v1543
    %s1546 = smul.u32 7, 4
    %s1547 = smul.addr %s1546, 8
    %s1548 = scalar_lea.vmem [#allocation2], %s1547
    %v1549 = vld [vmem:[%s1548] sm:$0xff]
    %v1550 = vld [vmem:[%s1548 + $0x8] sm:$0xff]
    %v1551 = vld [vmem:[%s1548 + $0x10] sm:$0xff]
    %v1552 = vld [vmem:[%s1548 + $0x18] sm:$0xff]
    %1553 = vmatpush.bf16.msra.mxu0 %v615
    %1554 = vmatpush.bf16.msra.mxu0 %v611
    %1555 = vmatpush.bf16.msra.mxu0 %v607
    %1556 = vmatpush.bf16.msra.mxu0 %v603
    %1557 = vmatpush.bf16.msra.mxu0 %v599
    %1558 = vmatpush.bf16.msra.mxu0 %v595
    %1559 = vmatpush.bf16.msra.mxu0 %v591
    %1560 = vmatpush.bf16.msra.mxu0 %v587
    %1561 = vmatmul.bf16.gmra.mxu0 %v1543
    %v1562 = vpop.f32.mrf.mxu0
    %v1563 = vadd.f32 0.0, %v1562
    %v1564 = vpop.f32.mrf.mxu0
    %1565 = vdwg.mxu0
    %1566 = vmatpush.bf16.msra.mxu0 %v616
    %1567 = vmatpush.bf16.msra.mxu0 %v612
    %1568 = vmatpush.bf16.msra.mxu0 %v608
    %1569 = vmatpush.bf16.msra.mxu0 %v604
    %1570 = vmatpush.bf16.msra.mxu0 %v600
    %1571 = vmatpush.bf16.msra.mxu0 %v596
    %1572 = vmatpush.bf16.msra.mxu0 %v592
    %1573 = vmatpush.bf16.msra.mxu0 %v588
    %1574 = vmatmul.bf16.gmra.mxu0 %v1543
    %v1575 = vpop.f32.mrf.mxu0
    %v1576 = vadd.f32 0.0, %v1575
    %v1577 = vpop.f32.mrf.mxu0
    %1578 = vdwg.mxu0
    %1579 = vmatpush.bf16.msra.mxu0 %v617
    %1580 = vmatpush.bf16.msra.mxu0 %v613
    %1581 = vmatpush.bf16.msra.mxu0 %v609
    %1582 = vmatpush.bf16.msra.mxu0 %v605
    %1583 = vmatpush.bf16.msra.mxu0 %v601
    %1584 = vmatpush.bf16.msra.mxu0 %v597
    %1585 = vmatpush.bf16.msra.mxu0 %v593
    %1586 = vmatpush.bf16.msra.mxu0 %v589
    %1587 = vmatmul.bf16.gmra.mxu0 %v1543
    %v1588 = vpop.f32.mrf.mxu0
    %v1589 = vadd.f32 0.0, %v1588
    %v1590 = vpop.f32.mrf.mxu0
    %1591 = vdwg.mxu0
    %1592 = vmatpush.bf16.msra.mxu0 %v618
    %1593 = vmatpush.bf16.msra.mxu0 %v614
    %1594 = vmatpush.bf16.msra.mxu0 %v610
    %1595 = vmatpush.bf16.msra.mxu0 %v606
    %1596 = vmatpush.bf16.msra.mxu0 %v602
    %1597 = vmatpush.bf16.msra.mxu0 %v598
    %1598 = vmatpush.bf16.msra.mxu0 %v594
    %1599 = vmatpush.bf16.msra.mxu0 %v590
    %1600 = vmatmul.bf16.gmra.mxu0 %v1543
    %v1601 = vpop.f32.mrf.mxu0
    %v1602 = vadd.f32 0.0, %v1601
    %v1603 = vpop.f32.mrf.mxu0
    %1604 = vdwg.mxu0
    %v1605 = vadd.f32 %v1549, %v1563
    %v1606 = vadd.f32 %v1550, %v1576
    %v1607 = vadd.f32 %v1551, %v1589
    %v1608 = vadd.f32 %v1552, %v1602
    %v1609 = vxor.u32 %v1605, 2147483648
    %v1610 = vmul.f32 %v1609, 1.442695
    %v1611 = vpow.pop %v1610
    %v1612 = vadd.f32 %v1611, 1.0
    %v1613 = vrcp.pop %v1612
    %v1614 = vmul.f32 %v1612, %v1613
    %v1615 = vsub.f32 1.0, %v1614
    %v1616 = vmul.f32 %v1613, %v1615
    %v1617 = vadd.f32 %v1613, %v1616
    %vm1618 = vweird.f32 %v1612
    %vm1619 = vweird.f32 %v1613
    %vm1620 = vmor %vm1618, %vm1619
    %v1621 = vsel %vm1620, %v1613, %v1617
    %v1622 = vand.u32 2147483647, %v1612
    %vm1623 = vcmp.eq.f32.partialorder %v1622, 8.507059e+37
    %v1624 = vand.u32 %v1612, 2147483648
    %v1625 = vor.u32 1.1754944e-38, %v1624
    %v1626 = vsel %vm1623, %v1625, %v1621
    %v1627 = vmul.f32 1.0, %v1626
    %v1628 = vxor.u32 %v1606, 2147483648
    %v1629 = vmul.f32 %v1628, 1.442695
    %v1630 = vpow.pop %v1629
    %v1631 = vadd.f32 %v1630, 1.0
    %v1632 = vrcp.pop %v1631
    %v1633 = vmul.f32 %v1631, %v1632
    %v1634 = vsub.f32 1.0, %v1633
    %v1635 = vmul.f32 %v1632, %v1634
    %v1636 = vadd.f32 %v1632, %v1635
    %vm1637 = vweird.f32 %v1631
    %vm1638 = vweird.f32 %v1632
    %vm1639 = vmor %vm1637, %vm1638
    %v1640 = vsel %vm1639, %v1632, %v1636
    %v1641 = vand.u32 2147483647, %v1631
    %vm1642 = vcmp.eq.f32.partialorder %v1641, 8.507059e+37
    %v1643 = vand.u32 %v1631, 2147483648
    %v1644 = vor.u32 1.1754944e-38, %v1643
    %v1645 = vsel %vm1642, %v1644, %v1640
    %v1646 = vmul.f32 1.0, %v1645
    %v1647 = vtanh.pop %v1607
    %v1648 = vxor.u32 %v1608, 2147483648
    %v1649 = vmul.f32 %v1648, 1.442695
    %v1650 = vpow.pop %v1649
    %v1651 = vadd.f32 %v1650, 1.0
    %v1652 = vrcp.pop %v1651
    %v1653 = vmul.f32 %v1651, %v1652
    %v1654 = vsub.f32 1.0, %v1653
    %v1655 = vmul.f32 %v1652, %v1654
    %v1656 = vadd.f32 %v1652, %v1655
    %vm1657 = vweird.f32 %v1651
    %vm1658 = vweird.f32 %v1652
    %vm1659 = vmor %vm1657, %vm1658
    %v1660 = vsel %vm1659, %v1652, %v1656
    %v1661 = vand.u32 2147483647, %v1651
    %vm1662 = vcmp.eq.f32.partialorder %v1661, 8.507059e+37
    %v1663 = vand.u32 %v1651, 2147483648
    %v1664 = vor.u32 1.1754944e-38, %v1663
    %v1665 = vsel %vm1662, %v1664, %v1660
    %v1666 = vmul.f32 1.0, %v1665
    %v1667 = vmul.f32 %v1646, %v1540
    %v1668 = vmul.f32 %v1627, %v1647
    %v1669 = vadd.f32 %v1667, %v1668
    %v1670 = vtanh.pop %v1669
    %v1671 = vmul.f32 %v1666, %v1670
    %v1672 = vpack.c.bf16 %v1671, %v1671
    %s1673 = scalar_lea.vmem [#allocation3], 28
    %1674 = vst [vmem:[%s1673] sm:$0xf] %v1672
    %1675 = vst [vmem:[%s5] sm:$0xff] %v1671
    %1676 = vst [vmem:[%s6] sm:$0xff] %v1669
    %v1677 = vld [vmem:[#allocation3] sm:$0xf]
    %v1678 = vld [vmem:[#allocation3 + $0x4] sm:$0xf]
    %v1679 = vld [vmem:[#allocation3 + $0x8] sm:$0xf]
    %v1680 = vld [vmem:[#allocation3 + $0xc] sm:$0xf]
    %v1681 = vld [vmem:[#allocation3 + $0x10] sm:$0xf]
    %v1682 = vld [vmem:[#allocation3 + $0x14] sm:$0xf]
    %v1683 = vld [vmem:[#allocation3 + $0x18] sm:$0xf]
    %v1684 = vld [vmem:[#allocation3 + $0x1c] sm:$0xf]
    %v1685 = vld [vmem:[#allocation6] sm:$0xff]
    %v1686 = vld [vmem:[#allocation6 + $0x8] sm:$0xff]
    %v1687 = vld [vmem:[#allocation6 + $0x10] sm:$0xff]
    %v1688 = vld [vmem:[#allocation6 + $0x18] sm:$0xff]
    %v1689 = vld [vmem:[#allocation6 + $0x20] sm:$0xff]
    %v1690 = vld [vmem:[#allocation6 + $0x28] sm:$0xff]
    %v1691 = vld [vmem:[#allocation6 + $0x30] sm:$0xff]
    %v1692 = vld [vmem:[#allocation6 + $0x38] sm:$0xff]
    %v1693 = vld [vmem:[#allocation6 + $0x40] sm:$0xff]
    %v1694 = vld [vmem:[#allocation6 + $0x48] sm:$0xff]
    %v1695 = vld [vmem:[#allocation6 + $0x50] sm:$0xff]
    %v1696 = vld [vmem:[#allocation6 + $0x58] sm:$0xff]
    %v1697 = vld [vmem:[#allocation6 + $0x60] sm:$0xff]
    %v1698 = vld [vmem:[#allocation6 + $0x68] sm:$0xff]
    %v1699 = vld [vmem:[#allocation6 + $0x70] sm:$0xff]
    %v1700 = vld [vmem:[#allocation6 + $0x78] sm:$0xff]
    %v1701 = vld [vmem:[#allocation6 + $0x80] sm:$0xff]
    %v1702 = vld [vmem:[#allocation6 + $0x88] sm:$0xff]
    %v1703 = vld [vmem:[#allocation6 + $0x90] sm:$0xff]
    %v1704 = vld [vmem:[#allocation6 + $0x98] sm:$0xff]
    %v1705 = vld [vmem:[#allocation6 + $0xa0] sm:$0xff]
    %v1706 = vld [vmem:[#allocation6 + $0xa8] sm:$0xff]
    %v1707 = vld [vmem:[#allocation6 + $0xb0] sm:$0xff]
    %v1708 = vld [vmem:[#allocation6 + $0xb8] sm:$0xff]
    %v1709 = vld [vmem:[#allocation6 + $0xc0] sm:$0xff]
    %v1710 = vld [vmem:[#allocation6 + $0xc8] sm:$0xff]
    %v1711 = vld [vmem:[#allocation6 + $0xd0] sm:$0xff]
    %v1712 = vld [vmem:[#allocation6 + $0xd8] sm:$0xff]
    %v1713 = vld [vmem:[#allocation6 + $0xe0] sm:$0xff]
    %v1714 = vld [vmem:[#allocation6 + $0xe8] sm:$0xff]
    %v1715 = vld [vmem:[#allocation6 + $0xf0] sm:$0xff]
    %v1716 = vld [vmem:[#allocation6 + $0xf8] sm:$0xff]
    %s1717 = scalar_lea.vmem %s4, 4
    %v1718 = vld [vmem:[%s1717] sm:$0xf]
    %v1720 = vperm.slane %v1718, 0
    %v1721 = vperm.slane %v1718, 1
    %v1722 = vperm.slane %v1718, 2
    %v1723 = vperm.slane %v1718, 3
    %v1736 = vunpack.c.l.b16 %v1677
    %v1737 = vunpack.c.l.b16 %v1678
    %v1738 = vunpack.c.l.b16 %v1679
    %v1739 = vunpack.c.l.b16 %v1680
    %v1740 = vunpack.c.l.b16 %v1681
    %v1741 = vunpack.c.l.b16 %v1682
    %v1742 = vunpack.c.l.b16 %v1683
    %v1743 = vunpack.c.l.b16 %v1684
    %v1744 = vpack.c.b16 %v1737, %v1736
    %v1745 = vpack.c.b16 %v1739, %v1738
    %v1746 = vpack.c.b16 %v1741, %v1740
    %v1747 = vpack.c.b16 %v1743, %v1742
    %v1784 = vunpack.c.l.b16 %v1685
    %v1785 = vunpack.c.h.b16 %v1685
    %v1786 = vunpack.c.l.b16 %v1686
    %v1787 = vunpack.c.h.b16 %v1686
    %v1788 = vunpack.c.l.b16 %v1687
    %v1789 = vunpack.c.h.b16 %v1687
    %v1790 = vunpack.c.l.b16 %v1688
    %v1791 = vunpack.c.h.b16 %v1688
    %v1792 = vunpack.c.l.b16 %v1689
    %v1793 = vunpack.c.h.b16 %v1689
    %v1794 = vunpack.c.l.b16 %v1690
    %v1795 = vunpack.c.h.b16 %v1690
    %v1796 = vunpack.c.l.b16 %v1691
    %v1797 = vunpack.c.h.b16 %v1691
    %v1798 = vunpack.c.l.b16 %v1692
    %v1799 = vunpack.c.h.b16 %v1692
    %v1800 = vunpack.c.l.b16 %v1693
    %v1801 = vunpack.c.h.b16 %v1693
    %v1802 = vunpack.c.l.b16 %v1694
    %v1803 = vunpack.c.h.b16 %v1694
    %v1804 = vunpack.c.l.b16 %v1695
    %v1805 = vunpack.c.h.b16 %v1695
    %v1806 = vunpack.c.l.b16 %v1696
    %v1807 = vunpack.c.h.b16 %v1696
    %v1808 = vunpack.c.l.b16 %v1697
    %v1809 = vunpack.c.h.b16 %v1697
    %v1810 = vunpack.c.l.b16 %v1698
    %v1811 = vunpack.c.h.b16 %v1698
    %v1812 = vunpack.c.l.b16 %v1699
    %v1813 = vunpack.c.h.b16 %v1699
    %v1814 = vunpack.c.l.b16 %v1700
    %v1815 = vunpack.c.h.b16 %v1700
    %v1816 = vunpack.c.l.b16 %v1701
    %v1817 = vunpack.c.h.b16 %v1701
    %v1818 = vunpack.c.l.b16 %v1702
    %v1819 = vunpack.c.h.b16 %v1702
    %v1820 = vunpack.c.l.b16 %v1703
    %v1821 = vunpack.c.h.b16 %v1703
    %v1822 = vunpack.c.l.b16 %v1704
    %v1823 = vunpack.c.h.b16 %v1704
    %v1824 = vunpack.c.l.b16 %v1705
    %v1825 = vunpack.c.h.b16 %v1705
    %v1826 = vunpack.c.l.b16 %v1706
    %v1827 = vunpack.c.h.b16 %v1706
    %v1828 = vunpack.c.l.b16 %v1707
    %v1829 = vunpack.c.h.b16 %v1707
    %v1830 = vunpack.c.l.b16 %v1708
    %v1831 = vunpack.c.h.b16 %v1708
    %v1832 = vunpack.c.l.b16 %v1709
    %v1833 = vunpack.c.h.b16 %v1709
    %v1834 = vunpack.c.l.b16 %v1710
    %v1835 = vunpack.c.h.b16 %v1710
    %v1836 = vunpack.c.l.b16 %v1711
    %v1837 = vunpack.c.h.b16 %v1711
    %v1838 = vunpack.c.l.b16 %v1712
    %v1839 = vunpack.c.h.b16 %v1712
    %v1840 = vunpack.c.l.b16 %v1713
    %v1841 = vunpack.c.h.b16 %v1713
    %v1842 = vunpack.c.l.b16 %v1714
    %v1843 = vunpack.c.h.b16 %v1714
    %v1844 = vunpack.c.l.b16 %v1715
    %v1845 = vunpack.c.h.b16 %v1715
    %v1846 = vunpack.c.l.b16 %v1716
    %v1847 = vunpack.c.h.b16 %v1716
    %v1848 = vpack.c.b16 %v1788, %v1784
    %v1849 = vpack.c.b16 %v1789, %v1785
    %v1850 = vpack.c.b16 %v1790, %v1786
    %v1851 = vpack.c.b16 %v1791, %v1787
    %v1852 = vpack.c.b16 %v1796, %v1792
    %v1853 = vpack.c.b16 %v1797, %v1793
    %v1854 = vpack.c.b16 %v1798, %v1794
    %v1855 = vpack.c.b16 %v1799, %v1795
    %v1856 = vpack.c.b16 %v1804, %v1800
    %v1857 = vpack.c.b16 %v1805, %v1801
    %v1858 = vpack.c.b16 %v1806, %v1802
    %v1859 = vpack.c.b16 %v1807, %v1803
    %v1860 = vpack.c.b16 %v1812, %v1808
    %v1861 = vpack.c.b16 %v1813, %v1809
    %v1862 = vpack.c.b16 %v1814, %v1810
    %v1863 = vpack.c.b16 %v1815, %v1811
    %v1864 = vpack.c.b16 %v1820, %v1816
    %v1865 = vpack.c.b16 %v1821, %v1817
    %v1866 = vpack.c.b16 %v1822, %v1818
    %v1867 = vpack.c.b16 %v1823, %v1819
    %v1868 = vpack.c.b16 %v1828, %v1824
    %v1869 = vpack.c.b16 %v1829, %v1825
    %v1870 = vpack.c.b16 %v1830, %v1826
    %v1871 = vpack.c.b16 %v1831, %v1827
    %v1872 = vpack.c.b16 %v1836, %v1832
    %v1873 = vpack.c.b16 %v1837, %v1833
    %v1874 = vpack.c.b16 %v1838, %v1834
    %v1875 = vpack.c.b16 %v1839, %v1835
    %v1876 = vpack.c.b16 %v1844, %v1840
    %v1877 = vpack.c.b16 %v1845, %v1841
    %v1878 = vpack.c.b16 %v1846, %v1842
    %v1879 = vpack.c.b16 %v1847, %v1843
    %1912 = vmatpush.bf16.msra.mxu0 %v1876
    %1913 = vmatpush.bf16.msra.mxu0 %v1872
    %1914 = vmatpush.bf16.msra.mxu0 %v1868
    %1915 = vmatpush.bf16.msra.mxu0 %v1864
    %1916 = vmatpush.bf16.msra.mxu0 %v1860
    %1917 = vmatpush.bf16.msra.mxu0 %v1856
    %1918 = vmatpush.bf16.msra.mxu0 %v1852
    %1919 = vmatpush.bf16.msra.mxu0 %v1848
    %1920 = vmatmul.bf16.gmra.mxu0 %v1744
    %v1921 = vpop.f32.mrf.mxu0
    %v1922 = vadd.f32 %v1720, %v1921
    %v1923 = vpop.f32.mrf.mxu0
    %v1924 = vadd.f32 %v1720, %v1923
    %1925 = vmatmul.bf16.gmra.mxu0 %v1745
    %v1926 = vpop.f32.mrf.mxu0
    %v1927 = vadd.f32 %v1720, %v1926
    %v1928 = vpop.f32.mrf.mxu0
    %v1929 = vadd.f32 %v1720, %v1928
    %1930 = vmatmul.bf16.gmra.mxu0 %v1746
    %v1931 = vpop.f32.mrf.mxu0
    %v1932 = vadd.f32 %v1720, %v1931
    %v1933 = vpop.f32.mrf.mxu0
    %v1934 = vadd.f32 %v1720, %v1933
    %1935 = vmatmul.bf16.gmra.mxu0 %v1747
    %v1936 = vpop.f32.mrf.mxu0
    %v1937 = vadd.f32 %v1720, %v1936
    %v1938 = vpop.f32.mrf.mxu0
    %v1939 = vadd.f32 %v1720, %v1938
    %1940 = vdwg.mxu0
    %1941 = vmatpush.bf16.msra.mxu0 %v1877
    %1942 = vmatpush.bf16.msra.mxu0 %v1873
    %1943 = vmatpush.bf16.msra.mxu0 %v1869
    %1944 = vmatpush.bf16.msra.mxu0 %v1865
    %1945 = vmatpush.bf16.msra.mxu0 %v1861
    %1946 = vmatpush.bf16.msra.mxu0 %v1857
    %1947 = vmatpush.bf16.msra.mxu0 %v1853
    %1948 = vmatpush.bf16.msra.mxu0 %v1849
    %1949 = vmatmul.bf16.gmra.mxu0 %v1744
    %v1950 = vpop.f32.mrf.mxu0
    %v1951 = vadd.f32 %v1721, %v1950
    %v1952 = vpop.f32.mrf.mxu0
    %v1953 = vadd.f32 %v1721, %v1952
    %1954 = vmatmul.bf16.gmra.mxu0 %v1745
    %v1955 = vpop.f32.mrf.mxu0
    %v1956 = vadd.f32 %v1721, %v1955
    %v1957 = vpop.f32.mrf.mxu0
    %v1958 = vadd.f32 %v1721, %v1957
    %1959 = vmatmul.bf16.gmra.mxu0 %v1746
    %v1960 = vpop.f32.mrf.mxu0
    %v1961 = vadd.f32 %v1721, %v1960
    %v1962 = vpop.f32.mrf.mxu0
    %v1963 = vadd.f32 %v1721, %v1962
    %1964 = vmatmul.bf16.gmra.mxu0 %v1747
    %v1965 = vpop.f32.mrf.mxu0
    %v1966 = vadd.f32 %v1721, %v1965
    %v1967 = vpop.f32.mrf.mxu0
    %v1968 = vadd.f32 %v1721, %v1967
    %1969 = vdwg.mxu0
    %1970 = vmatpush.bf16.msra.mxu0 %v1878
    %1971 = vmatpush.bf16.msra.mxu0 %v1874
    %1972 = vmatpush.bf16.msra.mxu0 %v1870
    %1973 = vmatpush.bf16.msra.mxu0 %v1866
    %1974 = vmatpush.bf16.msra.mxu0 %v1862
    %1975 = vmatpush.bf16.msra.mxu0 %v1858
    %1976 = vmatpush.bf16.msra.mxu0 %v1854
    %1977 = vmatpush.bf16.msra.mxu0 %v1850
    %1978 = vmatmul.bf16.gmra.mxu0 %v1744
    %v1979 = vpop.f32.mrf.mxu0
    %v1980 = vadd.f32 %v1722, %v1979
    %v1981 = vpop.f32.mrf.mxu0
    %v1982 = vadd.f32 %v1722, %v1981
    %1983 = vmatmul.bf16.gmra.mxu0 %v1745
    %v1984 = vpop.f32.mrf.mxu0
    %v1985 = vadd.f32 %v1722, %v1984
    %v1986 = vpop.f32.mrf.mxu0
    %v1987 = vadd.f32 %v1722, %v1986
    %1988 = vmatmul.bf16.gmra.mxu0 %v1746
    %v1989 = vpop.f32.mrf.mxu0
    %v1990 = vadd.f32 %v1722, %v1989
    %v1991 = vpop.f32.mrf.mxu0
    %v1992 = vadd.f32 %v1722, %v1991
    %1993 = vmatmul.bf16.gmra.mxu0 %v1747
    %v1994 = vpop.f32.mrf.mxu0
    %v1995 = vadd.f32 %v1722, %v1994
    %v1996 = vpop.f32.mrf.mxu0
    %v1997 = vadd.f32 %v1722, %v1996
    %1998 = vdwg.mxu0
    %1999 = vmatpush.bf16.msra.mxu0 %v1879
    %2000 = vmatpush.bf16.msra.mxu0 %v1875
    %2001 = vmatpush.bf16.msra.mxu0 %v1871
    %2002 = vmatpush.bf16.msra.mxu0 %v1867
    %2003 = vmatpush.bf16.msra.mxu0 %v1863
    %2004 = vmatpush.bf16.msra.mxu0 %v1859
    %2005 = vmatpush.bf16.msra.mxu0 %v1855
    %2006 = vmatpush.bf16.msra.mxu0 %v1851
    %2007 = vmatmul.bf16.gmra.mxu0 %v1744
    %v2008 = vpop.f32.mrf.mxu0
    %v2009 = vadd.f32 %v1723, %v2008
    %v2010 = vpop.f32.mrf.mxu0
    %v2011 = vadd.f32 %v1723, %v2010
    %2012 = vmatmul.bf16.gmra.mxu0 %v1745
    %v2013 = vpop.f32.mrf.mxu0
    %v2014 = vadd.f32 %v1723, %v2013
    %v2015 = vpop.f32.mrf.mxu0
    %v2016 = vadd.f32 %v1723, %v2015
    %2017 = vmatmul.bf16.gmra.mxu0 %v1746
    %v2018 = vpop.f32.mrf.mxu0
    %v2019 = vadd.f32 %v1723, %v2018
    %v2020 = vpop.f32.mrf.mxu0
    %v2021 = vadd.f32 %v1723, %v2020
    %2022 = vmatmul.bf16.gmra.mxu0 %v1747
    %v2023 = vpop.f32.mrf.mxu0
    %v2024 = vadd.f32 %v1723, %v2023
    %v2025 = vpop.f32.mrf.mxu0
    %v2026 = vadd.f32 %v1723, %v2025
    %2027 = vdwg.mxu0
    %2028 = vst [vmem:[#allocation2] sm:$0xff] %v1922
    %2029 = vst [vmem:[#allocation2 + $0x8] sm:$0xff] %v1951
    %2030 = vst [vmem:[#allocation2 + $0x10] sm:$0xff] %v1980
    %2031 = vst [vmem:[#allocation2 + $0x18] sm:$0xff] %v2009
    %2032 = vst [vmem:[#allocation2 + $0x20] sm:$0xff] %v1924
    %2033 = vst [vmem:[#allocation2 + $0x28] sm:$0xff] %v1953
    %2034 = vst [vmem:[#allocation2 + $0x30] sm:$0xff] %v1982
    %2035 = vst [vmem:[#allocation2 + $0x38] sm:$0xff] %v2011
    %2036 = vst [vmem:[#allocation2 + $0x40] sm:$0xff] %v1927
    %2037 = vst [vmem:[#allocation2 + $0x48] sm:$0xff] %v1956
    %2038 = vst [vmem:[#allocation2 + $0x50] sm:$0xff] %v1985
    %2039 = vst [vmem:[#allocation2 + $0x58] sm:$0xff] %v2014
    %2040 = vst [vmem:[#allocation2 + $0x60] sm:$0xff] %v1929
    %2041 = vst [vmem:[#allocation2 + $0x68] sm:$0xff] %v1958
    %2042 = vst [vmem:[#allocation2 + $0x70] sm:$0xff] %v1987
    %2043 = vst [vmem:[#allocation2 + $0x78] sm:$0xff] %v2016
    %2044 = vst [vmem:[#allocation2 + $0x80] sm:$0xff] %v1932
    %2045 = vst [vmem:[#allocation2 + $0x88] sm:$0xff] %v1961
    %2046 = vst [vmem:[#allocation2 + $0x90] sm:$0xff] %v1990
    %2047 = vst [vmem:[#allocation2 + $0x98] sm:$0xff] %v2019
    %2048 = vst [vmem:[#allocation2 + $0xa0] sm:$0xff] %v1934
    %2049 = vst [vmem:[#allocation2 + $0xa8] sm:$0xff] %v1963
    %2050 = vst [vmem:[#allocation2 + $0xb0] sm:$0xff] %v1992
    %2051 = vst [vmem:[#allocation2 + $0xb8] sm:$0xff] %v2021
    %2052 = vst [vmem:[#allocation2 + $0xc0] sm:$0xff] %v1937
    %2053 = vst [vmem:[#allocation2 + $0xc8] sm:$0xff] %v1966
    %2054 = vst [vmem:[#allocation2 + $0xd0] sm:$0xff] %v1995
    %2055 = vst [vmem:[#allocation2 + $0xd8] sm:$0xff] %v2024
    %2056 = vst [vmem:[#allocation2 + $0xe0] sm:$0xff] %v1939
    %2057 = vst [vmem:[#allocation2 + $0xe8] sm:$0xff] %v1968
    %2058 = vst [vmem:[#allocation2 + $0xf0] sm:$0xff] %v1997
    %2059 = vst [vmem:[#allocation2 + $0xf8] sm:$0xff] %v2026
    %s2060 = scalar_lea.vmem [#allocation8], 256
    %v2061 = vld [vmem:[%s2060] sm:$0xff]
    %v2062 = vld [vmem:[%s2060 + $0x8] sm:$0xff]
    %v2063 = vld [vmem:[%s2060 + $0x10] sm:$0xff]
    %v2064 = vld [vmem:[%s2060 + $0x18] sm:$0xff]
    %v2065 = vld [vmem:[%s2060 + $0x20] sm:$0xff]
    %v2066 = vld [vmem:[%s2060 + $0x28] sm:$0xff]
    %v2067 = vld [vmem:[%s2060 + $0x30] sm:$0xff]
    %v2068 = vld [vmem:[%s2060 + $0x38] sm:$0xff]
    %v2069 = vld [vmem:[%s2060 + $0x40] sm:$0xff]
    %v2070 = vld [vmem:[%s2060 + $0x48] sm:$0xff]
    %v2071 = vld [vmem:[%s2060 + $0x50] sm:$0xff]
    %v2072 = vld [vmem:[%s2060 + $0x58] sm:$0xff]
    %v2073 = vld [vmem:[%s2060 + $0x60] sm:$0xff]
    %v2074 = vld [vmem:[%s2060 + $0x68] sm:$0xff]
    %v2075 = vld [vmem:[%s2060 + $0x70] sm:$0xff]
    %v2076 = vld [vmem:[%s2060 + $0x78] sm:$0xff]
    %v2077 = vld [vmem:[%s2060 + $0x80] sm:$0xff]
    %v2078 = vld [vmem:[%s2060 + $0x88] sm:$0xff]
    %v2079 = vld [vmem:[%s2060 + $0x90] sm:$0xff]
    %v2080 = vld [vmem:[%s2060 + $0x98] sm:$0xff]
    %v2081 = vld [vmem:[%s2060 + $0xa0] sm:$0xff]
    %v2082 = vld [vmem:[%s2060 + $0xa8] sm:$0xff]
    %v2083 = vld [vmem:[%s2060 + $0xb0] sm:$0xff]
    %v2084 = vld [vmem:[%s2060 + $0xb8] sm:$0xff]
    %v2085 = vld [vmem:[%s2060 + $0xc0] sm:$0xff]
    %v2086 = vld [vmem:[%s2060 + $0xc8] sm:$0xff]
    %v2087 = vld [vmem:[%s2060 + $0xd0] sm:$0xff]
    %v2088 = vld [vmem:[%s2060 + $0xd8] sm:$0xff]
    %v2089 = vld [vmem:[%s2060 + $0xe0] sm:$0xff]
    %v2090 = vld [vmem:[%s2060 + $0xe8] sm:$0xff]
    %v2091 = vld [vmem:[%s2060 + $0xf0] sm:$0xff]
    %v2092 = vld [vmem:[%s2060 + $0xf8] sm:$0xff]
    %v2093 = vld [vmem:[%s486] sm:$0xff]
    %v2094 = vld [vmem:[%s486 + $0x8] sm:$0xff]
    %v2095 = vld [vmem:[%s486 + $0x10] sm:$0xff]
    %v2096 = vld [vmem:[%s486 + $0x18] sm:$0xff]
    %v2129 = vunpack.c.l.b16 %v2061
    %v2130 = vunpack.c.h.b16 %v2061
    %v2131 = vunpack.c.l.b16 %v2062
    %v2132 = vunpack.c.h.b16 %v2062
    %v2133 = vunpack.c.l.b16 %v2063
    %v2134 = vunpack.c.h.b16 %v2063
    %v2135 = vunpack.c.l.b16 %v2064
    %v2136 = vunpack.c.h.b16 %v2064
    %v2137 = vunpack.c.l.b16 %v2065
    %v2138 = vunpack.c.h.b16 %v2065
    %v2139 = vunpack.c.l.b16 %v2066
    %v2140 = vunpack.c.h.b16 %v2066
    %v2141 = vunpack.c.l.b16 %v2067
    %v2142 = vunpack.c.h.b16 %v2067
    %v2143 = vunpack.c.l.b16 %v2068
    %v2144 = vunpack.c.h.b16 %v2068
    %v2145 = vunpack.c.l.b16 %v2069
    %v2146 = vunpack.c.h.b16 %v2069
    %v2147 = vunpack.c.l.b16 %v2070
    %v2148 = vunpack.c.h.b16 %v2070
    %v2149 = vunpack.c.l.b16 %v2071
    %v2150 = vunpack.c.h.b16 %v2071
    %v2151 = vunpack.c.l.b16 %v2072
    %v2152 = vunpack.c.h.b16 %v2072
    %v2153 = vunpack.c.l.b16 %v2073
    %v2154 = vunpack.c.h.b16 %v2073
    %v2155 = vunpack.c.l.b16 %v2074
    %v2156 = vunpack.c.h.b16 %v2074
    %v2157 = vunpack.c.l.b16 %v2075
    %v2158 = vunpack.c.h.b16 %v2075
    %v2159 = vunpack.c.l.b16 %v2076
    %v2160 = vunpack.c.h.b16 %v2076
    %v2161 = vunpack.c.l.b16 %v2077
    %v2162 = vunpack.c.h.b16 %v2077
    %v2163 = vunpack.c.l.b16 %v2078
    %v2164 = vunpack.c.h.b16 %v2078
    %v2165 = vunpack.c.l.b16 %v2079
    %v2166 = vunpack.c.h.b16 %v2079
    %v2167 = vunpack.c.l.b16 %v2080
    %v2168 = vunpack.c.h.b16 %v2080
    %v2169 = vunpack.c.l.b16 %v2081
    %v2170 = vunpack.c.h.b16 %v2081
    %v2171 = vunpack.c.l.b16 %v2082
    %v2172 = vunpack.c.h.b16 %v2082
    %v2173 = vunpack.c.l.b16 %v2083
    %v2174 = vunpack.c.h.b16 %v2083
    %v2175 = vunpack.c.l.b16 %v2084
    %v2176 = vunpack.c.h.b16 %v2084
    %v2177 = vunpack.c.l.b16 %v2085
    %v2178 = vunpack.c.h.b16 %v2085
    %v2179 = vunpack.c.l.b16 %v2086
    %v2180 = vunpack.c.h.b16 %v2086
    %v2181 = vunpack.c.l.b16 %v2087
    %v2182 = vunpack.c.h.b16 %v2087
    %v2183 = vunpack.c.l.b16 %v2088
    %v2184 = vunpack.c.h.b16 %v2088
    %v2185 = vunpack.c.l.b16 %v2089
    %v2186 = vunpack.c.h.b16 %v2089
    %v2187 = vunpack.c.l.b16 %v2090
    %v2188 = vunpack.c.h.b16 %v2090
    %v2189 = vunpack.c.l.b16 %v2091
    %v2190 = vunpack.c.h.b16 %v2091
    %v2191 = vunpack.c.l.b16 %v2092
    %v2192 = vunpack.c.h.b16 %v2092
    %v2193 = vpack.c.b16 %v2133, %v2129
    %v2194 = vpack.c.b16 %v2134, %v2130
    %v2195 = vpack.c.b16 %v2135, %v2131
    %v2196 = vpack.c.b16 %v2136, %v2132
    %v2197 = vpack.c.b16 %v2141, %v2137
    %v2198 = vpack.c.b16 %v2142, %v2138
    %v2199 = vpack.c.b16 %v2143, %v2139
    %v2200 = vpack.c.b16 %v2144, %v2140
    %v2201 = vpack.c.b16 %v2149, %v2145
    %v2202 = vpack.c.b16 %v2150, %v2146
    %v2203 = vpack.c.b16 %v2151, %v2147
    %v2204 = vpack.c.b16 %v2152, %v2148
    %v2205 = vpack.c.b16 %v2157, %v2153
    %v2206 = vpack.c.b16 %v2158, %v2154
    %v2207 = vpack.c.b16 %v2159, %v2155
    %v2208 = vpack.c.b16 %v2160, %v2156
    %v2209 = vpack.c.b16 %v2165, %v2161
    %v2210 = vpack.c.b16 %v2166, %v2162
    %v2211 = vpack.c.b16 %v2167, %v2163
    %v2212 = vpack.c.b16 %v2168, %v2164
    %v2213 = vpack.c.b16 %v2173, %v2169
    %v2214 = vpack.c.b16 %v2174, %v2170
    %v2215 = vpack.c.b16 %v2175, %v2171
    %v2216 = vpack.c.b16 %v2176, %v2172
    %v2217 = vpack.c.b16 %v2181, %v2177
    %v2218 = vpack.c.b16 %v2182, %v2178
    %v2219 = vpack.c.b16 %v2183, %v2179
    %v2220 = vpack.c.b16 %v2184, %v2180
    %v2221 = vpack.c.b16 %v2189, %v2185
    %v2222 = vpack.c.b16 %v2190, %v2186
    %v2223 = vpack.c.b16 %v2191, %v2187
    %v2224 = vpack.c.b16 %v2192, %v2188
    %2257 = vmatpush.bf16.msra.mxu0 %v2221
    %2258 = vmatpush.bf16.msra.mxu0 %v2217
    %2259 = vmatpush.bf16.msra.mxu0 %v2213
    %2260 = vmatpush.bf16.msra.mxu0 %v2209
    %2261 = vmatpush.bf16.msra.mxu0 %v2205
    %2262 = vmatpush.bf16.msra.mxu0 %v2201
    %2263 = vmatpush.bf16.msra.mxu0 %v2197
    %2264 = vmatpush.bf16.msra.mxu0 %v2193
    %2265 = vmatmul.bf16.gmra.mxu0 0
    %v2266 = vpop.f32.mrf.mxu0
    %v2267 = vadd.f32 0.0, %v2266
    %v2268 = vpop.f32.mrf.mxu0
    %2269 = vdwg.mxu0
    %2270 = vmatpush.bf16.msra.mxu0 %v2222
    %2271 = vmatpush.bf16.msra.mxu0 %v2218
    %2272 = vmatpush.bf16.msra.mxu0 %v2214
    %2273 = vmatpush.bf16.msra.mxu0 %v2210
    %2274 = vmatpush.bf16.msra.mxu0 %v2206
    %2275 = vmatpush.bf16.msra.mxu0 %v2202
    %2276 = vmatpush.bf16.msra.mxu0 %v2198
    %2277 = vmatpush.bf16.msra.mxu0 %v2194
    %2278 = vmatmul.bf16.gmra.mxu0 0
    %v2279 = vpop.f32.mrf.mxu0
    %v2280 = vadd.f32 0.0, %v2279
    %v2281 = vpop.f32.mrf.mxu0
    %2282 = vdwg.mxu0
    %2283 = vmatpush.bf16.msra.mxu0 %v2223
    %2284 = vmatpush.bf16.msra.mxu0 %v2219
    %2285 = vmatpush.bf16.msra.mxu0 %v2215
    %2286 = vmatpush.bf16.msra.mxu0 %v2211
    %2287 = vmatpush.bf16.msra.mxu0 %v2207
    %2288 = vmatpush.bf16.msra.mxu0 %v2203
    %2289 = vmatpush.bf16.msra.mxu0 %v2199
    %2290 = vmatpush.bf16.msra.mxu0 %v2195
    %2291 = vmatmul.bf16.gmra.mxu0 0
    %v2292 = vpop.f32.mrf.mxu0
    %v2293 = vadd.f32 0.0, %v2292
    %v2294 = vpop.f32.mrf.mxu0
    %2295 = vdwg.mxu0
    %2296 = vmatpush.bf16.msra.mxu0 %v2224
    %2297 = vmatpush.bf16.msra.mxu0 %v2220
    %2298 = vmatpush.bf16.msra.mxu0 %v2216
    %2299 = vmatpush.bf16.msra.mxu0 %v2212
    %2300 = vmatpush.bf16.msra.mxu0 %v2208
    %2301 = vmatpush.bf16.msra.mxu0 %v2204
    %2302 = vmatpush.bf16.msra.mxu0 %v2200
    %2303 = vmatpush.bf16.msra.mxu0 %v2196
    %2304 = vmatmul.bf16.gmra.mxu0 0
    %v2305 = vpop.f32.mrf.mxu0
    %v2306 = vadd.f32 0.0, %v2305
    %v2307 = vpop.f32.mrf.mxu0
    %2308 = vdwg.mxu0
    %v2309 = vadd.f32 %v2093, %v2267
    %v2310 = vadd.f32 %v2094, %v2280
    %v2311 = vadd.f32 %v2095, %v2293
    %v2312 = vadd.f32 %v2096, %v2306
    %v2313 = vxor.u32 %v2309, 2147483648
    %v2314 = vmul.f32 %v2313, 1.442695
    %v2315 = vpow.pop %v2314
    %v2316 = vadd.f32 %v2315, 1.0
    %v2317 = vrcp.pop %v2316
    %v2318 = vmul.f32 %v2316, %v2317
    %v2319 = vsub.f32 1.0, %v2318
    %v2320 = vmul.f32 %v2317, %v2319
    %v2321 = vadd.f32 %v2317, %v2320
    %vm2322 = vweird.f32 %v2316
    %vm2323 = vweird.f32 %v2317
    %vm2324 = vmor %vm2322, %vm2323
    %v2325 = vsel %vm2324, %v2317, %v2321
    %v2326 = vand.u32 2147483647, %v2316
    %vm2327 = vcmp.eq.f32.partialorder %v2326, 8.507059e+37
    %v2328 = vand.u32 %v2316, 2147483648
    %v2329 = vor.u32 1.1754944e-38, %v2328
    %v2330 = vsel %vm2327, %v2329, %v2325
    %v2331 = vmul.f32 1.0, %v2330
    %v2332 = vxor.u32 %v2310, 2147483648
    %v2333 = vmul.f32 %v2332, 1.442695
    %v2334 = vpow.pop %v2333
    %v2335 = vadd.f32 %v2334, 1.0
    %v2336 = vrcp.pop %v2335
    %v2337 = vmul.f32 %v2335, %v2336
    %v2338 = vsub.f32 1.0, %v2337
    %v2339 = vmul.f32 %v2336, %v2338
    %v2340 = vadd.f32 %v2336, %v2339
    %vm2341 = vweird.f32 %v2335
    %vm2342 = vweird.f32 %v2336
    %vm2343 = vmor %vm2341, %vm2342
    %v2344 = vsel %vm2343, %v2336, %v2340
    %v2345 = vand.u32 2147483647, %v2335
    %vm2346 = vcmp.eq.f32.partialorder %v2345, 8.507059e+37
    %v2347 = vand.u32 %v2335, 2147483648
    %v2348 = vor.u32 1.1754944e-38, %v2347
    %v2349 = vsel %vm2346, %v2348, %v2344
    %v2350 = vmul.f32 1.0, %v2349
    %v2351 = vtanh.pop %v2311
    %v2352 = vxor.u32 %v2312, 2147483648
    %v2353 = vmul.f32 %v2352, 1.442695
    %v2354 = vpow.pop %v2353
    %v2355 = vadd.f32 %v2354, 1.0
    %v2356 = vrcp.pop %v2355
    %v2357 = vmul.f32 %v2355, %v2356
    %v2358 = vsub.f32 1.0, %v2357
    %v2359 = vmul.f32 %v2356, %v2358
    %v2360 = vadd.f32 %v2356, %v2359
    %vm2361 = vweird.f32 %v2355
    %vm2362 = vweird.f32 %v2356
    %vm2363 = vmor %vm2361, %vm2362
    %v2364 = vsel %vm2363, %v2356, %v2360
    %v2365 = vand.u32 2147483647, %v2355
    %vm2366 = vcmp.eq.f32.partialorder %v2365, 8.507059e+37
    %v2367 = vand.u32 %v2355, 2147483648
    %v2368 = vor.u32 1.1754944e-38, %v2367
    %v2369 = vsel %vm2366, %v2368, %v2364
    %v2370 = vmul.f32 1.0, %v2369
    %v2371 = vmul.f32 %v2350, 0.0
    %v2372 = vmul.f32 %v2331, %v2351
    %v2373 = vadd.f32 %v2371, %v2372
    %v2374 = vtanh.pop %v2373
    %v2375 = vmul.f32 %v2370, %v2374
    %v2376 = vld [vmem:[%s774] sm:$0xff]
    %v2377 = vld [vmem:[%s774 + $0x8] sm:$0xff]
    %v2378 = vld [vmem:[%s774 + $0x10] sm:$0xff]
    %v2379 = vld [vmem:[%s774 + $0x18] sm:$0xff]
    %v2380 = vpack.c.bf16 %v2375, %v2375
    %2381 = vmatpush.bf16.msra.mxu0 %v2221
    %2382 = vmatpush.bf16.msra.mxu0 %v2217
    %2383 = vmatpush.bf16.msra.mxu0 %v2213
    %2384 = vmatpush.bf16.msra.mxu0 %v2209
    %2385 = vmatpush.bf16.msra.mxu0 %v2205
    %2386 = vmatpush.bf16.msra.mxu0 %v2201
    %2387 = vmatpush.bf16.msra.mxu0 %v2197
    %2388 = vmatpush.bf16.msra.mxu0 %v2193
    %2389 = vmatmul.bf16.gmra.mxu0 %v2380
    %v2390 = vpop.f32.mrf.mxu0
    %v2391 = vadd.f32 0.0, %v2390
    %v2392 = vpop.f32.mrf.mxu0
    %2393 = vdwg.mxu0
    %2394 = vmatpush.bf16.msra.mxu0 %v2222
    %2395 = vmatpush.bf16.msra.mxu0 %v2218
    %2396 = vmatpush.bf16.msra.mxu0 %v2214
    %2397 = vmatpush.bf16.msra.mxu0 %v2210
    %2398 = vmatpush.bf16.msra.mxu0 %v2206
    %2399 = vmatpush.bf16.msra.mxu0 %v2202
    %2400 = vmatpush.bf16.msra.mxu0 %v2198
    %2401 = vmatpush.bf16.msra.mxu0 %v2194
    %2402 = vmatmul.bf16.gmra.mxu0 %v2380
    %v2403 = vpop.f32.mrf.mxu0
    %v2404 = vadd.f32 0.0, %v2403
    %v2405 = vpop.f32.mrf.mxu0
    %2406 = vdwg.mxu0
    %2407 = vmatpush.bf16.msra.mxu0 %v2223
    %2408 = vmatpush.bf16.msra.mxu0 %v2219
    %2409 = vmatpush.bf16.msra.mxu0 %v2215
    %2410 = vmatpush.bf16.msra.mxu0 %v2211
    %2411 = vmatpush.bf16.msra.mxu0 %v2207
    %2412 = vmatpush.bf16.msra.mxu0 %v2203
    %2413 = vmatpush.bf16.msra.mxu0 %v2199
    %2414 = vmatpush.bf16.msra.mxu0 %v2195
    %2415 = vmatmul.bf16.gmra.mxu0 %v2380
    %v2416 = vpop.f32.mrf.mxu0
    %v2417 = vadd.f32 0.0, %v2416
    %v2418 = vpop.f32.mrf.mxu0
    %2419 = vdwg.mxu0
    %2420 = vmatpush.bf16.msra.mxu0 %v2224
    %2421 = vmatpush.bf16.msra.mxu0 %v2220
    %2422 = vmatpush.bf16.msra.mxu0 %v2216
    %2423 = vmatpush.bf16.msra.mxu0 %v2212
    %2424 = vmatpush.bf16.msra.mxu0 %v2208
    %2425 = vmatpush.bf16.msra.mxu0 %v2204
    %2426 = vmatpush.bf16.msra.mxu0 %v2200
    %2427 = vmatpush.bf16.msra.mxu0 %v2196
    %2428 = vmatmul.bf16.gmra.mxu0 %v2380
    %v2429 = vpop.f32.mrf.mxu0
    %v2430 = vadd.f32 0.0, %v2429
    %v2431 = vpop.f32.mrf.mxu0
    %2432 = vdwg.mxu0
    %v2433 = vadd.f32 %v2376, %v2391
    %v2434 = vadd.f32 %v2377, %v2404
    %v2435 = vadd.f32 %v2378, %v2417
    %v2436 = vadd.f32 %v2379, %v2430
    %v2437 = vxor.u32 %v2433, 2147483648
    %v2438 = vmul.f32 %v2437, 1.442695
    %v2439 = vpow.pop %v2438
    %v2440 = vadd.f32 %v2439, 1.0
    %v2441 = vrcp.pop %v2440
    %v2442 = vmul.f32 %v2440, %v2441
    %v2443 = vsub.f32 1.0, %v2442
    %v2444 = vmul.f32 %v2441, %v2443
    %v2445 = vadd.f32 %v2441, %v2444
    %vm2446 = vweird.f32 %v2440
    %vm2447 = vweird.f32 %v2441
    %vm2448 = vmor %vm2446, %vm2447
    %v2449 = vsel %vm2448, %v2441, %v2445
    %v2450 = vand.u32 2147483647, %v2440
    %vm2451 = vcmp.eq.f32.partialorder %v2450, 8.507059e+37
    %v2452 = vand.u32 %v2440, 2147483648
    %v2453 = vor.u32 1.1754944e-38, %v2452
    %v2454 = vsel %vm2451, %v2453, %v2449
    %v2455 = vmul.f32 1.0, %v2454
    %v2456 = vxor.u32 %v2434, 2147483648
    %v2457 = vmul.f32 %v2456, 1.442695
    %v2458 = vpow.pop %v2457
    %v2459 = vadd.f32 %v2458, 1.0
    %v2460 = vrcp.pop %v2459
    %v2461 = vmul.f32 %v2459, %v2460
    %v2462 = vsub.f32 1.0, %v2461
    %v2463 = vmul.f32 %v2460, %v2462
    %v2464 = vadd.f32 %v2460, %v2463
    %vm2465 = vweird.f32 %v2459
    %vm2466 = vweird.f32 %v2460
    %vm2467 = vmor %vm2465, %vm2466
    %v2468 = vsel %vm2467, %v2460, %v2464
    %v2469 = vand.u32 2147483647, %v2459
    %vm2470 = vcmp.eq.f32.partialorder %v2469, 8.507059e+37
    %v2471 = vand.u32 %v2459, 2147483648
    %v2472 = vor.u32 1.1754944e-38, %v2471
    %v2473 = vsel %vm2470, %v2472, %v2468
    %v2474 = vmul.f32 1.0, %v2473
    %v2475 = vtanh.pop %v2435
    %v2476 = vxor.u32 %v2436, 2147483648
    %v2477 = vmul.f32 %v2476, 1.442695
    %v2478 = vpow.pop %v2477
    %v2479 = vadd.f32 %v2478, 1.0
    %v2480 = vrcp.pop %v2479
    %v2481 = vmul.f32 %v2479, %v2480
    %v2482 = vsub.f32 1.0, %v2481
    %v2483 = vmul.f32 %v2480, %v2482
    %v2484 = vadd.f32 %v2480, %v2483
    %vm2485 = vweird.f32 %v2479
    %vm2486 = vweird.f32 %v2480
    %vm2487 = vmor %vm2485, %vm2486
    %v2488 = vsel %vm2487, %v2480, %v2484
    %v2489 = vand.u32 2147483647, %v2479
    %vm2490 = vcmp.eq.f32.partialorder %v2489, 8.507059e+37
    %v2491 = vand.u32 %v2479, 2147483648
    %v2492 = vor.u32 1.1754944e-38, %v2491
    %v2493 = vsel %vm2490, %v2492, %v2488
    %v2494 = vmul.f32 1.0, %v2493
    %v2495 = vmul.f32 %v2474, %v2373
    %v2496 = vmul.f32 %v2455, %v2475
    %v2497 = vadd.f32 %v2495, %v2496
    %v2498 = vtanh.pop %v2497
    %v2499 = vmul.f32 %v2494, %v2498
    %v2500 = vld [vmem:[%s903] sm:$0xff]
    %v2501 = vld [vmem:[%s903 + $0x8] sm:$0xff]
    %v2502 = vld [vmem:[%s903 + $0x10] sm:$0xff]
    %v2503 = vld [vmem:[%s903 + $0x18] sm:$0xff]
    %v2504 = vpack.c.bf16 %v2499, %v2499
    %2505 = vmatpush.bf16.msra.mxu0 %v2221
    %2506 = vmatpush.bf16.msra.mxu0 %v2217
    %2507 = vmatpush.bf16.msra.mxu0 %v2213
    %2508 = vmatpush.bf16.msra.mxu0 %v2209
    %2509 = vmatpush.bf16.msra.mxu0 %v2205
    %2510 = vmatpush.bf16.msra.mxu0 %v2201
    %2511 = vmatpush.bf16.msra.mxu0 %v2197
    %2512 = vmatpush.bf16.msra.mxu0 %v2193
    %2513 = vmatmul.bf16.gmra.mxu0 %v2504
    %v2514 = vpop.f32.mrf.mxu0
    %v2515 = vadd.f32 0.0, %v2514
    %v2516 = vpop.f32.mrf.mxu0
    %2517 = vdwg.mxu0
    %2518 = vmatpush.bf16.msra.mxu0 %v2222
    %2519 = vmatpush.bf16.msra.mxu0 %v2218
    %2520 = vmatpush.bf16.msra.mxu0 %v2214
    %2521 = vmatpush.bf16.msra.mxu0 %v2210
    %2522 = vmatpush.bf16.msra.mxu0 %v2206
    %2523 = vmatpush.bf16.msra.mxu0 %v2202
    %2524 = vmatpush.bf16.msra.mxu0 %v2198
    %2525 = vmatpush.bf16.msra.mxu0 %v2194
    %2526 = vmatmul.bf16.gmra.mxu0 %v2504
    %v2527 = vpop.f32.mrf.mxu0
    %v2528 = vadd.f32 0.0, %v2527
    %v2529 = vpop.f32.mrf.mxu0
    %2530 = vdwg.mxu0
    %2531 = vmatpush.bf16.msra.mxu0 %v2223
    %2532 = vmatpush.bf16.msra.mxu0 %v2219
    %2533 = vmatpush.bf16.msra.mxu0 %v2215
    %2534 = vmatpush.bf16.msra.mxu0 %v2211
    %2535 = vmatpush.bf16.msra.mxu0 %v2207
    %2536 = vmatpush.bf16.msra.mxu0 %v2203
    %2537 = vmatpush.bf16.msra.mxu0 %v2199
    %2538 = vmatpush.bf16.msra.mxu0 %v2195
    %2539 = vmatmul.bf16.gmra.mxu0 %v2504
    %v2540 = vpop.f32.mrf.mxu0
    %v2541 = vadd.f32 0.0, %v2540
    %v2542 = vpop.f32.mrf.mxu0
    %2543 = vdwg.mxu0
    %2544 = vmatpush.bf16.msra.mxu0 %v2224
    %2545 = vmatpush.bf16.msra.mxu0 %v2220
    %2546 = vmatpush.bf16.msra.mxu0 %v2216
    %2547 = vmatpush.bf16.msra.mxu0 %v2212
    %2548 = vmatpush.bf16.msra.mxu0 %v2208
    %2549 = vmatpush.bf16.msra.mxu0 %v2204
    %2550 = vmatpush.bf16.msra.mxu0 %v2200
    %2551 = vmatpush.bf16.msra.mxu0 %v2196
    %2552 = vmatmul.bf16.gmra.mxu0 %v2504
    %v2553 = vpop.f32.mrf.mxu0
    %v2554 = vadd.f32 0.0, %v2553
    %v2555 = vpop.f32.mrf.mxu0
    %2556 = vdwg.mxu0
    %v2557 = vadd.f32 %v2500, %v2515
    %v2558 = vadd.f32 %v2501, %v2528
    %v2559 = vadd.f32 %v2502, %v2541
    %v2560 = vadd.f32 %v2503, %v2554
    %v2561 = vxor.u32 %v2557, 2147483648
    %v2562 = vmul.f32 %v2561, 1.442695
    %v2563 = vpow.pop %v2562
    %v2564 = vadd.f32 %v2563, 1.0
    %v2565 = vrcp.pop %v2564
    %v2566 = vmul.f32 %v2564, %v2565
    %v2567 = vsub.f32 1.0, %v2566
    %v2568 = vmul.f32 %v2565, %v2567
    %v2569 = vadd.f32 %v2565, %v2568
    %vm2570 = vweird.f32 %v2564
    %vm2571 = vweird.f32 %v2565
    %vm2572 = vmor %vm2570, %vm2571
    %v2573 = vsel %vm2572, %v2565, %v2569
    %v2574 = vand.u32 2147483647, %v2564
    %vm2575 = vcmp.eq.f32.partialorder %v2574, 8.507059e+37
    %v2576 = vand.u32 %v2564, 2147483648
    %v2577 = vor.u32 1.1754944e-38, %v2576
    %v2578 = vsel %vm2575, %v2577, %v2573
    %v2579 = vmul.f32 1.0, %v2578
    %v2580 = vxor.u32 %v2558, 2147483648
    %v2581 = vmul.f32 %v2580, 1.442695
    %v2582 = vpow.pop %v2581
    %v2583 = vadd.f32 %v2582, 1.0
    %v2584 = vrcp.pop %v2583
    %v2585 = vmul.f32 %v2583, %v2584
    %v2586 = vsub.f32 1.0, %v2585
    %v2587 = vmul.f32 %v2584, %v2586
    %v2588 = vadd.f32 %v2584, %v2587
    %vm2589 = vweird.f32 %v2583
    %vm2590 = vweird.f32 %v2584
    %vm2591 = vmor %vm2589, %vm2590
    %v2592 = vsel %vm2591, %v2584, %v2588
    %v2593 = vand.u32 2147483647, %v2583
    %vm2594 = vcmp.eq.f32.partialorder %v2593, 8.507059e+37
    %v2595 = vand.u32 %v2583, 2147483648
    %v2596 = vor.u32 1.1754944e-38, %v2595
    %v2597 = vsel %vm2594, %v2596, %v2592
    %v2598 = vmul.f32 1.0, %v2597
    %v2599 = vtanh.pop %v2559
    %v2600 = vxor.u32 %v2560, 2147483648
    %v2601 = vmul.f32 %v2600, 1.442695
    %v2602 = vpow.pop %v2601
    %v2603 = vadd.f32 %v2602, 1.0
    %v2604 = vrcp.pop %v2603
    %v2605 = vmul.f32 %v2603, %v2604
    %v2606 = vsub.f32 1.0, %v2605
    %v2607 = vmul.f32 %v2604, %v2606
    %v2608 = vadd.f32 %v2604, %v2607
    %vm2609 = vweird.f32 %v2603
    %vm2610 = vweird.f32 %v2604
    %vm2611 = vmor %vm2609, %vm2610
    %v2612 = vsel %vm2611, %v2604, %v2608
    %v2613 = vand.u32 2147483647, %v2603
    %vm2614 = vcmp.eq.f32.partialorder %v2613, 8.507059e+37
    %v2615 = vand.u32 %v2603, 2147483648
    %v2616 = vor.u32 1.1754944e-38, %v2615
    %v2617 = vsel %vm2614, %v2616, %v2612
    %v2618 = vmul.f32 1.0, %v2617
    %v2619 = vmul.f32 %v2598, %v2497
    %v2620 = vmul.f32 %v2579, %v2599
    %v2621 = vadd.f32 %v2619, %v2620
    %v2622 = vtanh.pop %v2621
    %v2623 = vmul.f32 %v2618, %v2622
    %v2624 = vld [vmem:[%s1032] sm:$0xff]
    %v2625 = vld [vmem:[%s1032 + $0x8] sm:$0xff]
    %v2626 = vld [vmem:[%s1032 + $0x10] sm:$0xff]
    %v2627 = vld [vmem:[%s1032 + $0x18] sm:$0xff]
    %v2628 = vpack.c.bf16 %v2623, %v2623
    %2629 = vmatpush.bf16.msra.mxu0 %v2221
    %2630 = vmatpush.bf16.msra.mxu0 %v2217
    %2631 = vmatpush.bf16.msra.mxu0 %v2213
    %2632 = vmatpush.bf16.msra.mxu0 %v2209
    %2633 = vmatpush.bf16.msra.mxu0 %v2205
    %2634 = vmatpush.bf16.msra.mxu0 %v2201
    %2635 = vmatpush.bf16.msra.mxu0 %v2197
    %2636 = vmatpush.bf16.msra.mxu0 %v2193
    %2637 = vmatmul.bf16.gmra.mxu0 %v2628
    %v2638 = vpop.f32.mrf.mxu0
    %v2639 = vadd.f32 0.0, %v2638
    %v2640 = vpop.f32.mrf.mxu0
    %2641 = vdwg.mxu0
    %2642 = vmatpush.bf16.msra.mxu0 %v2222
    %2643 = vmatpush.bf16.msra.mxu0 %v2218
    %2644 = vmatpush.bf16.msra.mxu0 %v2214
    %2645 = vmatpush.bf16.msra.mxu0 %v2210
    %2646 = vmatpush.bf16.msra.mxu0 %v2206
    %2647 = vmatpush.bf16.msra.mxu0 %v2202
    %2648 = vmatpush.bf16.msra.mxu0 %v2198
    %2649 = vmatpush.bf16.msra.mxu0 %v2194
    %2650 = vmatmul.bf16.gmra.mxu0 %v2628
    %v2651 = vpop.f32.mrf.mxu0
    %v2652 = vadd.f32 0.0, %v2651
    %v2653 = vpop.f32.mrf.mxu0
    %2654 = vdwg.mxu0
    %2655 = vmatpush.bf16.msra.mxu0 %v2223
    %2656 = vmatpush.bf16.msra.mxu0 %v2219
    %2657 = vmatpush.bf16.msra.mxu0 %v2215
    %2658 = vmatpush.bf16.msra.mxu0 %v2211
    %2659 = vmatpush.bf16.msra.mxu0 %v2207
    %2660 = vmatpush.bf16.msra.mxu0 %v2203
    %2661 = vmatpush.bf16.msra.mxu0 %v2199
    %2662 = vmatpush.bf16.msra.mxu0 %v2195
    %2663 = vmatmul.bf16.gmra.mxu0 %v2628
    %v2664 = vpop.f32.mrf.mxu0
    %v2665 = vadd.f32 0.0, %v2664
    %v2666 = vpop.f32.mrf.mxu0
    %2667 = vdwg.mxu0
    %2668 = vmatpush.bf16.msra.mxu0 %v2224
    %2669 = vmatpush.bf16.msra.mxu0 %v2220
    %2670 = vmatpush.bf16.msra.mxu0 %v2216
    %2671 = vmatpush.bf16.msra.mxu0 %v2212
    %2672 = vmatpush.bf16.msra.mxu0 %v2208
    %2673 = vmatpush.bf16.msra.mxu0 %v2204
    %2674 = vmatpush.bf16.msra.mxu0 %v2200
    %2675 = vmatpush.bf16.msra.mxu0 %v2196
    %2676 = vmatmul.bf16.gmra.mxu0 %v2628
    %v2677 = vpop.f32.mrf.mxu0
    %v2678 = vadd.f32 0.0, %v2677
    %v2679 = vpop.f32.mrf.mxu0
    %2680 = vdwg.mxu0
    %v2681 = vadd.f32 %v2624, %v2639
    %v2682 = vadd.f32 %v2625, %v2652
    %v2683 = vadd.f32 %v2626, %v2665
    %v2684 = vadd.f32 %v2627, %v2678
    %v2685 = vxor.u32 %v2681, 2147483648
    %v2686 = vmul.f32 %v2685, 1.442695
    %v2687 = vpow.pop %v2686
    %v2688 = vadd.f32 %v2687, 1.0
    %v2689 = vrcp.pop %v2688
    %v2690 = vmul.f32 %v2688, %v2689
    %v2691 = vsub.f32 1.0, %v2690
    %v2692 = vmul.f32 %v2689, %v2691
    %v2693 = vadd.f32 %v2689, %v2692
    %vm2694 = vweird.f32 %v2688
    %vm2695 = vweird.f32 %v2689
    %vm2696 = vmor %vm2694, %vm2695
    %v2697 = vsel %vm2696, %v2689, %v2693
    %v2698 = vand.u32 2147483647, %v2688
    %vm2699 = vcmp.eq.f32.partialorder %v2698, 8.507059e+37
    %v2700 = vand.u32 %v2688, 2147483648
    %v2701 = vor.u32 1.1754944e-38, %v2700
    %v2702 = vsel %vm2699, %v2701, %v2697
    %v2703 = vmul.f32 1.0, %v2702
    %v2704 = vxor.u32 %v2682, 2147483648
    %v2705 = vmul.f32 %v2704, 1.442695
    %v2706 = vpow.pop %v2705
    %v2707 = vadd.f32 %v2706, 1.0
    %v2708 = vrcp.pop %v2707
    %v2709 = vmul.f32 %v2707, %v2708
    %v2710 = vsub.f32 1.0, %v2709
    %v2711 = vmul.f32 %v2708, %v2710
    %v2712 = vadd.f32 %v2708, %v2711
    %vm2713 = vweird.f32 %v2707
    %vm2714 = vweird.f32 %v2708
    %vm2715 = vmor %vm2713, %vm2714
    %v2716 = vsel %vm2715, %v2708, %v2712
    %v2717 = vand.u32 2147483647, %v2707
    %vm2718 = vcmp.eq.f32.partialorder %v2717, 8.507059e+37
    %v2719 = vand.u32 %v2707, 2147483648
    %v2720 = vor.u32 1.1754944e-38, %v2719
    %v2721 = vsel %vm2718, %v2720, %v2716
    %v2722 = vmul.f32 1.0, %v2721
    %v2723 = vtanh.pop %v2683
    %v2724 = vxor.u32 %v2684, 2147483648
    %v2725 = vmul.f32 %v2724, 1.442695
    %v2726 = vpow.pop %v2725
    %v2727 = vadd.f32 %v2726, 1.0
    %v2728 = vrcp.pop %v2727
    %v2729 = vmul.f32 %v2727, %v2728
    %v2730 = vsub.f32 1.0, %v2729
    %v2731 = vmul.f32 %v2728, %v2730
    %v2732 = vadd.f32 %v2728, %v2731
    %vm2733 = vweird.f32 %v2727
    %vm2734 = vweird.f32 %v2728
    %vm2735 = vmor %vm2733, %vm2734
    %v2736 = vsel %vm2735, %v2728, %v2732
    %v2737 = vand.u32 2147483647, %v2727
    %vm2738 = vcmp.eq.f32.partialorder %v2737, 8.507059e+37
    %v2739 = vand.u32 %v2727, 2147483648
    %v2740 = vor.u32 1.1754944e-38, %v2739
    %v2741 = vsel %vm2738, %v2740, %v2736
    %v2742 = vmul.f32 1.0, %v2741
    %v2743 = vmul.f32 %v2722, %v2621
    %v2744 = vmul.f32 %v2703, %v2723
    %v2745 = vadd.f32 %v2743, %v2744
    %v2746 = vtanh.pop %v2745
    %v2747 = vmul.f32 %v2742, %v2746
    %v2748 = vld [vmem:[%s1161] sm:$0xff]
    %v2749 = vld [vmem:[%s1161 + $0x8] sm:$0xff]
    %v2750 = vld [vmem:[%s1161 + $0x10] sm:$0xff]
    %v2751 = vld [vmem:[%s1161 + $0x18] sm:$0xff]
    %v2752 = vpack.c.bf16 %v2747, %v2747
    %2753 = vmatpush.bf16.msra.mxu0 %v2221
    %2754 = vmatpush.bf16.msra.mxu0 %v2217
    %2755 = vmatpush.bf16.msra.mxu0 %v2213
    %2756 = vmatpush.bf16.msra.mxu0 %v2209
    %2757 = vmatpush.bf16.msra.mxu0 %v2205
    %2758 = vmatpush.bf16.msra.mxu0 %v2201
    %2759 = vmatpush.bf16.msra.mxu0 %v2197
    %2760 = vmatpush.bf16.msra.mxu0 %v2193
    %2761 = vmatmul.bf16.gmra.mxu0 %v2752
    %v2762 = vpop.f32.mrf.mxu0
    %v2763 = vadd.f32 0.0, %v2762
    %v2764 = vpop.f32.mrf.mxu0
    %2765 = vdwg.mxu0
    %2766 = vmatpush.bf16.msra.mxu0 %v2222
    %2767 = vmatpush.bf16.msra.mxu0 %v2218
    %2768 = vmatpush.bf16.msra.mxu0 %v2214
    %2769 = vmatpush.bf16.msra.mxu0 %v2210
    %2770 = vmatpush.bf16.msra.mxu0 %v2206
    %2771 = vmatpush.bf16.msra.mxu0 %v2202
    %2772 = vmatpush.bf16.msra.mxu0 %v2198
    %2773 = vmatpush.bf16.msra.mxu0 %v2194
    %2774 = vmatmul.bf16.gmra.mxu0 %v2752
    %v2775 = vpop.f32.mrf.mxu0
    %v2776 = vadd.f32 0.0, %v2775
    %v2777 = vpop.f32.mrf.mxu0
    %2778 = vdwg.mxu0
    %2779 = vmatpush.bf16.msra.mxu0 %v2223
    %2780 = vmatpush.bf16.msra.mxu0 %v2219
    %2781 = vmatpush.bf16.msra.mxu0 %v2215
    %2782 = vmatpush.bf16.msra.mxu0 %v2211
    %2783 = vmatpush.bf16.msra.mxu0 %v2207
    %2784 = vmatpush.bf16.msra.mxu0 %v2203
    %2785 = vmatpush.bf16.msra.mxu0 %v2199
    %2786 = vmatpush.bf16.msra.mxu0 %v2195
    %2787 = vmatmul.bf16.gmra.mxu0 %v2752
    %v2788 = vpop.f32.mrf.mxu0
    %v2789 = vadd.f32 0.0, %v2788
    %v2790 = vpop.f32.mrf.mxu0
    %2791 = vdwg.mxu0
    %2792 = vmatpush.bf16.msra.mxu0 %v2224
    %2793 = vmatpush.bf16.msra.mxu0 %v2220
    %2794 = vmatpush.bf16.msra.mxu0 %v2216
    %2795 = vmatpush.bf16.msra.mxu0 %v2212
    %2796 = vmatpush.bf16.msra.mxu0 %v2208
    %2797 = vmatpush.bf16.msra.mxu0 %v2204
    %2798 = vmatpush.bf16.msra.mxu0 %v2200
    %2799 = vmatpush.bf16.msra.mxu0 %v2196
    %2800 = vmatmul.bf16.gmra.mxu0 %v2752
    %v2801 = vpop.f32.mrf.mxu0
    %v2802 = vadd.f32 0.0, %v2801
    %v2803 = vpop.f32.mrf.mxu0
    %2804 = vdwg.mxu0
    %v2805 = vadd.f32 %v2748, %v2763
    %v2806 = vadd.f32 %v2749, %v2776
    %v2807 = vadd.f32 %v2750, %v2789
    %v2808 = vadd.f32 %v2751, %v2802
    %v2809 = vxor.u32 %v2805, 2147483648
    %v2810 = vmul.f32 %v2809, 1.442695
    %v2811 = vpow.pop %v2810
    %v2812 = vadd.f32 %v2811, 1.0
    %v2813 = vrcp.pop %v2812
    %v2814 = vmul.f32 %v2812, %v2813
    %v2815 = vsub.f32 1.0, %v2814
    %v2816 = vmul.f32 %v2813, %v2815
    %v2817 = vadd.f32 %v2813, %v2816
    %vm2818 = vweird.f32 %v2812
    %vm2819 = vweird.f32 %v2813
    %vm2820 = vmor %vm2818, %vm2819
    %v2821 = vsel %vm2820, %v2813, %v2817
    %v2822 = vand.u32 2147483647, %v2812
    %vm2823 = vcmp.eq.f32.partialorder %v2822, 8.507059e+37
    %v2824 = vand.u32 %v2812, 2147483648
    %v2825 = vor.u32 1.1754944e-38, %v2824
    %v2826 = vsel %vm2823, %v2825, %v2821
    %v2827 = vmul.f32 1.0, %v2826
    %v2828 = vxor.u32 %v2806, 2147483648
    %v2829 = vmul.f32 %v2828, 1.442695
    %v2830 = vpow.pop %v2829
    %v2831 = vadd.f32 %v2830, 1.0
    %v2832 = vrcp.pop %v2831
    %v2833 = vmul.f32 %v2831, %v2832
    %v2834 = vsub.f32 1.0, %v2833
    %v2835 = vmul.f32 %v2832, %v2834
    %v2836 = vadd.f32 %v2832, %v2835
    %vm2837 = vweird.f32 %v2831
    %vm2838 = vweird.f32 %v2832
    %vm2839 = vmor %vm2837, %vm2838
    %v2840 = vsel %vm2839, %v2832, %v2836
    %v2841 = vand.u32 2147483647, %v2831
    %vm2842 = vcmp.eq.f32.partialorder %v2841, 8.507059e+37
    %v2843 = vand.u32 %v2831, 2147483648
    %v2844 = vor.u32 1.1754944e-38, %v2843
    %v2845 = vsel %vm2842, %v2844, %v2840
    %v2846 = vmul.f32 1.0, %v2845
    %v2847 = vtanh.pop %v2807
    %v2848 = vxor.u32 %v2808, 2147483648
    %v2849 = vmul.f32 %v2848, 1.442695
    %v2850 = vpow.pop %v2849
    %v2851 = vadd.f32 %v2850, 1.0
    %v2852 = vrcp.pop %v2851
    %v2853 = vmul.f32 %v2851, %v2852
    %v2854 = vsub.f32 1.0, %v2853
    %v2855 = vmul.f32 %v2852, %v2854
    %v2856 = vadd.f32 %v2852, %v2855
    %vm2857 = vweird.f32 %v2851
    %vm2858 = vweird.f32 %v2852
    %vm2859 = vmor %vm2857, %vm2858
    %v2860 = vsel %vm2859, %v2852, %v2856
    %v2861 = vand.u32 2147483647, %v2851
    %vm2862 = vcmp.eq.f32.partialorder %v2861, 8.507059e+37
    %v2863 = vand.u32 %v2851, 2147483648
    %v2864 = vor.u32 1.1754944e-38, %v2863
    %v2865 = vsel %vm2862, %v2864, %v2860
    %v2866 = vmul.f32 1.0, %v2865
    %v2867 = vmul.f32 %v2846, %v2745
    %v2868 = vmul.f32 %v2827, %v2847
    %v2869 = vadd.f32 %v2867, %v2868
    %v2870 = vtanh.pop %v2869
    %v2871 = vmul.f32 %v2866, %v2870
    %v2872 = vld [vmem:[%s1290] sm:$0xff]
    %v2873 = vld [vmem:[%s1290 + $0x8] sm:$0xff]
    %v2874 = vld [vmem:[%s1290 + $0x10] sm:$0xff]
    %v2875 = vld [vmem:[%s1290 + $0x18] sm:$0xff]
    %v2876 = vpack.c.bf16 %v2871, %v2871
    %2877 = vmatpush.bf16.msra.mxu0 %v2221
    %2878 = vmatpush.bf16.msra.mxu0 %v2217
    %2879 = vmatpush.bf16.msra.mxu0 %v2213
    %2880 = vmatpush.bf16.msra.mxu0 %v2209
    %2881 = vmatpush.bf16.msra.mxu0 %v2205
    %2882 = vmatpush.bf16.msra.mxu0 %v2201
    %2883 = vmatpush.bf16.msra.mxu0 %v2197
    %2884 = vmatpush.bf16.msra.mxu0 %v2193
    %2885 = vmatmul.bf16.gmra.mxu0 %v2876
    %v2886 = vpop.f32.mrf.mxu0
    %v2887 = vadd.f32 0.0, %v2886
    %v2888 = vpop.f32.mrf.mxu0
    %2889 = vdwg.mxu0
    %2890 = vmatpush.bf16.msra.mxu0 %v2222
    %2891 = vmatpush.bf16.msra.mxu0 %v2218
    %2892 = vmatpush.bf16.msra.mxu0 %v2214
    %2893 = vmatpush.bf16.msra.mxu0 %v2210
    %2894 = vmatpush.bf16.msra.mxu0 %v2206
    %2895 = vmatpush.bf16.msra.mxu0 %v2202
    %2896 = vmatpush.bf16.msra.mxu0 %v2198
    %2897 = vmatpush.bf16.msra.mxu0 %v2194
    %2898 = vmatmul.bf16.gmra.mxu0 %v2876
    %v2899 = vpop.f32.mrf.mxu0
    %v2900 = vadd.f32 0.0, %v2899
    %v2901 = vpop.f32.mrf.mxu0
    %2902 = vdwg.mxu0
    %2903 = vmatpush.bf16.msra.mxu0 %v2223
    %2904 = vmatpush.bf16.msra.mxu0 %v2219
    %2905 = vmatpush.bf16.msra.mxu0 %v2215
    %2906 = vmatpush.bf16.msra.mxu0 %v2211
    %2907 = vmatpush.bf16.msra.mxu0 %v2207
    %2908 = vmatpush.bf16.msra.mxu0 %v2203
    %2909 = vmatpush.bf16.msra.mxu0 %v2199
    %2910 = vmatpush.bf16.msra.mxu0 %v2195
    %2911 = vmatmul.bf16.gmra.mxu0 %v2876
    %v2912 = vpop.f32.mrf.mxu0
    %v2913 = vadd.f32 0.0, %v2912
    %v2914 = vpop.f32.mrf.mxu0
    %2915 = vdwg.mxu0
    %2916 = vmatpush.bf16.msra.mxu0 %v2224
    %2917 = vmatpush.bf16.msra.mxu0 %v2220
    %2918 = vmatpush.bf16.msra.mxu0 %v2216
    %2919 = vmatpush.bf16.msra.mxu0 %v2212
    %2920 = vmatpush.bf16.msra.mxu0 %v2208
    %2921 = vmatpush.bf16.msra.mxu0 %v2204
    %2922 = vmatpush.bf16.msra.mxu0 %v2200
    %2923 = vmatpush.bf16.msra.mxu0 %v2196
    %2924 = vmatmul.bf16.gmra.mxu0 %v2876
    %v2925 = vpop.f32.mrf.mxu0
    %v2926 = vadd.f32 0.0, %v2925
    %v2927 = vpop.f32.mrf.mxu0
    %2928 = vdwg.mxu0
    %v2929 = vadd.f32 %v2872, %v2887
    %v2930 = vadd.f32 %v2873, %v2900
    %v2931 = vadd.f32 %v2874, %v2913
    %v2932 = vadd.f32 %v2875, %v2926
    %v2933 = vxor.u32 %v2929, 2147483648
    %v2934 = vmul.f32 %v2933, 1.442695
    %v2935 = vpow.pop %v2934
    %v2936 = vadd.f32 %v2935, 1.0
    %v2937 = vrcp.pop %v2936
    %v2938 = vmul.f32 %v2936, %v2937
    %v2939 = vsub.f32 1.0, %v2938
    %v2940 = vmul.f32 %v2937, %v2939
    %v2941 = vadd.f32 %v2937, %v2940
    %vm2942 = vweird.f32 %v2936
    %vm2943 = vweird.f32 %v2937
    %vm2944 = vmor %vm2942, %vm2943
    %v2945 = vsel %vm2944, %v2937, %v2941
    %v2946 = vand.u32 2147483647, %v2936
    %vm2947 = vcmp.eq.f32.partialorder %v2946, 8.507059e+37
    %v2948 = vand.u32 %v2936, 2147483648
    %v2949 = vor.u32 1.1754944e-38, %v2948
    %v2950 = vsel %vm2947, %v2949, %v2945
    %v2951 = vmul.f32 1.0, %v2950
    %v2952 = vxor.u32 %v2930, 2147483648
    %v2953 = vmul.f32 %v2952, 1.442695
    %v2954 = vpow.pop %v2953
    %v2955 = vadd.f32 %v2954, 1.0
    %v2956 = vrcp.pop %v2955
    %v2957 = vmul.f32 %v2955, %v2956
    %v2958 = vsub.f32 1.0, %v2957
    %v2959 = vmul.f32 %v2956, %v2958
    %v2960 = vadd.f32 %v2956, %v2959
    %vm2961 = vweird.f32 %v2955
    %vm2962 = vweird.f32 %v2956
    %vm2963 = vmor %vm2961, %vm2962
    %v2964 = vsel %vm2963, %v2956, %v2960
    %v2965 = vand.u32 2147483647, %v2955
    %vm2966 = vcmp.eq.f32.partialorder %v2965, 8.507059e+37
    %v2967 = vand.u32 %v2955, 2147483648
    %v2968 = vor.u32 1.1754944e-38, %v2967
    %v2969 = vsel %vm2966, %v2968, %v2964
    %v2970 = vmul.f32 1.0, %v2969
    %v2971 = vtanh.pop %v2931
    %v2972 = vxor.u32 %v2932, 2147483648
    %v2973 = vmul.f32 %v2972, 1.442695
    %v2974 = vpow.pop %v2973
    %v2975 = vadd.f32 %v2974, 1.0
    %v2976 = vrcp.pop %v2975
    %v2977 = vmul.f32 %v2975, %v2976
    %v2978 = vsub.f32 1.0, %v2977
    %v2979 = vmul.f32 %v2976, %v2978
    %v2980 = vadd.f32 %v2976, %v2979
    %vm2981 = vweird.f32 %v2975
    %vm2982 = vweird.f32 %v2976
    %vm2983 = vmor %vm2981, %vm2982
    %v2984 = vsel %vm2983, %v2976, %v2980
    %v2985 = vand.u32 2147483647, %v2975
    %vm2986 = vcmp.eq.f32.partialorder %v2985, 8.507059e+37
    %v2987 = vand.u32 %v2975, 2147483648
    %v2988 = vor.u32 1.1754944e-38, %v2987
    %v2989 = vsel %vm2986, %v2988, %v2984
    %v2990 = vmul.f32 1.0, %v2989
    %v2991 = vmul.f32 %v2970, %v2869
    %v2992 = vmul.f32 %v2951, %v2971
    %v2993 = vadd.f32 %v2991, %v2992
    %v2994 = vtanh.pop %v2993
    %v2995 = vmul.f32 %v2990, %v2994
    %v2996 = vld [vmem:[%s1419] sm:$0xff]
    %v2997 = vld [vmem:[%s1419 + $0x8] sm:$0xff]
    %v2998 = vld [vmem:[%s1419 + $0x10] sm:$0xff]
    %v2999 = vld [vmem:[%s1419 + $0x18] sm:$0xff]
    %v3000 = vpack.c.bf16 %v2995, %v2995
    %3001 = vmatpush.bf16.msra.mxu0 %v2221
    %3002 = vmatpush.bf16.msra.mxu0 %v2217
    %3003 = vmatpush.bf16.msra.mxu0 %v2213
    %3004 = vmatpush.bf16.msra.mxu0 %v2209
    %3005 = vmatpush.bf16.msra.mxu0 %v2205
    %3006 = vmatpush.bf16.msra.mxu0 %v2201
    %3007 = vmatpush.bf16.msra.mxu0 %v2197
    %3008 = vmatpush.bf16.msra.mxu0 %v2193
    %3009 = vmatmul.bf16.gmra.mxu0 %v3000
    %v3010 = vpop.f32.mrf.mxu0
    %v3011 = vadd.f32 0.0, %v3010
    %v3012 = vpop.f32.mrf.mxu0
    %3013 = vdwg.mxu0
    %3014 = vmatpush.bf16.msra.mxu0 %v2222
    %3015 = vmatpush.bf16.msra.mxu0 %v2218
    %3016 = vmatpush.bf16.msra.mxu0 %v2214
    %3017 = vmatpush.bf16.msra.mxu0 %v2210
    %3018 = vmatpush.bf16.msra.mxu0 %v2206
    %3019 = vmatpush.bf16.msra.mxu0 %v2202
    %3020 = vmatpush.bf16.msra.mxu0 %v2198
    %3021 = vmatpush.bf16.msra.mxu0 %v2194
    %3022 = vmatmul.bf16.gmra.mxu0 %v3000
    %v3023 = vpop.f32.mrf.mxu0
    %v3024 = vadd.f32 0.0, %v3023
    %v3025 = vpop.f32.mrf.mxu0
    %3026 = vdwg.mxu0
    %3027 = vmatpush.bf16.msra.mxu0 %v2223
    %3028 = vmatpush.bf16.msra.mxu0 %v2219
    %3029 = vmatpush.bf16.msra.mxu0 %v2215
    %3030 = vmatpush.bf16.msra.mxu0 %v2211
    %3031 = vmatpush.bf16.msra.mxu0 %v2207
    %3032 = vmatpush.bf16.msra.mxu0 %v2203
    %3033 = vmatpush.bf16.msra.mxu0 %v2199
    %3034 = vmatpush.bf16.msra.mxu0 %v2195
    %3035 = vmatmul.bf16.gmra.mxu0 %v3000
    %v3036 = vpop.f32.mrf.mxu0
    %v3037 = vadd.f32 0.0, %v3036
    %v3038 = vpop.f32.mrf.mxu0
    %3039 = vdwg.mxu0
    %3040 = vmatpush.bf16.msra.mxu0 %v2224
    %3041 = vmatpush.bf16.msra.mxu0 %v2220
    %3042 = vmatpush.bf16.msra.mxu0 %v2216
    %3043 = vmatpush.bf16.msra.mxu0 %v2212
    %3044 = vmatpush.bf16.msra.mxu0 %v2208
    %3045 = vmatpush.bf16.msra.mxu0 %v2204
    %3046 = vmatpush.bf16.msra.mxu0 %v2200
    %3047 = vmatpush.bf16.msra.mxu0 %v2196
    %3048 = vmatmul.bf16.gmra.mxu0 %v3000
    %v3049 = vpop.f32.mrf.mxu0
    %v3050 = vadd.f32 0.0, %v3049
    %v3051 = vpop.f32.mrf.mxu0
    %3052 = vdwg.mxu0
    %v3053 = vadd.f32 %v2996, %v3011
    %v3054 = vadd.f32 %v2997, %v3024
    %v3055 = vadd.f32 %v2998, %v3037
    %v3056 = vadd.f32 %v2999, %v3050
    %v3057 = vxor.u32 %v3053, 2147483648
    %v3058 = vmul.f32 %v3057, 1.442695
    %v3059 = vpow.pop %v3058
    %v3060 = vadd.f32 %v3059, 1.0
    %v3061 = vrcp.pop %v3060
    %v3062 = vmul.f32 %v3060, %v3061
    %v3063 = vsub.f32 1.0, %v3062
    %v3064 = vmul.f32 %v3061, %v3063
    %v3065 = vadd.f32 %v3061, %v3064
    %vm3066 = vweird.f32 %v3060
    %vm3067 = vweird.f32 %v3061
    %vm3068 = vmor %vm3066, %vm3067
    %v3069 = vsel %vm3068, %v3061, %v3065
    %v3070 = vand.u32 2147483647, %v3060
    %vm3071 = vcmp.eq.f32.partialorder %v3070, 8.507059e+37
    %v3072 = vand.u32 %v3060, 2147483648
    %v3073 = vor.u32 1.1754944e-38, %v3072
    %v3074 = vsel %vm3071, %v3073, %v3069
    %v3075 = vmul.f32 1.0, %v3074
    %v3076 = vxor.u32 %v3054, 2147483648
    %v3077 = vmul.f32 %v3076, 1.442695
    %v3078 = vpow.pop %v3077
    %v3079 = vadd.f32 %v3078, 1.0
    %v3080 = vrcp.pop %v3079
    %v3081 = vmul.f32 %v3079, %v3080
    %v3082 = vsub.f32 1.0, %v3081
    %v3083 = vmul.f32 %v3080, %v3082
    %v3084 = vadd.f32 %v3080, %v3083
    %vm3085 = vweird.f32 %v3079
    %vm3086 = vweird.f32 %v3080
    %vm3087 = vmor %vm3085, %vm3086
    %v3088 = vsel %vm3087, %v3080, %v3084
    %v3089 = vand.u32 2147483647, %v3079
    %vm3090 = vcmp.eq.f32.partialorder %v3089, 8.507059e+37
    %v3091 = vand.u32 %v3079, 2147483648
    %v3092 = vor.u32 1.1754944e-38, %v3091
    %v3093 = vsel %vm3090, %v3092, %v3088
    %v3094 = vmul.f32 1.0, %v3093
    %v3095 = vtanh.pop %v3055
    %v3096 = vxor.u32 %v3056, 2147483648
    %v3097 = vmul.f32 %v3096, 1.442695
    %v3098 = vpow.pop %v3097
    %v3099 = vadd.f32 %v3098, 1.0
    %v3100 = vrcp.pop %v3099
    %v3101 = vmul.f32 %v3099, %v3100
    %v3102 = vsub.f32 1.0, %v3101
    %v3103 = vmul.f32 %v3100, %v3102
    %v3104 = vadd.f32 %v3100, %v3103
    %vm3105 = vweird.f32 %v3099
    %vm3106 = vweird.f32 %v3100
    %vm3107 = vmor %vm3105, %vm3106
    %v3108 = vsel %vm3107, %v3100, %v3104
    %v3109 = vand.u32 2147483647, %v3099
    %vm3110 = vcmp.eq.f32.partialorder %v3109, 8.507059e+37
    %v3111 = vand.u32 %v3099, 2147483648
    %v3112 = vor.u32 1.1754944e-38, %v3111
    %v3113 = vsel %vm3110, %v3112, %v3108
    %v3114 = vmul.f32 1.0, %v3113
    %v3115 = vmul.f32 %v3094, %v2993
    %v3116 = vmul.f32 %v3075, %v3095
    %v3117 = vadd.f32 %v3115, %v3116
    %v3118 = vtanh.pop %v3117
    %v3119 = vmul.f32 %v3114, %v3118
    %v3120 = vld [vmem:[%s1548] sm:$0xff]
    %v3121 = vld [vmem:[%s1548 + $0x8] sm:$0xff]
    %v3122 = vld [vmem:[%s1548 + $0x10] sm:$0xff]
    %v3123 = vld [vmem:[%s1548 + $0x18] sm:$0xff]
    %v3124 = vpack.c.bf16 %v3119, %v3119
    %3125 = vmatpush.bf16.msra.mxu0 %v2221
    %3126 = vmatpush.bf16.msra.mxu0 %v2217
    %3127 = vmatpush.bf16.msra.mxu0 %v2213
    %3128 = vmatpush.bf16.msra.mxu0 %v2209
    %3129 = vmatpush.bf16.msra.mxu0 %v2205
    %3130 = vmatpush.bf16.msra.mxu0 %v2201
    %3131 = vmatpush.bf16.msra.mxu0 %v2197
    %3132 = vmatpush.bf16.msra.mxu0 %v2193
    %3133 = vmatmul.bf16.gmra.mxu0 %v3124
    %v3134 = vpop.f32.mrf.mxu0
    %v3135 = vadd.f32 0.0, %v3134
    %v3136 = vpop.f32.mrf.mxu0
    %3137 = vdwg.mxu0
    %3138 = vmatpush.bf16.msra.mxu0 %v2222
    %3139 = vmatpush.bf16.msra.mxu0 %v2218
    %3140 = vmatpush.bf16.msra.mxu0 %v2214
    %3141 = vmatpush.bf16.msra.mxu0 %v2210
    %3142 = vmatpush.bf16.msra.mxu0 %v2206
    %3143 = vmatpush.bf16.msra.mxu0 %v2202
    %3144 = vmatpush.bf16.msra.mxu0 %v2198
    %3145 = vmatpush.bf16.msra.mxu0 %v2194
    %3146 = vmatmul.bf16.gmra.mxu0 %v3124
    %v3147 = vpop.f32.mrf.mxu0
    %v3148 = vadd.f32 0.0, %v3147
    %v3149 = vpop.f32.mrf.mxu0
    %3150 = vdwg.mxu0
    %3151 = vmatpush.bf16.msra.mxu0 %v2223
    %3152 = vmatpush.bf16.msra.mxu0 %v2219
    %3153 = vmatpush.bf16.msra.mxu0 %v2215
    %3154 = vmatpush.bf16.msra.mxu0 %v2211
    %3155 = vmatpush.bf16.msra.mxu0 %v2207
    %3156 = vmatpush.bf16.msra.mxu0 %v2203
    %3157 = vmatpush.bf16.msra.mxu0 %v2199
    %3158 = vmatpush.bf16.msra.mxu0 %v2195
    %3159 = vmatmul.bf16.gmra.mxu0 %v3124
    %v3160 = vpop.f32.mrf.mxu0
    %v3161 = vadd.f32 0.0, %v3160
    %v3162 = vpop.f32.mrf.mxu0
    %3163 = vdwg.mxu0
    %3164 = vmatpush.bf16.msra.mxu0 %v2224
    %3165 = vmatpush.bf16.msra.mxu0 %v2220
    %3166 = vmatpush.bf16.msra.mxu0 %v2216
    %3167 = vmatpush.bf16.msra.mxu0 %v2212
    %3168 = vmatpush.bf16.msra.mxu0 %v2208
    %3169 = vmatpush.bf16.msra.mxu0 %v2204
    %3170 = vmatpush.bf16.msra.mxu0 %v2200
    %3171 = vmatpush.bf16.msra.mxu0 %v2196
    %3172 = vmatmul.bf16.gmra.mxu0 %v3124
    %v3173 = vpop.f32.mrf.mxu0
    %v3174 = vadd.f32 0.0, %v3173
    %v3175 = vpop.f32.mrf.mxu0
    %3176 = vdwg.mxu0
    %v3177 = vadd.f32 %v3120, %v3135
    %v3178 = vadd.f32 %v3121, %v3148
    %v3179 = vadd.f32 %v3122, %v3161
    %v3180 = vadd.f32 %v3123, %v3174
    %v3181 = vxor.u32 %v3177, 2147483648
    %v3182 = vmul.f32 %v3181, 1.442695
    %v3183 = vpow.pop %v3182
    %v3184 = vadd.f32 %v3183, 1.0
    %v3185 = vrcp.pop %v3184
    %v3186 = vmul.f32 %v3184, %v3185
    %v3187 = vsub.f32 1.0, %v3186
    %v3188 = vmul.f32 %v3185, %v3187
    %v3189 = vadd.f32 %v3185, %v3188
    %vm3190 = vweird.f32 %v3184
    %vm3191 = vweird.f32 %v3185
    %vm3192 = vmor %vm3190, %vm3191
    %v3193 = vsel %vm3192, %v3185, %v3189
    %v3194 = vand.u32 2147483647, %v3184
    %vm3195 = vcmp.eq.f32.partialorder %v3194, 8.507059e+37
    %v3196 = vand.u32 %v3184, 2147483648
    %v3197 = vor.u32 1.1754944e-38, %v3196
    %v3198 = vsel %vm3195, %v3197, %v3193
    %v3199 = vmul.f32 1.0, %v3198
    %v3200 = vxor.u32 %v3178, 2147483648
    %v3201 = vmul.f32 %v3200, 1.442695
    %v3202 = vpow.pop %v3201
    %v3203 = vadd.f32 %v3202, 1.0
    %v3204 = vrcp.pop %v3203
    %v3205 = vmul.f32 %v3203, %v3204
    %v3206 = vsub.f32 1.0, %v3205
    %v3207 = vmul.f32 %v3204, %v3206
    %v3208 = vadd.f32 %v3204, %v3207
    %vm3209 = vweird.f32 %v3203
    %vm3210 = vweird.f32 %v3204
    %vm3211 = vmor %vm3209, %vm3210
    %v3212 = vsel %vm3211, %v3204, %v3208
    %v3213 = vand.u32 2147483647, %v3203
    %vm3214 = vcmp.eq.f32.partialorder %v3213, 8.507059e+37
    %v3215 = vand.u32 %v3203, 2147483648
    %v3216 = vor.u32 1.1754944e-38, %v3215
    %v3217 = vsel %vm3214, %v3216, %v3212
    %v3218 = vmul.f32 1.0, %v3217
    %v3219 = vtanh.pop %v3179
    %v3220 = vxor.u32 %v3180, 2147483648
    %v3221 = vmul.f32 %v3220, 1.442695
    %v3222 = vpow.pop %v3221
    %v3223 = vadd.f32 %v3222, 1.0
    %v3224 = vrcp.pop %v3223
    %v3225 = vmul.f32 %v3223, %v3224
    %v3226 = vsub.f32 1.0, %v3225
    %v3227 = vmul.f32 %v3224, %v3226
    %v3228 = vadd.f32 %v3224, %v3227
    %vm3229 = vweird.f32 %v3223
    %vm3230 = vweird.f32 %v3224
    %vm3231 = vmor %vm3229, %vm3230
    %v3232 = vsel %vm3231, %v3224, %v3228
    %v3233 = vand.u32 2147483647, %v3223
    %vm3234 = vcmp.eq.f32.partialorder %v3233, 8.507059e+37
    %v3235 = vand.u32 %v3223, 2147483648
    %v3236 = vor.u32 1.1754944e-38, %v3235
    %v3237 = vsel %vm3234, %v3236, %v3232
    %v3238 = vmul.f32 1.0, %v3237
    %v3239 = vmul.f32 %v3218, %v3117
    %v3240 = vmul.f32 %v3199, %v3219
    %v3241 = vadd.f32 %v3239, %v3240
    %v3242 = vtanh.pop %v3241
    %v3243 = vmul.f32 %v3238, %v3242
    %s3244 = scalar_lea.vmem %s5, 8
    %3245 = vst [vmem:[%s3244] sm:$0xff] %v3243
    %s3246 = scalar_lea.vmem %s6, 8
    %3247 = vst [vmem:[%s3246] sm:$0xff] %v3241
    // Predicated region
    $region34: #{_encoder_forward_impl.1} parent=1 // pred_check
      _
    $region35: #{_encoder_forward_impl.1} parent=1 // pred_check_branch
      %3249 = sbr.rel (0) target = $region37
    $region36: #{_encoder_forward_impl.1} parent=1 // pred_region
      _
    $region37: #{_encoder_forward_impl.1} parent=1 // pred_fallthru
      _
    // Predicated region
    $region38: #{_encoder_forward_impl.1} parent=1 // pred_check
      _
    $region39: #{_encoder_forward_impl.1} parent=1 // pred_check_branch
      %3251 = sbr.rel (0) target = $region41
    $region40: #{_encoder_forward_impl.1} parent=1 // pred_region
      _
    $region41: #{_encoder_forward_impl.1} parent=1 // pred_fallthru
      _
    // Predicated region
    $region42: #{_encoder_forward_impl.1} parent=1 // pred_check
      _
    $region43: #{_encoder_forward_impl.1} parent=1 // pred_check_branch
      %3253 = sbr.rel (0) target = $region45
    $region44: #{_encoder_forward_impl.1} parent=1 // pred_region
      _
    $region45: #{_encoder_forward_impl.1} parent=1 // pred_fallthru
      _
    // Predicated region
    $region46: #{_encoder_forward_impl.1} parent=1 // pred_check
      _
    $region47: #{_encoder_forward_impl.1} parent=1 // pred_check_branch
      %3255 = sbr.rel (0) target = $region49
    $region48: #{_encoder_forward_impl.1} parent=1 // pred_region
      _
    $region49: #{_encoder_forward_impl.1} parent=1 // pred_fallthru
      _
    %3256 = vsyncpa [#allocation5], 1
    %3257 = vsyncpa [#allocation7], 1

</llo_original>
